<compile_context>
chip_gen: v5e
topology: v5e:2x2
jax: 0.10.0
libtpu: 0.0.40
codegen_flags: <defaults>
</compile_context>

<pallas_src>
import functools
import math

import numpy as np

import jax
import jax.numpy as jnp
from jax.experimental import pallas as pl
from jax.experimental.pallas import tpu as pltpu


# -----------------------------------------------------------------------------
# Fused per-cascade kernel
# -----------------------------------------------------------------------------
def _cascade_unet_kernel(x_row_ref, m_row_ref,
                         maskf_ref, maskh_ref, pool_ref, up_ref, freq_ref,
                         we1_ref, be1_ref, we2_ref, be2_ref,
                         wb1_ref, bb1_ref, wb2_ref, bb2_ref,
                         wd1_ref, bd1_ref, wd2_ref, bd2_ref,
                         wo_ref, bo_ref,
                         o_ref, *, H, W, KH, KW, L, CPE_PAD, SEPARABLE):
    HW = H * W
    H2, W2 = H // 2, W // 2
    HW2 = H2 * W2
    ph, pw = KH // 2, KW // 2
    KK = KH * KW

    relu = lambda v: jnp.maximum(v, 0.0)

    # Host-precomputed border-validity masks, sliced once per resolution.
    vm_f = maskf_ref[...]
    vm_h = maskh_ref[...]
    masks_f = [vm_f[t:t + 1, :] for t in range(KK)]
    masks_h = [vm_h[t:t + 1, :] for t in range(KK)]

    def conv(xs, masks, Wc, HWc, w_ref, b_ref):
        """'same' KHxKW conv in (C, HW) layout as ONE im2col MXU matmul.

        Each tap's shifted operand is a circular lane roll of the flat spatial
        axis times a (1, HWc) border mask (broadcast over channels); the
        KH*KW*sum(Cin) slabs are stacked along the contraction axis and fed to a
        single bf16 matmul with f32 accumulation.
        """
        taps = []
        for dy in range(KH):
            for dx in range(KW):
                t = dy * KW + dx
                s = (dy - ph) * Wc + (dx - pw)
                m = masks[t]
                for x in xs:
                    if s == 0:
                        taps.append(x)                       # centre tap: mask is all ones
                    else:
                        xt = pltpu.roll(x, shift=(-s) % HWc, axis=1)
                        taps.append(xt * m)
        stacked = jnp.concatenate(taps, axis=0).astype(jnp.bfloat16)  # (KK*sumCin, HWc)
        out = jnp.dot(w_ref[...], stacked, preferred_element_type=jnp.float32)
        return out + b_ref[...]                                        # (Cout, HWc)

    # ---- positional encoding, lane-dense from the (1, HW) input row ------------
    x_row = x_row_ref[...][0]                                  # (1, HW) f32
    ang = freq_ref[...] * x_row                                # (L, 1)*(1, HW) -> (L, HW)
    pe_parts = [x_row, jnp.sin(ang), jnp.cos(ang)]
    pad = CPE_PAD - (1 + 2 * L)
    if pad:
        pe_parts.append(jnp.zeros((pad, HW), jnp.float32))
    pe = jnp.concatenate(pe_parts, axis=0)                     # (CPE_PAD, HW)

    # ---- encoder (full resolution) ----------------------------------------------
    e1 = relu(conv([pe], masks_f, W, HW, we1_ref, be1_ref))    # (F, HW)
    e2 = relu(conv([e1], masks_f, W, HW, we2_ref, be2_ref))    # (F, HW)

    # ---- 2x2 average pool ---------------------------------------------------------
    F = e2.shape[0]
    if SEPARABLE:
        # Paired-row view: row (c, h2) = [image row 2h2 | image row 2h2+1],
        # pooled by a tiny (2W, W2) constant matmul.
        d0 = jnp.dot(e2.reshape(F, H2, 2 * W).reshape(F * H2, 2 * W), pool_ref[...],
                     preferred_element_type=jnp.float32)       # (F*H2, W2)
        d0 = d0.reshape(F, H2, W2).reshape(F, HW2)             # (F, HW/4)
    else:
        # Lowering-safety fallback only (dense O(HW^2) matrix).
        d0 = jnp.dot(e2, pool_ref[...], preferred_element_type=jnp.float32)

    # ---- bottleneck (half resolution) ---------------------------------------------
    b1 = relu(conv([d0], masks_h, W2, HW2, wb1_ref, bb1_ref))  # (2F, HW/4)
    b2 = relu(conv([b1], masks_h, W2, HW2, wb2_ref, bb2_ref))  # (2F, HW/4)

    # ---- nearest-neighbour 2x upsample ---------------------------------------------
    F2 = b2.shape[0]
    if SEPARABLE:
        u = jnp.dot(b2.reshape(F2, H2, W2).reshape(F2 * H2, W2), up_ref[...],
                    preferred_element_type=jnp.float32)        # (F2*H2, 2W)
        u = u.reshape(F2, H2, 2 * W).reshape(F2, HW)           # (2F, HW)
    else:
        u = jnp.dot(b2, up_ref[...], preferred_element_type=jnp.float32)

    # ---- decoder: skip connection fused into the same im2col matmul ---------------
    d1 = relu(conv([u, e2], masks_f, W, HW, wd1_ref, bd1_ref))  # (F, HW)
    d2 = relu(conv([d1], masks_f, W, HW, wd2_ref, bd2_ref))     # (F, HW)

    # ---- 1x1 output conv: per-channel weighted sum (no transpose, no M=1 matmul) --
    net_row = jnp.sum(d2 * wo_ref[...], axis=0, keepdims=True) + bo_ref[...]  # (1, HW)

    # ---- data consistency: keep observed samples, network output elsewhere --------
    m_row = m_row_ref[...][0]                                   # (1, HW)
    o_ref[0] = m_row * x_row + (1.0 - m_row) * net_row


# -----------------------------------------------------------------------------
# Host-side constants / parameter prep
# -----------------------------------------------------------------------------
def build_constants(H, W, L, k):
    """Freq column, separable pool/upsample matrices, per-tap border masks."""
    H2, W2 = H // 2, W // 2
    freq = (math.pi * (2.0 ** np.arange(L, dtype=np.float64))).astype(np.float32)
    freq = freq.reshape(L, 1)

    j = np.arange(2 * W)
    w2 = np.arange(W2)
    sel = ((j[:, None] % W) // 2 == w2[None, :])
    pmat = 0.25 * sel.astype(np.float32)            # (2W, W2): 2x2 avg over paired rows
    umat = sel.T.astype(np.float32)                  # (W2, 2W): nearest 2x over paired rows

    def masks(Hc, Wc):
        r = np.arange(Hc * Wc)
        hh, ww = r // Wc, r % Wc
        out = np.zeros((k * k, Hc * Wc), np.float32)
        p = k // 2
        for dy in range(k):
            for dx in range(k):
                oy, ox = dy - p, dx - p
                v = (hh + oy >= 0) & (hh + oy < Hc) & (ww + ox >= 0) & (ww + ox < Wc)
                out[dy * k + dx] = v.astype(np.float32)
        return out

    return (jnp.asarray(freq), jnp.asarray(pmat), jnp.asarray(umat),
            jnp.asarray(masks(H, W)), jnp.asarray(masks(H2, W2)))


def build_dense_pool_up(H, W):
    """Fallback only: O(HW^2) pool/upsample matrices (used solely if the separable
    reshape path fails to lower on the installed backend)."""
    H2, W2 = H // 2, W // 2
    r = np.arange(H * W)
    h, w = r // W, r % W
    c = (h // 2) * W2 + (w // 2)
    poolT = np.zeros((H * W, H2 * W2), np.float32)
    poolT[r, c] = 0.25
    upT = np.zeros((H2 * W2, H * W), np.float32)
    upT[c, r] = 1.0
    return jnp.asarray(poolT), jnp.asarray(upT)


def init_unet_params(key, cin, cout, filters, k):
    keys = jax.random.split(key, 14)

    def conv_init(kw_key, kb_key, kh, kw, ci, co):
        fan_in = kh * kw * ci
        w = jax.random.normal(kw_key, (kh, kw, ci, co), jnp.float32) / math.sqrt(fan_in)
        b = 0.01 * jax.random.normal(kb_key, (1, co), jnp.float32)
        return w, b

    p = {}
    p["enc1_w"], p["enc1_b"] = conv_init(keys[0], keys[1], k, k, cin, filters)
    p["enc2_w"], p["enc2_b"] = conv_init(keys[2], keys[3], k, k, filters, filters)
    p["bot1_w"], p["bot1_b"] = conv_init(keys[4], keys[5], k, k, filters, 2 * filters)
    p["bot2_w"], p["bot2_b"] = conv_init(keys[6], keys[7], k, k, 2 * filters, 2 * filters)
    p["dec1_w"], p["dec1_b"] = conv_init(keys[8], keys[9], k, k, 3 * filters, filters)
    p["dec2_w"], p["dec2_b"] = conv_init(keys[10], keys[11], k, k, filters, filters)
    p["out_w"], p["out_b"] = conv_init(keys[12], keys[13], 1, 1, filters, cout)
    return p


def prep_unet_params(p, num_encodings):
    """(kh,kw,ci,co) conv weights -> (co, kh*kw*ci_pad) bf16 im2col matrices;
    biases -> (co, 1) f32 columns; 1x1 out conv -> (F, 1) weight column."""
    cpe = 1 + 2 * num_encodings
    cpe_pad = ((cpe + 7) // 8) * 8

    def wmat(w, ci_pad=None):
        kh, kw, ci, co = w.shape
        if ci_pad is not None and ci_pad != ci:
            w = jnp.pad(w, ((0, 0), (0, 0), (0, ci_pad - ci), (0, 0)))
            ci = ci_pad
        w = w.reshape(kh * kw, ci, co)
        return jnp.transpose(w, (2, 0, 1)).reshape(co, kh * kw * ci).astype(jnp.bfloat16)

    def col(b):
        return b.reshape(-1, 1).astype(jnp.float32)

    prep = {
        "we1": wmat(p["enc1_w"], cpe_pad), "be1": col(p["enc1_b"]),
        "we2": wmat(p["enc2_w"]), "be2": col(p["enc2_b"]),
        "wb1": wmat(p["bot1_w"]), "bb1": col(p["bot1_b"]),
        "wb2": wmat(p["bot2_w"]), "bb2": col(p["bot2_b"]),
        # dec1's ci axis is [upsampled(2F), skip(F)]; the kernel stacks [u, e2]
        # per tap in the same order, so the weight is used unsplit.
        "wd1": wmat(p["dec1_w"]), "bd1": col(p["dec1_b"]),
        "wd2": wmat(p["dec2_w"]), "bd2": col(p["dec2_b"]),
        "wo": p["out_w"].reshape(-1, 1).astype(jnp.float32),   # (F, 1)
        "bo": p["out_b"].reshape(1, 1).astype(jnp.float32),    # (1, 1)
    }
    return prep, cpe_pad


# -----------------------------------------------------------------------------
# pallas_call wrapper
# -----------------------------------------------------------------------------
def _pick_vmem_limit():
    """~75% of physical VMEM, capped at 100 MiB: v5e/v6e -> ~96 MiB, v7x -> ~48 MiB."""
    phys = None
    try:
        phys = int(pltpu.get_tpu_info().vmem_capacity_bytes)
    except Exception:
        phys = None
    if not phys or phys <= 0:
        kind = ""
        try:
            kind = jax.devices()[0].device_kind.lower()
        except Exception:
            pass
        phys = 128 * 1024 * 1024 if ("v5" in kind or "v6" in kind) else 64 * 1024 * 1024
    return min(int(phys * 3 // 4), 100 * 1024 * 1024)


_VARIANT_START = [0]   # remembers the first kernel variant that lowered cleanly


def _cascade_call(x_flat, m_flat, prep, consts, H, W, k, L, cpe_pad, vmem_limit):
    """x_flat, m_flat: (N, 1, H*W) f32.  Returns (N, 1, H*W) f32."""
    N = x_flat.shape[0]
    HW = H * W
    freq_col, pmat, umat, mask_full, mask_half = consts

    def run(separable, buffer_once, vlim):
        if separable:
            pool_c, up_c = pmat, umat
        else:
            pool_c, up_c = build_dense_pool_up(H, W)
        const_args = (mask_full, mask_half, pool_c, up_c, freq_col,
                      prep["we1"], prep["be1"], prep["we2"], prep["be2"],
                      prep["wb1"], prep["bb1"], prep["wb2"], prep["bb2"],
                      prep["wd1"], prep["bd1"], prep["wd2"], prep["bd2"],
                      prep["wo"], prep["bo"])

        def cspec(a):
            nd = a.ndim
            idx = lambda n, _nd=nd: (0,) * _nd
            if buffer_once:
                # constant index map -> a single pipeline buffer is enough
                return pl.BlockSpec(a.shape, idx, pipeline_mode=pl.Buffered(1))
            return pl.BlockSpec(a.shape, idx)

        in_specs = ([pl.BlockSpec((1, 1, HW), lambda n: (n, 0, 0)),
                     pl.BlockSpec((1, 1, HW), lambda n: (n, 0, 0))]
                    + [cspec(a) for a in const_args])
        kernel = functools.partial(
            _cascade_unet_kernel, H=H, W=W, KH=k, KW=k, L=L,
            CPE_PAD=cpe_pad, SEPARABLE=separable)
        out = pl.pallas_call(
            kernel,
            out_shape=jax.ShapeDtypeStruct((N, 1, HW), jnp.float32),
            grid=(N,),
            in_specs=in_specs,
            out_specs=pl.BlockSpec((1, 1, HW), lambda n: (n, 0, 0)),
            compiler_params=pltpu.CompilerParams(
                dimension_semantics=("parallel",),
                vmem_limit_bytes=vlim),
        )(x_flat, m_flat, *const_args)
        return jax.block_until_ready(out)

    variants = (
        (True, True, vmem_limit),   # separable pool/up, single-buffered constants
        (True, False, None),        # separable pool/up, default pipelining / vmem
        (False, False, None),       # dense-matrix pool/up (lowering safety net only)
    )
    for vi in range(_VARIANT_START[0], len(variants)):
        try:
            out = run(*variants[vi])
            _VARIANT_START[0] = vi
            return out
        except Exception:
            if vi == len(variants) - 1:
                raise
    raise RuntimeError("unreachable")


def cascade_net_forward(cascade_params, x_t, mask, num_encodings):
    """x_t, mask: [N, 1, H, W] (PyTorch NCHW).  Returns [N, 1, H, W]."""
    N, C, H, W = x_t.shape
    assert C == 1 and H % 2 == 0 and W % 2 == 0
    x_flat = x_t.reshape(N, 1, H * W).astype(jnp.float32)
    m_flat = mask.reshape(N, 1, H * W).astype(jnp.float32)
    vlim = _pick_vmem_limit()
    for p in cascade_params:
        assert p["out_w"].shape[-1] == 1, "cascade output must stay 1-channel"
        k = p["enc1_w"].shape[0]
        prep, cpe_pad = prep_unet_params(p, num_encodings)
        consts = build_constants(H, W, num_encodings, k)
        x_flat = _cascade_call(x_flat, m_flat, prep, consts, H, W, k,
                               num_encodings, cpe_pad, vlim)
    return x_flat.reshape(N, 1, H, W)


# -----------------------------------------------------------------------------
if __name__ == "__main__":
    # Synthetic hyper-parameters ("Params"):
    num_encodings = 4
    out_channels = [1, 1]     # two cascades, each producing a 1-channel image
    filters = [8, 8]
    kernels = [3, 3]

    N, H, W = 2, 16, 16
    cin = 1 + 2 * num_encodings

    key = jax.random.PRNGKey(0)
    k_x, k_m, k_p = jax.random.split(key, 3)
    x_t = jax.random.normal(k_x, (N, 1, H, W), jnp.float32)
    mask = (jax.random.uniform(k_m, (N, 1, H, W)) > 0.5).astype(jnp.float32)

    pkeys = jax.random.split(k_p, len(out_channels))
    cascade_params = [
        init_unet_params(pkeys[i], cin, out_channels[i], filters[i], kernels[i])
        for i in range(len(out_channels))
    ]

    out = cascade_net_forward(cascade_params, x_t, mask, num_encodings)
    out = jax.block_until_ready(out)
    assert out.shape == (N, 1, H, W), out.shape
    assert bool(jnp.all(jnp.isfinite(out)))
    print("KERNEL_OK")
</pallas_src>

<mosaic_0001>
module attributes {stable_mosaic.version = 11 : i64} {
  func.func @_cascade_unet_kernel(%arg0: i32, %arg1: memref<1x1x256xf32, #tpu.memory_space<vmem>>, %arg2: memref<1x1x256xf32, #tpu.memory_space<vmem>>, %arg3: memref<9x256xf32, #tpu.memory_space<vmem>>, %arg4: memref<9x64xf32, #tpu.memory_space<vmem>>, %arg5: memref<32x8xf32, #tpu.memory_space<vmem>>, %arg6: memref<8x32xf32, #tpu.memory_space<vmem>>, %arg7: memref<4x1xf32, #tpu.memory_space<vmem>>, %arg8: memref<8x144xbf16, #tpu.memory_space<vmem>>, %arg9: memref<8x1xf32, #tpu.memory_space<vmem>>, %arg10: memref<8x72xbf16, #tpu.memory_space<vmem>>, %arg11: memref<8x1xf32, #tpu.memory_space<vmem>>, %arg12: memref<16x72xbf16, #tpu.memory_space<vmem>>, %arg13: memref<16x1xf32, #tpu.memory_space<vmem>>, %arg14: memref<16x144xbf16, #tpu.memory_space<vmem>>, %arg15: memref<16x1xf32, #tpu.memory_space<vmem>>, %arg16: memref<8x216xbf16, #tpu.memory_space<vmem>>, %arg17: memref<8x1xf32, #tpu.memory_space<vmem>>, %arg18: memref<8x72xbf16, #tpu.memory_space<vmem>>, %arg19: memref<8x1xf32, #tpu.memory_space<vmem>>, %arg20: memref<8x1xf32, #tpu.memory_space<vmem>>, %arg21: memref<1x1xf32, #tpu.memory_space<vmem>>, %arg22: memref<1x1x256xf32, #tpu.memory_space<vmem>>) attributes {dimension_semantics = [#tpu.dimension_semantics<parallel>], iteration_bounds = array<i64: 2>, scalar_prefetch = 0 : i64, scratch_operands = 0 : i64, tpu.core_type = #tpu.core_type<tc>, window_params = [{transform_indices = @transform_0, window_bounds = array<i64: 1, 1, 256>}, {transform_indices = @transform_1, window_bounds = array<i64: 1, 1, 256>}, {pipeline_mode = #tpu.pipeline_mode<synchronous>, transform_indices = @transform_2, window_bounds = array<i64: 9, 256>}, {pipeline_mode = #tpu.pipeline_mode<synchronous>, transform_indices = @transform_3, window_bounds = array<i64: 9, 64>}, {pipeline_mode = #tpu.pipeline_mode<synchronous>, transform_indices = @transform_4, window_bounds = array<i64: 32, 8>}, {pipeline_mode = #tpu.pipeline_mode<synchronous>, transform_indices = @transform_5, window_bounds = array<i64: 8, 32>}, {pipeline_mode = #tpu.pipeline_mode<synchronous>, transform_indices = @transform_6, window_bounds = array<i64: 4, 1>}, {pipeline_mode = #tpu.pipeline_mode<synchronous>, transform_indices = @transform_7, window_bounds = array<i64: 8, 144>}, {pipeline_mode = #tpu.pipeline_mode<synchronous>, transform_indices = @transform_8, window_bounds = array<i64: 8, 1>}, {pipeline_mode = #tpu.pipeline_mode<synchronous>, transform_indices = @transform_9, window_bounds = array<i64: 8, 72>}, {pipeline_mode = #tpu.pipeline_mode<synchronous>, transform_indices = @transform_10, window_bounds = array<i64: 8, 1>}, {pipeline_mode = #tpu.pipeline_mode<synchronous>, transform_indices = @transform_11, window_bounds = array<i64: 16, 72>}, {pipeline_mode = #tpu.pipeline_mode<synchronous>, transform_indices = @transform_12, window_bounds = array<i64: 16, 1>}, {pipeline_mode = #tpu.pipeline_mode<synchronous>, transform_indices = @transform_13, window_bounds = array<i64: 16, 144>}, {pipeline_mode = #tpu.pipeline_mode<synchronous>, transform_indices = @transform_14, window_bounds = array<i64: 16, 1>}, {pipeline_mode = #tpu.pipeline_mode<synchronous>, transform_indices = @transform_15, window_bounds = array<i64: 8, 216>}, {pipeline_mode = #tpu.pipeline_mode<synchronous>, transform_indices = @transform_16, window_bounds = array<i64: 8, 1>}, {pipeline_mode = #tpu.pipeline_mode<synchronous>, transform_indices = @transform_17, window_bounds = array<i64: 8, 72>}, {pipeline_mode = #tpu.pipeline_mode<synchronous>, transform_indices = @transform_18, window_bounds = array<i64: 8, 1>}, {pipeline_mode = #tpu.pipeline_mode<synchronous>, transform_indices = @transform_19, window_bounds = array<i64: 8, 1>}, {pipeline_mode = #tpu.pipeline_mode<synchronous>, transform_indices = @transform_20, window_bounds = array<i64: 1, 1>}, {transform_indices = @transform_21, window_bounds = array<i64: 1, 1, 256>}]} {
    %c0 = arith.constant 0 : index
    %c0_0 = arith.constant 0 : index
    %0 = vector.load %arg3[%c0, %c0_0] : memref<9x256xf32, #tpu.memory_space<vmem>>, vector<9x256xf32>
    %c0_1 = arith.constant 0 : index
    %c0_2 = arith.constant 0 : index
    %1 = vector.load %arg4[%c0_1, %c0_2] : memref<9x64xf32, #tpu.memory_space<vmem>>, vector<9x64xf32>
    %2 = vector.extract_strided_slice %0 {offsets = [0, 0], sizes = [1, 256], strides = [1, 1]} : vector<9x256xf32> to vector<1x256xf32>
    %3 = vector.extract_strided_slice %0 {offsets = [1, 0], sizes = [1, 256], strides = [1, 1]} : vector<9x256xf32> to vector<1x256xf32>
    %4 = vector.extract_strided_slice %0 {offsets = [2, 0], sizes = [1, 256], strides = [1, 1]} : vector<9x256xf32> to vector<1x256xf32>
    %5 = vector.extract_strided_slice %0 {offsets = [3, 0], sizes = [1, 256], strides = [1, 1]} : vector<9x256xf32> to vector<1x256xf32>
    %6 = vector.extract_strided_slice %0 {offsets = [5, 0], sizes = [1, 256], strides = [1, 1]} : vector<9x256xf32> to vector<1x256xf32>
    %7 = vector.extract_strided_slice %0 {offsets = [6, 0], sizes = [1, 256], strides = [1, 1]} : vector<9x256xf32> to vector<1x256xf32>
    %8 = vector.extract_strided_slice %0 {offsets = [7, 0], sizes = [1, 256], strides = [1, 1]} : vector<9x256xf32> to vector<1x256xf32>
    %9 = vector.extract_strided_slice %0 {offsets = [8, 0], sizes = [1, 256], strides = [1, 1]} : vector<9x256xf32> to vector<1x256xf32>
    %10 = vector.extract_strided_slice %1 {offsets = [0, 0], sizes = [1, 64], strides = [1, 1]} : vector<9x64xf32> to vector<1x64xf32>
    %11 = vector.extract_strided_slice %1 {offsets = [1, 0], sizes = [1, 64], strides = [1, 1]} : vector<9x64xf32> to vector<1x64xf32>
    %12 = vector.extract_strided_slice %1 {offsets = [2, 0], sizes = [1, 64], strides = [1, 1]} : vector<9x64xf32> to vector<1x64xf32>
    %13 = vector.extract_strided_slice %1 {offsets = [3, 0], sizes = [1, 64], strides = [1, 1]} : vector<9x64xf32> to vector<1x64xf32>
    %14 = vector.extract_strided_slice %1 {offsets = [5, 0], sizes = [1, 64], strides = [1, 1]} : vector<9x64xf32> to vector<1x64xf32>
    %15 = vector.extract_strided_slice %1 {offsets = [6, 0], sizes = [1, 64], strides = [1, 1]} : vector<9x64xf32> to vector<1x64xf32>
    %16 = vector.extract_strided_slice %1 {offsets = [7, 0], sizes = [1, 64], strides = [1, 1]} : vector<9x64xf32> to vector<1x64xf32>
    %17 = vector.extract_strided_slice %1 {offsets = [8, 0], sizes = [1, 64], strides = [1, 1]} : vector<9x64xf32> to vector<1x64xf32>
    %c0_3 = arith.constant 0 : index
    %c0_4 = arith.constant 0 : index
    %c0_5 = arith.constant 0 : index
    %18 = vector.load %arg1[%c0_3, %c0_4, %c0_5] : memref<1x1x256xf32, #tpu.memory_space<vmem>>, vector<1x1x256xf32>
    %19 = vector.shape_cast %18 : vector<1x1x256xf32> to vector<1x256xf32>
    %c0_6 = arith.constant 0 : index
    %c0_7 = arith.constant 0 : index
    %20 = vector.load %arg7[%c0_6, %c0_7] : memref<4x1xf32, #tpu.memory_space<vmem>>, vector<4x1xf32>
    %21 = vector.broadcast %20 : vector<4x1xf32> to vector<4x256xf32>
    %22 = vector.broadcast %19 : vector<1x256xf32> to vector<4x256xf32>
    %23 = arith.mulf %21, %22 : vector<4x256xf32>
    %24 = math.sin %23 : vector<4x256xf32>
    %25 = math.cos %23 : vector<4x256xf32>
    %cst = arith.constant 0.000000e+00 : f32
    %26 = vector.broadcast %cst : f32 to vector<7x256xf32>
    %27 = tpu.concatenate %19, %24, %25, %26 in 0 : vector<1x256xf32>, vector<4x256xf32>, vector<4x256xf32>, vector<7x256xf32> -> vector<16x256xf32>
    %c17_i32 = arith.constant 17 : i32
    %28 = tpu.dynamic_rotate %27 by %c17_i32 dim 1 : vector<16x256xf32>, i32 -> vector<16x256xf32>
    %29 = vector.broadcast %2 : vector<1x256xf32> to vector<16x256xf32>
    %30 = arith.mulf %28, %29 : vector<16x256xf32>
    %c16_i32 = arith.constant 16 : i32
    %31 = tpu.dynamic_rotate %27 by %c16_i32 dim 1 : vector<16x256xf32>, i32 -> vector<16x256xf32>
    %32 = vector.broadcast %3 : vector<1x256xf32> to vector<16x256xf32>
    %33 = arith.mulf %31, %32 : vector<16x256xf32>
    %c15_i32 = arith.constant 15 : i32
    %34 = tpu.dynamic_rotate %27 by %c15_i32 dim 1 : vector<16x256xf32>, i32 -> vector<16x256xf32>
    %35 = vector.broadcast %4 : vector<1x256xf32> to vector<16x256xf32>
    %36 = arith.mulf %34, %35 : vector<16x256xf32>
    %c1_i32 = arith.constant 1 : i32
    %37 = tpu.dynamic_rotate %27 by %c1_i32 dim 1 : vector<16x256xf32>, i32 -> vector<16x256xf32>
    %38 = vector.broadcast %5 : vector<1x256xf32> to vector<16x256xf32>
    %39 = arith.mulf %37, %38 : vector<16x256xf32>
    %c255_i32 = arith.constant 255 : i32
    %40 = tpu.dynamic_rotate %27 by %c255_i32 dim 1 : vector<16x256xf32>, i32 -> vector<16x256xf32>
    %41 = vector.broadcast %6 : vector<1x256xf32> to vector<16x256xf32>
    %42 = arith.mulf %40, %41 : vector<16x256xf32>
    %c241_i32 = arith.constant 241 : i32
    %43 = tpu.dynamic_rotate %27 by %c241_i32 dim 1 : vector<16x256xf32>, i32 -> vector<16x256xf32>
    %44 = vector.broadcast %7 : vector<1x256xf32> to vector<16x256xf32>
    %45 = arith.mulf %43, %44 : vector<16x256xf32>
    %c240_i32 = arith.constant 240 : i32
    %46 = tpu.dynamic_rotate %27 by %c240_i32 dim 1 : vector<16x256xf32>, i32 -> vector<16x256xf32>
    %47 = vector.broadcast %8 : vector<1x256xf32> to vector<16x256xf32>
    %48 = arith.mulf %46, %47 : vector<16x256xf32>
    %c239_i32 = arith.constant 239 : i32
    %49 = tpu.dynamic_rotate %27 by %c239_i32 dim 1 : vector<16x256xf32>, i32 -> vector<16x256xf32>
    %50 = vector.broadcast %9 : vector<1x256xf32> to vector<16x256xf32>
    %51 = arith.mulf %49, %50 : vector<16x256xf32>
    %52 = tpu.concatenate %30, %33, %36, %39, %27, %42, %45, %48, %51 in 0 : vector<16x256xf32>, vector<16x256xf32>, vector<16x256xf32>, vector<16x256xf32>, vector<16x256xf32>, vector<16x256xf32>, vector<16x256xf32>, vector<16x256xf32>, vector<16x256xf32> -> vector<144x256xf32>
    %53 = arith.truncf %52 : vector<144x256xf32> to vector<144x256xbf16>
    %c0_8 = arith.constant 0 : index
    %c0_9 = arith.constant 0 : index
    %54 = vector.load %arg8[%c0_8, %c0_9] : memref<8x144xbf16, #tpu.memory_space<vmem>>, vector<8x144xbf16>
    %cst_10 = arith.constant dense<0.000000e+00> : vector<8x256xf32>
    %55 = tpu.matmul %54, %53, %cst_10 {dimension_numbers = #tpu.dot_dimension_numbers<[1], [0], [0], [1], [0, 0, 1, 1], [], []>} : vector<8x144xbf16>, vector<144x256xbf16>, vector<8x256xf32> -> vector<8x256xf32>
    %c0_11 = arith.constant 0 : index
    %c0_12 = arith.constant 0 : index
    %56 = vector.load %arg9[%c0_11, %c0_12] : memref<8x1xf32, #tpu.memory_space<vmem>>, vector<8x1xf32>
    %57 = vector.broadcast %56 : vector<8x1xf32> to vector<8x256xf32>
    %58 = arith.addf %55, %57 : vector<8x256xf32>
    %cst_13 = arith.constant 0.000000e+00 : f32
    %59 = vector.broadcast %cst_13 : f32 to vector<8x256xf32>
    %60 = arith.maximumf %58, %59 : vector<8x256xf32>
    %c17_i32_14 = arith.constant 17 : i32
    %61 = tpu.dynamic_rotate %60 by %c17_i32_14 dim 1 : vector<8x256xf32>, i32 -> vector<8x256xf32>
    %62 = vector.broadcast %2 : vector<1x256xf32> to vector<8x256xf32>
    %63 = arith.mulf %61, %62 : vector<8x256xf32>
    %c16_i32_15 = arith.constant 16 : i32
    %64 = tpu.dynamic_rotate %60 by %c16_i32_15 dim 1 : vector<8x256xf32>, i32 -> vector<8x256xf32>
    %65 = vector.broadcast %3 : vector<1x256xf32> to vector<8x256xf32>
    %66 = arith.mulf %64, %65 : vector<8x256xf32>
    %c15_i32_16 = arith.constant 15 : i32
    %67 = tpu.dynamic_rotate %60 by %c15_i32_16 dim 1 : vector<8x256xf32>, i32 -> vector<8x256xf32>
    %68 = vector.broadcast %4 : vector<1x256xf32> to vector<8x256xf32>
    %69 = arith.mulf %67, %68 : vector<8x256xf32>
    %c1_i32_17 = arith.constant 1 : i32
    %70 = tpu.dynamic_rotate %60 by %c1_i32_17 dim 1 : vector<8x256xf32>, i32 -> vector<8x256xf32>
    %71 = vector.broadcast %5 : vector<1x256xf32> to vector<8x256xf32>
    %72 = arith.mulf %70, %71 : vector<8x256xf32>
    %c255_i32_18 = arith.constant 255 : i32
    %73 = tpu.dynamic_rotate %60 by %c255_i32_18 dim 1 : vector<8x256xf32>, i32 -> vector<8x256xf32>
    %74 = vector.broadcast %6 : vector<1x256xf32> to vector<8x256xf32>
    %75 = arith.mulf %73, %74 : vector<8x256xf32>
    %c241_i32_19 = arith.constant 241 : i32
    %76 = tpu.dynamic_rotate %60 by %c241_i32_19 dim 1 : vector<8x256xf32>, i32 -> vector<8x256xf32>
    %77 = vector.broadcast %7 : vector<1x256xf32> to vector<8x256xf32>
    %78 = arith.mulf %76, %77 : vector<8x256xf32>
    %c240_i32_20 = arith.constant 240 : i32
    %79 = tpu.dynamic_rotate %60 by %c240_i32_20 dim 1 : vector<8x256xf32>, i32 -> vector<8x256xf32>
    %80 = vector.broadcast %8 : vector<1x256xf32> to vector<8x256xf32>
    %81 = arith.mulf %79, %80 : vector<8x256xf32>
    %c239_i32_21 = arith.constant 239 : i32
    %82 = tpu.dynamic_rotate %60 by %c239_i32_21 dim 1 : vector<8x256xf32>, i32 -> vector<8x256xf32>
    %83 = vector.broadcast %9 : vector<1x256xf32> to vector<8x256xf32>
    %84 = arith.mulf %82, %83 : vector<8x256xf32>
    %85 = tpu.concatenate %63, %66, %69, %72, %60, %75, %78, %81, %84 in 0 : vector<8x256xf32>, vector<8x256xf32>, vector<8x256xf32>, vector<8x256xf32>, vector<8x256xf32>, vector<8x256xf32>, vector<8x256xf32>, vector<8x256xf32>, vector<8x256xf32> -> vector<72x256xf32>
    %86 = arith.truncf %85 : vector<72x256xf32> to vector<72x256xbf16>
    %c0_22 = arith.constant 0 : index
    %c0_23 = arith.constant 0 : index
    %87 = vector.load %arg10[%c0_22, %c0_23] : memref<8x72xbf16, #tpu.memory_space<vmem>>, vector<8x72xbf16>
    %cst_24 = arith.constant dense<0.000000e+00> : vector<8x256xf32>
    %88 = tpu.matmul %87, %86, %cst_24 {dimension_numbers = #tpu.dot_dimension_numbers<[1], [0], [0], [1], [0, 0, 1, 1], [], []>} : vector<8x72xbf16>, vector<72x256xbf16>, vector<8x256xf32> -> vector<8x256xf32>
    %c0_25 = arith.constant 0 : index
    %c0_26 = arith.constant 0 : index
    %89 = vector.load %arg11[%c0_25, %c0_26] : memref<8x1xf32, #tpu.memory_space<vmem>>, vector<8x1xf32>
    %90 = vector.broadcast %89 : vector<8x1xf32> to vector<8x256xf32>
    %91 = arith.addf %88, %90 : vector<8x256xf32>
    %cst_27 = arith.constant 0.000000e+00 : f32
    %92 = vector.broadcast %cst_27 : f32 to vector<8x256xf32>
    %93 = arith.maximumf %91, %92 : vector<8x256xf32>
    %94 = vector.shape_cast %93 : vector<8x256xf32> to vector<8x8x32xf32>
    %95 = vector.shape_cast %94 : vector<8x8x32xf32> to vector<64x32xf32>
    %c0_28 = arith.constant 0 : index
    %c0_29 = arith.constant 0 : index
    %96 = vector.load %arg5[%c0_28, %c0_29] : memref<32x8xf32, #tpu.memory_space<vmem>>, vector<32x8xf32>
    %cst_30 = arith.constant dense<0.000000e+00> : vector<64x8xf32>
    %97 = tpu.matmul %95, %96, %cst_30 {dimension_numbers = #tpu.dot_dimension_numbers<[1], [0], [0], [1], [0, 0, 1, 1], [], []>} : vector<64x32xf32>, vector<32x8xf32>, vector<64x8xf32> -> vector<64x8xf32>
    %98 = vector.shape_cast %97 : vector<64x8xf32> to vector<8x8x8xf32>
    %99 = vector.shape_cast %98 : vector<8x8x8xf32> to vector<8x64xf32>
    %c9_i32 = arith.constant 9 : i32
    %100 = tpu.dynamic_rotate %99 by %c9_i32 dim 1 : vector<8x64xf32>, i32 -> vector<8x64xf32>
    %101 = vector.broadcast %10 : vector<1x64xf32> to vector<8x64xf32>
    %102 = arith.mulf %100, %101 : vector<8x64xf32>
    %c8_i32 = arith.constant 8 : i32
    %103 = tpu.dynamic_rotate %99 by %c8_i32 dim 1 : vector<8x64xf32>, i32 -> vector<8x64xf32>
    %104 = vector.broadcast %11 : vector<1x64xf32> to vector<8x64xf32>
    %105 = arith.mulf %103, %104 : vector<8x64xf32>
    %c7_i32 = arith.constant 7 : i32
    %106 = tpu.dynamic_rotate %99 by %c7_i32 dim 1 : vector<8x64xf32>, i32 -> vector<8x64xf32>
    %107 = vector.broadcast %12 : vector<1x64xf32> to vector<8x64xf32>
    %108 = arith.mulf %106, %107 : vector<8x64xf32>
    %c1_i32_31 = arith.constant 1 : i32
    %109 = tpu.dynamic_rotate %99 by %c1_i32_31 dim 1 : vector<8x64xf32>, i32 -> vector<8x64xf32>
    %110 = vector.broadcast %13 : vector<1x64xf32> to vector<8x64xf32>
    %111 = arith.mulf %109, %110 : vector<8x64xf32>
    %c63_i32 = arith.constant 63 : i32
    %112 = tpu.dynamic_rotate %99 by %c63_i32 dim 1 : vector<8x64xf32>, i32 -> vector<8x64xf32>
    %113 = vector.broadcast %14 : vector<1x64xf32> to vector<8x64xf32>
    %114 = arith.mulf %112, %113 : vector<8x64xf32>
    %c57_i32 = arith.constant 57 : i32
    %115 = tpu.dynamic_rotate %99 by %c57_i32 dim 1 : vector<8x64xf32>, i32 -> vector<8x64xf32>
    %116 = vector.broadcast %15 : vector<1x64xf32> to vector<8x64xf32>
    %117 = arith.mulf %115, %116 : vector<8x64xf32>
    %c56_i32 = arith.constant 56 : i32
    %118 = tpu.dynamic_rotate %99 by %c56_i32 dim 1 : vector<8x64xf32>, i32 -> vector<8x64xf32>
    %119 = vector.broadcast %16 : vector<1x64xf32> to vector<8x64xf32>
    %120 = arith.mulf %118, %119 : vector<8x64xf32>
    %c55_i32 = arith.constant 55 : i32
    %121 = tpu.dynamic_rotate %99 by %c55_i32 dim 1 : vector<8x64xf32>, i32 -> vector<8x64xf32>
    %122 = vector.broadcast %17 : vector<1x64xf32> to vector<8x64xf32>
    %123 = arith.mulf %121, %122 : vector<8x64xf32>
    %124 = tpu.concatenate %102, %105, %108, %111, %99, %114, %117, %120, %123 in 0 : vector<8x64xf32>, vector<8x64xf32>, vector<8x64xf32>, vector<8x64xf32>, vector<8x64xf32>, vector<8x64xf32>, vector<8x64xf32>, vector<8x64xf32>, vector<8x64xf32> -> vector<72x64xf32>
    %125 = arith.truncf %124 : vector<72x64xf32> to vector<72x64xbf16>
    %c0_32 = arith.constant 0 : index
    %c0_33 = arith.constant 0 : index
    %126 = vector.load %arg12[%c0_32, %c0_33] : memref<16x72xbf16, #tpu.memory_space<vmem>>, vector<16x72xbf16>
    %cst_34 = arith.constant dense<0.000000e+00> : vector<16x64xf32>
    %127 = tpu.matmul %126, %125, %cst_34 {dimension_numbers = #tpu.dot_dimension_numbers<[1], [0], [0], [1], [0, 0, 1, 1], [], []>} : vector<16x72xbf16>, vector<72x64xbf16>, vector<16x64xf32> -> vector<16x64xf32>
    %c0_35 = arith.constant 0 : index
    %c0_36 = arith.constant 0 : index
    %128 = vector.load %arg13[%c0_35, %c0_36] : memref<16x1xf32, #tpu.memory_space<vmem>>, vector<16x1xf32>
    %129 = vector.broadcast %128 : vector<16x1xf32> to vector<16x64xf32>
    %130 = arith.addf %127, %129 : vector<16x64xf32>
    %cst_37 = arith.constant 0.000000e+00 : f32
    %131 = vector.broadcast %cst_37 : f32 to vector<16x64xf32>
    %132 = arith.maximumf %130, %131 : vector<16x64xf32>
    %c9_i32_38 = arith.constant 9 : i32
    %133 = tpu.dynamic_rotate %132 by %c9_i32_38 dim 1 : vector<16x64xf32>, i32 -> vector<16x64xf32>
    %134 = vector.broadcast %10 : vector<1x64xf32> to vector<16x64xf32>
    %135 = arith.mulf %133, %134 : vector<16x64xf32>
    %c8_i32_39 = arith.constant 8 : i32
    %136 = tpu.dynamic_rotate %132 by %c8_i32_39 dim 1 : vector<16x64xf32>, i32 -> vector<16x64xf32>
    %137 = vector.broadcast %11 : vector<1x64xf32> to vector<16x64xf32>
    %138 = arith.mulf %136, %137 : vector<16x64xf32>
    %c7_i32_40 = arith.constant 7 : i32
    %139 = tpu.dynamic_rotate %132 by %c7_i32_40 dim 1 : vector<16x64xf32>, i32 -> vector<16x64xf32>
    %140 = vector.broadcast %12 : vector<1x64xf32> to vector<16x64xf32>
    %141 = arith.mulf %139, %140 : vector<16x64xf32>
    %c1_i32_41 = arith.constant 1 : i32
    %142 = tpu.dynamic_rotate %132 by %c1_i32_41 dim 1 : vector<16x64xf32>, i32 -> vector<16x64xf32>
    %143 = vector.broadcast %13 : vector<1x64xf32> to vector<16x64xf32>
    %144 = arith.mulf %142, %143 : vector<16x64xf32>
    %c63_i32_42 = arith.constant 63 : i32
    %145 = tpu.dynamic_rotate %132 by %c63_i32_42 dim 1 : vector<16x64xf32>, i32 -> vector<16x64xf32>
    %146 = vector.broadcast %14 : vector<1x64xf32> to vector<16x64xf32>
    %147 = arith.mulf %145, %146 : vector<16x64xf32>
    %c57_i32_43 = arith.constant 57 : i32
    %148 = tpu.dynamic_rotate %132 by %c57_i32_43 dim 1 : vector<16x64xf32>, i32 -> vector<16x64xf32>
    %149 = vector.broadcast %15 : vector<1x64xf32> to vector<16x64xf32>
    %150 = arith.mulf %148, %149 : vector<16x64xf32>
    %c56_i32_44 = arith.constant 56 : i32
    %151 = tpu.dynamic_rotate %132 by %c56_i32_44 dim 1 : vector<16x64xf32>, i32 -> vector<16x64xf32>
    %152 = vector.broadcast %16 : vector<1x64xf32> to vector<16x64xf32>
    %153 = arith.mulf %151, %152 : vector<16x64xf32>
    %c55_i32_45 = arith.constant 55 : i32
    %154 = tpu.dynamic_rotate %132 by %c55_i32_45 dim 1 : vector<16x64xf32>, i32 -> vector<16x64xf32>
    %155 = vector.broadcast %17 : vector<1x64xf32> to vector<16x64xf32>
    %156 = arith.mulf %154, %155 : vector<16x64xf32>
    %157 = tpu.concatenate %135, %138, %141, %144, %132, %147, %150, %153, %156 in 0 : vector<16x64xf32>, vector<16x64xf32>, vector<16x64xf32>, vector<16x64xf32>, vector<16x64xf32>, vector<16x64xf32>, vector<16x64xf32>, vector<16x64xf32>, vector<16x64xf32> -> vector<144x64xf32>
    %158 = arith.truncf %157 : vector<144x64xf32> to vector<144x64xbf16>
    %c0_46 = arith.constant 0 : index
    %c0_47 = arith.constant 0 : index
    %159 = vector.load %arg14[%c0_46, %c0_47] : memref<16x144xbf16, #tpu.memory_space<vmem>>, vector<16x144xbf16>
    %cst_48 = arith.constant dense<0.000000e+00> : vector<16x64xf32>
    %160 = tpu.matmul %159, %158, %cst_48 {dimension_numbers = #tpu.dot_dimension_numbers<[1], [0], [0], [1], [0, 0, 1, 1], [], []>} : vector<16x144xbf16>, vector<144x64xbf16>, vector<16x64xf32> -> vector<16x64xf32>
    %c0_49 = arith.constant 0 : index
    %c0_50 = arith.constant 0 : index
    %161 = vector.load %arg15[%c0_49, %c0_50] : memref<16x1xf32, #tpu.memory_space<vmem>>, vector<16x1xf32>
    %162 = vector.broadcast %161 : vector<16x1xf32> to vector<16x64xf32>
    %163 = arith.addf %160, %162 : vector<16x64xf32>
    %cst_51 = arith.constant 0.000000e+00 : f32
    %164 = vector.broadcast %cst_51 : f32 to vector<16x64xf32>
    %165 = arith.maximumf %163, %164 : vector<16x64xf32>
    %166 = vector.shape_cast %165 : vector<16x64xf32> to vector<16x8x8xf32>
    %167 = vector.shape_cast %166 : vector<16x8x8xf32> to vector<128x8xf32>
    %c0_52 = arith.constant 0 : index
    %c0_53 = arith.constant 0 : index
    %168 = vector.load %arg6[%c0_52, %c0_53] : memref<8x32xf32, #tpu.memory_space<vmem>>, vector<8x32xf32>
    %cst_54 = arith.constant dense<0.000000e+00> : vector<128x32xf32>
    %169 = tpu.matmul %167, %168, %cst_54 {dimension_numbers = #tpu.dot_dimension_numbers<[1], [0], [0], [1], [0, 0, 1, 1], [], []>} : vector<128x8xf32>, vector<8x32xf32>, vector<128x32xf32> -> vector<128x32xf32>
    %170 = vector.shape_cast %169 : vector<128x32xf32> to vector<16x8x32xf32>
    %171 = vector.shape_cast %170 : vector<16x8x32xf32> to vector<16x256xf32>
    %c17_i32_55 = arith.constant 17 : i32
    %172 = tpu.dynamic_rotate %171 by %c17_i32_55 dim 1 : vector<16x256xf32>, i32 -> vector<16x256xf32>
    %173 = vector.broadcast %2 : vector<1x256xf32> to vector<16x256xf32>
    %174 = arith.mulf %172, %173 : vector<16x256xf32>
    %c17_i32_56 = arith.constant 17 : i32
    %175 = tpu.dynamic_rotate %93 by %c17_i32_56 dim 1 : vector<8x256xf32>, i32 -> vector<8x256xf32>
    %176 = vector.broadcast %2 : vector<1x256xf32> to vector<8x256xf32>
    %177 = arith.mulf %175, %176 : vector<8x256xf32>
    %c16_i32_57 = arith.constant 16 : i32
    %178 = tpu.dynamic_rotate %171 by %c16_i32_57 dim 1 : vector<16x256xf32>, i32 -> vector<16x256xf32>
    %179 = vector.broadcast %3 : vector<1x256xf32> to vector<16x256xf32>
    %180 = arith.mulf %178, %179 : vector<16x256xf32>
    %c16_i32_58 = arith.constant 16 : i32
    %181 = tpu.dynamic_rotate %93 by %c16_i32_58 dim 1 : vector<8x256xf32>, i32 -> vector<8x256xf32>
    %182 = vector.broadcast %3 : vector<1x256xf32> to vector<8x256xf32>
    %183 = arith.mulf %181, %182 : vector<8x256xf32>
    %c15_i32_59 = arith.constant 15 : i32
    %184 = tpu.dynamic_rotate %171 by %c15_i32_59 dim 1 : vector<16x256xf32>, i32 -> vector<16x256xf32>
    %185 = vector.broadcast %4 : vector<1x256xf32> to vector<16x256xf32>
    %186 = arith.mulf %184, %185 : vector<16x256xf32>
    %c15_i32_60 = arith.constant 15 : i32
    %187 = tpu.dynamic_rotate %93 by %c15_i32_60 dim 1 : vector<8x256xf32>, i32 -> vector<8x256xf32>
    %188 = vector.broadcast %4 : vector<1x256xf32> to vector<8x256xf32>
    %189 = arith.mulf %187, %188 : vector<8x256xf32>
    %c1_i32_61 = arith.constant 1 : i32
    %190 = tpu.dynamic_rotate %171 by %c1_i32_61 dim 1 : vector<16x256xf32>, i32 -> vector<16x256xf32>
    %191 = vector.broadcast %5 : vector<1x256xf32> to vector<16x256xf32>
    %192 = arith.mulf %190, %191 : vector<16x256xf32>
    %c1_i32_62 = arith.constant 1 : i32
    %193 = tpu.dynamic_rotate %93 by %c1_i32_62 dim 1 : vector<8x256xf32>, i32 -> vector<8x256xf32>
    %194 = vector.broadcast %5 : vector<1x256xf32> to vector<8x256xf32>
    %195 = arith.mulf %193, %194 : vector<8x256xf32>
    %c255_i32_63 = arith.constant 255 : i32
    %196 = tpu.dynamic_rotate %171 by %c255_i32_63 dim 1 : vector<16x256xf32>, i32 -> vector<16x256xf32>
    %197 = vector.broadcast %6 : vector<1x256xf32> to vector<16x256xf32>
    %198 = arith.mulf %196, %197 : vector<16x256xf32>
    %c255_i32_64 = arith.constant 255 : i32
    %199 = tpu.dynamic_rotate %93 by %c255_i32_64 dim 1 : vector<8x256xf32>, i32 -> vector<8x256xf32>
    %200 = vector.broadcast %6 : vector<1x256xf32> to vector<8x256xf32>
    %201 = arith.mulf %199, %200 : vector<8x256xf32>
    %c241_i32_65 = arith.constant 241 : i32
    %202 = tpu.dynamic_rotate %171 by %c241_i32_65 dim 1 : vector<16x256xf32>, i32 -> vector<16x256xf32>
    %203 = vector.broadcast %7 : vector<1x256xf32> to vector<16x256xf32>
    %204 = arith.mulf %202, %203 : vector<16x256xf32>
    %c241_i32_66 = arith.constant 241 : i32
    %205 = tpu.dynamic_rotate %93 by %c241_i32_66 dim 1 : vector<8x256xf32>, i32 -> vector<8x256xf32>
    %206 = vector.broadcast %7 : vector<1x256xf32> to vector<8x256xf32>
    %207 = arith.mulf %205, %206 : vector<8x256xf32>
    %c240_i32_67 = arith.constant 240 : i32
    %208 = tpu.dynamic_rotate %171 by %c240_i32_67 dim 1 : vector<16x256xf32>, i32 -> vector<16x256xf32>
    %209 = vector.broadcast %8 : vector<1x256xf32> to vector<16x256xf32>
    %210 = arith.mulf %208, %209 : vector<16x256xf32>
    %c240_i32_68 = arith.constant 240 : i32
    %211 = tpu.dynamic_rotate %93 by %c240_i32_68 dim 1 : vector<8x256xf32>, i32 -> vector<8x256xf32>
    %212 = vector.broadcast %8 : vector<1x256xf32> to vector<8x256xf32>
    %213 = arith.mulf %211, %212 : vector<8x256xf32>
    %c239_i32_69 = arith.constant 239 : i32
    %214 = tpu.dynamic_rotate %171 by %c239_i32_69 dim 1 : vector<16x256xf32>, i32 -> vector<16x256xf32>
    %215 = vector.broadcast %9 : vector<1x256xf32> to vector<16x256xf32>
    %216 = arith.mulf %214, %215 : vector<16x256xf32>
    %c239_i32_70 = arith.constant 239 : i32
    %217 = tpu.dynamic_rotate %93 by %c239_i32_70 dim 1 : vector<8x256xf32>, i32 -> vector<8x256xf32>
    %218 = vector.broadcast %9 : vector<1x256xf32> to vector<8x256xf32>
    %219 = arith.mulf %217, %218 : vector<8x256xf32>
    %220 = tpu.concatenate %174, %177, %180, %183, %186, %189, %192, %195, %171, %93, %198, %201, %204, %207, %210, %213 in 0 : vector<16x256xf32>, vector<8x256xf32>, vector<16x256xf32>, vector<8x256xf32>, vector<16x256xf32>, vector<8x256xf32>, vector<16x256xf32>, vector<8x256xf32>, vector<16x256xf32>, vector<8x256xf32>, vector<16x256xf32>, vector<8x256xf32>, vector<16x256xf32>, vector<8x256xf32>, vector<16x256xf32>, vector<8x256xf32> -> vector<192x256xf32>
    %221 = tpu.concatenate %216, %219 in 0 : vector<16x256xf32>, vector<8x256xf32> -> vector<24x256xf32>
    %222 = tpu.concatenate %220, %221 in 0 : vector<192x256xf32>, vector<24x256xf32> -> vector<216x256xf32>
    %223 = arith.truncf %222 : vector<216x256xf32> to vector<216x256xbf16>
    %c0_71 = arith.constant 0 : index
    %c0_72 = arith.constant 0 : index
    %224 = vector.load %arg16[%c0_71, %c0_72] : memref<8x216xbf16, #tpu.memory_space<vmem>>, vector<8x216xbf16>
    %cst_73 = arith.constant dense<0.000000e+00> : vector<8x256xf32>
    %225 = tpu.matmul %224, %223, %cst_73 {dimension_numbers = #tpu.dot_dimension_numbers<[1], [0], [0], [1], [0, 0, 1, 1], [], []>} : vector<8x216xbf16>, vector<216x256xbf16>, vector<8x256xf32> -> vector<8x256xf32>
    %c0_74 = arith.constant 0 : index
    %c0_75 = arith.constant 0 : index
    %226 = vector.load %arg17[%c0_74, %c0_75] : memref<8x1xf32, #tpu.memory_space<vmem>>, vector<8x1xf32>
    %227 = vector.broadcast %226 : vector<8x1xf32> to vector<8x256xf32>
    %228 = arith.addf %225, %227 : vector<8x256xf32>
    %cst_76 = arith.constant 0.000000e+00 : f32
    %229 = vector.broadcast %cst_76 : f32 to vector<8x256xf32>
    %230 = arith.maximumf %228, %229 : vector<8x256xf32>
    %c17_i32_77 = arith.constant 17 : i32
    %231 = tpu.dynamic_rotate %230 by %c17_i32_77 dim 1 : vector<8x256xf32>, i32 -> vector<8x256xf32>
    %232 = vector.broadcast %2 : vector<1x256xf32> to vector<8x256xf32>
    %233 = arith.mulf %231, %232 : vector<8x256xf32>
    %c16_i32_78 = arith.constant 16 : i32
    %234 = tpu.dynamic_rotate %230 by %c16_i32_78 dim 1 : vector<8x256xf32>, i32 -> vector<8x256xf32>
    %235 = vector.broadcast %3 : vector<1x256xf32> to vector<8x256xf32>
    %236 = arith.mulf %234, %235 : vector<8x256xf32>
    %c15_i32_79 = arith.constant 15 : i32
    %237 = tpu.dynamic_rotate %230 by %c15_i32_79 dim 1 : vector<8x256xf32>, i32 -> vector<8x256xf32>
    %238 = vector.broadcast %4 : vector<1x256xf32> to vector<8x256xf32>
    %239 = arith.mulf %237, %238 : vector<8x256xf32>
    %c1_i32_80 = arith.constant 1 : i32
    %240 = tpu.dynamic_rotate %230 by %c1_i32_80 dim 1 : vector<8x256xf32>, i32 -> vector<8x256xf32>
    %241 = vector.broadcast %5 : vector<1x256xf32> to vector<8x256xf32>
    %242 = arith.mulf %240, %241 : vector<8x256xf32>
    %c255_i32_81 = arith.constant 255 : i32
    %243 = tpu.dynamic_rotate %230 by %c255_i32_81 dim 1 : vector<8x256xf32>, i32 -> vector<8x256xf32>
    %244 = vector.broadcast %6 : vector<1x256xf32> to vector<8x256xf32>
    %245 = arith.mulf %243, %244 : vector<8x256xf32>
    %c241_i32_82 = arith.constant 241 : i32
    %246 = tpu.dynamic_rotate %230 by %c241_i32_82 dim 1 : vector<8x256xf32>, i32 -> vector<8x256xf32>
    %247 = vector.broadcast %7 : vector<1x256xf32> to vector<8x256xf32>
    %248 = arith.mulf %246, %247 : vector<8x256xf32>
    %c240_i32_83 = arith.constant 240 : i32
    %249 = tpu.dynamic_rotate %230 by %c240_i32_83 dim 1 : vector<8x256xf32>, i32 -> vector<8x256xf32>
    %250 = vector.broadcast %8 : vector<1x256xf32> to vector<8x256xf32>
    %251 = arith.mulf %249, %250 : vector<8x256xf32>
    %c239_i32_84 = arith.constant 239 : i32
    %252 = tpu.dynamic_rotate %230 by %c239_i32_84 dim 1 : vector<8x256xf32>, i32 -> vector<8x256xf32>
    %253 = vector.broadcast %9 : vector<1x256xf32> to vector<8x256xf32>
    %254 = arith.mulf %252, %253 : vector<8x256xf32>
    %255 = tpu.concatenate %233, %236, %239, %242, %230, %245, %248, %251, %254 in 0 : vector<8x256xf32>, vector<8x256xf32>, vector<8x256xf32>, vector<8x256xf32>, vector<8x256xf32>, vector<8x256xf32>, vector<8x256xf32>, vector<8x256xf32>, vector<8x256xf32> -> vector<72x256xf32>
    %256 = arith.truncf %255 : vector<72x256xf32> to vector<72x256xbf16>
    %c0_85 = arith.constant 0 : index
    %c0_86 = arith.constant 0 : index
    %257 = vector.load %arg18[%c0_85, %c0_86] : memref<8x72xbf16, #tpu.memory_space<vmem>>, vector<8x72xbf16>
    %cst_87 = arith.constant dense<0.000000e+00> : vector<8x256xf32>
    %258 = tpu.matmul %257, %256, %cst_87 {dimension_numbers = #tpu.dot_dimension_numbers<[1], [0], [0], [1], [0, 0, 1, 1], [], []>} : vector<8x72xbf16>, vector<72x256xbf16>, vector<8x256xf32> -> vector<8x256xf32>
    %c0_88 = arith.constant 0 : index
    %c0_89 = arith.constant 0 : index
    %259 = vector.load %arg19[%c0_88, %c0_89] : memref<8x1xf32, #tpu.memory_space<vmem>>, vector<8x1xf32>
    %260 = vector.broadcast %259 : vector<8x1xf32> to vector<8x256xf32>
    %261 = arith.addf %258, %260 : vector<8x256xf32>
    %cst_90 = arith.constant 0.000000e+00 : f32
    %262 = vector.broadcast %cst_90 : f32 to vector<8x256xf32>
    %263 = arith.maximumf %261, %262 : vector<8x256xf32>
    %c0_91 = arith.constant 0 : index
    %c0_92 = arith.constant 0 : index
    %264 = vector.load %arg20[%c0_91, %c0_92] : memref<8x1xf32, #tpu.memory_space<vmem>>, vector<8x1xf32>
    %265 = vector.broadcast %264 : vector<8x1xf32> to vector<8x256xf32>
    %266 = arith.mulf %263, %265 : vector<8x256xf32>
    %cst_93 = arith.constant dense<0.000000e+00> : vector<256xf32>
    %267 = vector.multi_reduction <add>, %266, %cst_93 [0] : vector<8x256xf32> to vector<256xf32>
    %268 = vector.shape_cast %267 : vector<256xf32> to vector<1x256xf32>
    %c0_94 = arith.constant 0 : index
    %c0_95 = arith.constant 0 : index
    %269 = vector.load %arg21[%c0_94, %c0_95] : memref<1x1xf32, #tpu.memory_space<vmem>>, vector<1x1xf32>
    %270 = vector.broadcast %269 : vector<1x1xf32> to vector<1x256xf32>
    %271 = arith.addf %268, %270 : vector<1x256xf32>
    %c0_96 = arith.constant 0 : index
    %c0_97 = arith.constant 0 : index
    %c0_98 = arith.constant 0 : index
    %272 = vector.load %arg2[%c0_96, %c0_97, %c0_98] : memref<1x1x256xf32, #tpu.memory_space<vmem>>, vector<1x1x256xf32>
    %273 = vector.shape_cast %272 : vector<1x1x256xf32> to vector<1x256xf32>
    %274 = arith.mulf %273, %19 : vector<1x256xf32>
    %cst_99 = arith.constant 1.000000e+00 : f32
    %275 = vector.broadcast %cst_99 : f32 to vector<1x256xf32>
    %276 = arith.subf %275, %273 : vector<1x256xf32>
    %277 = arith.mulf %276, %271 : vector<1x256xf32>
    %278 = arith.addf %274, %277 : vector<1x256xf32>
    %c0_100 = arith.constant 0 : index
    %c0_101 = arith.constant 0 : index
    %c0_102 = arith.constant 0 : index
    %279 = vector.load %arg22[%c0_100, %c0_101, %c0_102] : memref<1x1x256xf32, #tpu.memory_space<vmem>>, vector<1x1x256xf32>
    %280 = vector.shape_cast %279 : vector<1x1x256xf32> to vector<1x256xf32>
    %281 = vector.shape_cast %278 : vector<1x256xf32> to vector<1x1x256xf32>
    tpu.vector_store %arg22[%c0_100, %c0_101, %c0_102], %281 {strides = array<i32>} : memref<1x1x256xf32, #tpu.memory_space<vmem>>, vector<1x1x256xf32>,
    return
  }
  func.func @transform_0(%arg0: i32) -> (i32, i32, i32) {
    %c0_i32 = arith.constant 0 : i32
    %c0_i32_0 = arith.constant 0 : i32
    %c0_i32_1 = arith.constant 0 : i32
    return %arg0, %c0_i32, %c0_i32_0 : i32, i32, i32
  }
  func.func @transform_1(%arg0: i32) -> (i32, i32, i32) {
    %c0_i32 = arith.constant 0 : i32
    %c0_i32_0 = arith.constant 0 : i32
    %c0_i32_1 = arith.constant 0 : i32
    return %arg0, %c0_i32, %c0_i32_0 : i32, i32, i32
  }
  func.func @transform_2(%arg0: i32) -> (i32, i32) {
    %c0_i32 = arith.constant 0 : i32
    %c0_i32_0 = arith.constant 0 : i32
    %c0_i32_1 = arith.constant 0 : i32
    return %c0_i32, %c0_i32_0 : i32, i32
  }
  func.func @transform_3(%arg0: i32) -> (i32, i32) {
    %c0_i32 = arith.constant 0 : i32
    %c0_i32_0 = arith.constant 0 : i32
    %c0_i32_1 = arith.constant 0 : i32
    return %c0_i32, %c0_i32_0 : i32, i32
  }
  func.func @transform_4(%arg0: i32) -> (i32, i32) {
    %c0_i32 = arith.constant 0 : i32
    %c0_i32_0 = arith.constant 0 : i32
    %c0_i32_1 = arith.constant 0 : i32
    return %c0_i32, %c0_i32_0 : i32, i32
  }
  func.func @transform_5(%arg0: i32) -> (i32, i32) {
    %c0_i32 = arith.constant 0 : i32
    %c0_i32_0 = arith.constant 0 : i32
    %c0_i32_1 = arith.constant 0 : i32
    return %c0_i32, %c0_i32_0 : i32, i32
  }
  func.func @transform_6(%arg0: i32) -> (i32, i32) {
    %c0_i32 = arith.constant 0 : i32
    %c0_i32_0 = arith.constant 0 : i32
    %c0_i32_1 = arith.constant 0 : i32
    return %c0_i32, %c0_i32_0 : i32, i32
  }
  func.func @transform_7(%arg0: i32) -> (i32, i32) {
    %c0_i32 = arith.constant 0 : i32
    %c0_i32_0 = arith.constant 0 : i32
    %c0_i32_1 = arith.constant 0 : i32
    return %c0_i32, %c0_i32_0 : i32, i32
  }
  func.func @transform_8(%arg0: i32) -> (i32, i32) {
    %c0_i32 = arith.constant 0 : i32
    %c0_i32_0 = arith.constant 0 : i32
    %c0_i32_1 = arith.constant 0 : i32
    return %c0_i32, %c0_i32_0 : i32, i32
  }
  func.func @transform_9(%arg0: i32) -> (i32, i32) {
    %c0_i32 = arith.constant 0 : i32
    %c0_i32_0 = arith.constant 0 : i32
    %c0_i32_1 = arith.constant 0 : i32
    return %c0_i32, %c0_i32_0 : i32, i32
  }
  func.func @transform_10(%arg0: i32) -> (i32, i32) {
    %c0_i32 = arith.constant 0 : i32
    %c0_i32_0 = arith.constant 0 : i32
    %c0_i32_1 = arith.constant 0 : i32
    return %c0_i32, %c0_i32_0 : i32, i32
  }
  func.func @transform_11(%arg0: i32) -> (i32, i32) {
    %c0_i32 = arith.constant 0 : i32
    %c0_i32_0 = arith.constant 0 : i32
    %c0_i32_1 = arith.constant 0 : i32
    return %c0_i32, %c0_i32_0 : i32, i32
  }
  func.func @transform_12(%arg0: i32) -> (i32, i32) {
    %c0_i32 = arith.constant 0 : i32
    %c0_i32_0 = arith.constant 0 : i32
    %c0_i32_1 = arith.constant 0 : i32
    return %c0_i32, %c0_i32_0 : i32, i32
  }
  func.func @transform_13(%arg0: i32) -> (i32, i32) {
    %c0_i32 = arith.constant 0 : i32
    %c0_i32_0 = arith.constant 0 : i32
    %c0_i32_1 = arith.constant 0 : i32
    return %c0_i32, %c0_i32_0 : i32, i32
  }
  func.func @transform_14(%arg0: i32) -> (i32, i32) {
    %c0_i32 = arith.constant 0 : i32
    %c0_i32_0 = arith.constant 0 : i32
    %c0_i32_1 = arith.constant 0 : i32
    return %c0_i32, %c0_i32_0 : i32, i32
  }
  func.func @transform_15(%arg0: i32) -> (i32, i32) {
    %c0_i32 = arith.constant 0 : i32
    %c0_i32_0 = arith.constant 0 : i32
    %c0_i32_1 = arith.constant 0 : i32
    return %c0_i32, %c0_i32_0 : i32, i32
  }
  func.func @transform_16(%arg0: i32) -> (i32, i32) {
    %c0_i32 = arith.constant 0 : i32
    %c0_i32_0 = arith.constant 0 : i32
    %c0_i32_1 = arith.constant 0 : i32
    return %c0_i32, %c0_i32_0 : i32, i32
  }
  func.func @transform_17(%arg0: i32) -> (i32, i32) {
    %c0_i32 = arith.constant 0 : i32
    %c0_i32_0 = arith.constant 0 : i32
    %c0_i32_1 = arith.constant 0 : i32
    return %c0_i32, %c0_i32_0 : i32, i32
  }
  func.func @transform_18(%arg0: i32) -> (i32, i32) {
    %c0_i32 = arith.constant 0 : i32
    %c0_i32_0 = arith.constant 0 : i32
    %c0_i32_1 = arith.constant 0 : i32
    return %c0_i32, %c0_i32_0 : i32, i32
  }
  func.func @transform_19(%arg0: i32) -> (i32, i32) {
    %c0_i32 = arith.constant 0 : i32
    %c0_i32_0 = arith.constant 0 : i32
    %c0_i32_1 = arith.constant 0 : i32
    return %c0_i32, %c0_i32_0 : i32, i32
  }
  func.func @transform_20(%arg0: i32) -> (i32, i32) {
    %c0_i32 = arith.constant 0 : i32
    %c0_i32_0 = arith.constant 0 : i32
    %c0_i32_1 = arith.constant 0 : i32
    return %c0_i32, %c0_i32_0 : i32, i32
  }
  func.func @transform_21(%arg0: i32) -> (i32, i32, i32) {
    %c0_i32 = arith.constant 0 : i32
    %c0_i32_0 = arith.constant 0 : i32
    %c0_i32_1 = arith.constant 0 : i32
    return %arg0, %c0_i32, %c0_i32_0 : i32, i32, i32
  }
}

module attributes {stable_mosaic.version = 11 : i64} {
  func.func @_cascade_unet_kernel(%arg0: i32, %arg1: memref<1x1x256xf32, #tpu.memory_space<vmem>>, %arg2: memref<1x1x256xf32, #tpu.memory_space<vmem>>, %arg3: memref<9x256xf32, #tpu.memory_space<vmem>>, %arg4: memref<9x64xf32, #tpu.memory_space<vmem>>, %arg5: memref<32x8xf32, #tpu.memory_space<vmem>>, %arg6: memref<8x32xf32, #tpu.memory_space<vmem>>, %arg7: memref<4x1xf32, #tpu.memory_space<vmem>>, %arg8: memref<8x144xbf16, #tpu.memory_space<vmem>>, %arg9: memref<8x1xf32, #tpu.memory_space<vmem>>, %arg10: memref<8x72xbf16, #tpu.memory_space<vmem>>, %arg11: memref<8x1xf32, #tpu.memory_space<vmem>>, %arg12: memref<16x72xbf16, #tpu.memory_space<vmem>>, %arg13: memref<16x1xf32, #tpu.memory_space<vmem>>, %arg14: memref<16x144xbf16, #tpu.memory_space<vmem>>, %arg15: memref<16x1xf32, #tpu.memory_space<vmem>>, %arg16: memref<8x216xbf16, #tpu.memory_space<vmem>>, %arg17: memref<8x1xf32, #tpu.memory_space<vmem>>, %arg18: memref<8x72xbf16, #tpu.memory_space<vmem>>, %arg19: memref<8x1xf32, #tpu.memory_space<vmem>>, %arg20: memref<8x1xf32, #tpu.memory_space<vmem>>, %arg21: memref<1x1xf32, #tpu.memory_space<vmem>>, %arg22: memref<1x1x256xf32, #tpu.memory_space<vmem>>) attributes {dimension_semantics = [#tpu.dimension_semantics<parallel>], iteration_bounds = array<i64: 2>, scalar_prefetch = 0 : i64, scratch_operands = 0 : i64, tpu.core_type = #tpu.core_type<tc>, window_params = [{transform_indices = @transform_0, window_bounds = array<i64: 1, 1, 256>}, {transform_indices = @transform_1, window_bounds = array<i64: 1, 1, 256>}, {pipeline_mode = #tpu.pipeline_mode<synchronous>, transform_indices = @transform_2, window_bounds = array<i64: 9, 256>}, {pipeline_mode = #tpu.pipeline_mode<synchronous>, transform_indices = @transform_3, window_bounds = array<i64: 9, 64>}, {pipeline_mode = #tpu.pipeline_mode<synchronous>, transform_indices = @transform_4, window_bounds = array<i64: 32, 8>}, {pipeline_mode = #tpu.pipeline_mode<synchronous>, transform_indices = @transform_5, window_bounds = array<i64: 8, 32>}, {pipeline_mode = #tpu.pipeline_mode<synchronous>, transform_indices = @transform_6, window_bounds = array<i64: 4, 1>}, {pipeline_mode = #tpu.pipeline_mode<synchronous>, transform_indices = @transform_7, window_bounds = array<i64: 8, 144>}, {pipeline_mode = #tpu.pipeline_mode<synchronous>, transform_indices = @transform_8, window_bounds = array<i64: 8, 1>}, {pipeline_mode = #tpu.pipeline_mode<synchronous>, transform_indices = @transform_9, window_bounds = array<i64: 8, 72>}, {pipeline_mode = #tpu.pipeline_mode<synchronous>, transform_indices = @transform_10, window_bounds = array<i64: 8, 1>}, {pipeline_mode = #tpu.pipeline_mode<synchronous>, transform_indices = @transform_11, window_bounds = array<i64: 16, 72>}, {pipeline_mode = #tpu.pipeline_mode<synchronous>, transform_indices = @transform_12, window_bounds = array<i64: 16, 1>}, {pipeline_mode = #tpu.pipeline_mode<synchronous>, transform_indices = @transform_13, window_bounds = array<i64: 16, 144>}, {pipeline_mode = #tpu.pipeline_mode<synchronous>, transform_indices = @transform_14, window_bounds = array<i64: 16, 1>}, {pipeline_mode = #tpu.pipeline_mode<synchronous>, transform_indices = @transform_15, window_bounds = array<i64: 8, 216>}, {pipeline_mode = #tpu.pipeline_mode<synchronous>, transform_indices = @transform_16, window_bounds = array<i64: 8, 1>}, {pipeline_mode = #tpu.pipeline_mode<synchronous>, transform_indices = @transform_17, window_bounds = array<i64: 8, 72>}, {pipeline_mode = #tpu.pipeline_mode<synchronous>, transform_indices = @transform_18, window_bounds = array<i64: 8, 1>}, {pipeline_mode = #tpu.pipeline_mode<synchronous>, transform_indices = @transform_19, window_bounds = array<i64: 8, 1>}, {pipeline_mode = #tpu.pipeline_mode<synchronous>, transform_indices = @transform_20, window_bounds = array<i64: 1, 1>}, {transform_indices = @transform_21, window_bounds = array<i64: 1, 1, 256>}]} {
    %c0 = arith.constant 0 : index
    %c0_0 = arith.constant 0 : index
    %0 = vector.load %arg3[%c0, %c0_0] : memref<9x256xf32, #tpu.memory_space<vmem>>, vector<9x256xf32>
    %c0_1 = arith.constant 0 : index
    %c0_2 = arith.constant 0 : index
    %1 = vector.load %arg4[%c0_1, %c0_2] : memref<9x64xf32, #tpu.memory_space<vmem>>, vector<9x64xf32>
    %2 = vector.extract_strided_slice %0 {offsets = [0, 0], sizes = [1, 256], strides = [1, 1]} : vector<9x256xf32> to vector<1x256xf32>
    %3 = vector.extract_strided_slice %0 {offsets = [1, 0], sizes = [1, 256], strides = [1, 1]} : vector<9x256xf32> to vector<1x256xf32>
    %4 = vector.extract_strided_slice %0 {offsets = [2, 0], sizes = [1, 256], strides = [1, 1]} : vector<9x256xf32> to vector<1x256xf32>
    %5 = vector.extract_strided_slice %0 {offsets = [3, 0], sizes = [1, 256], strides = [1, 1]} : vector<9x256xf32> to vector<1x256xf32>
    %6 = vector.extract_strided_slice %0 {offsets = [5, 0], sizes = [1, 256], strides = [1, 1]} : vector<9x256xf32> to vector<1x256xf32>
    %7 = vector.extract_strided_slice %0 {offsets = [6, 0], sizes = [1, 256], strides = [1, 1]} : vector<9x256xf32> to vector<1x256xf32>
    %8 = vector.extract_strided_slice %0 {offsets = [7, 0], sizes = [1, 256], strides = [1, 1]} : vector<9x256xf32> to vector<1x256xf32>
    %9 = vector.extract_strided_slice %0 {offsets = [8, 0], sizes = [1, 256], strides = [1, 1]} : vector<9x256xf32> to vector<1x256xf32>
    %10 = vector.extract_strided_slice %1 {offsets = [0, 0], sizes = [1, 64], strides = [1, 1]} : vector<9x64xf32> to vector<1x64xf32>
    %11 = vector.extract_strided_slice %1 {offsets = [1, 0], sizes = [1, 64], strides = [1, 1]} : vector<9x64xf32> to vector<1x64xf32>
    %12 = vector.extract_strided_slice %1 {offsets = [2, 0], sizes = [1, 64], strides = [1, 1]} : vector<9x64xf32> to vector<1x64xf32>
    %13 = vector.extract_strided_slice %1 {offsets = [3, 0], sizes = [1, 64], strides = [1, 1]} : vector<9x64xf32> to vector<1x64xf32>
    %14 = vector.extract_strided_slice %1 {offsets = [5, 0], sizes = [1, 64], strides = [1, 1]} : vector<9x64xf32> to vector<1x64xf32>
    %15 = vector.extract_strided_slice %1 {offsets = [6, 0], sizes = [1, 64], strides = [1, 1]} : vector<9x64xf32> to vector<1x64xf32>
    %16 = vector.extract_strided_slice %1 {offsets = [7, 0], sizes = [1, 64], strides = [1, 1]} : vector<9x64xf32> to vector<1x64xf32>
    %17 = vector.extract_strided_slice %1 {offsets = [8, 0], sizes = [1, 64], strides = [1, 1]} : vector<9x64xf32> to vector<1x64xf32>
    %c0_3 = arith.constant 0 : index
    %c0_4 = arith.constant 0 : index
    %c0_5 = arith.constant 0 : index
    %18 = vector.load %arg1[%c0_3, %c0_4, %c0_5] : memref<1x1x256xf32, #tpu.memory_space<vmem>>, vector<1x1x256xf32>
    %19 = vector.shape_cast %18 : vector<1x1x256xf32> to vector<1x256xf32>
    %c0_6 = arith.constant 0 : index
    %c0_7 = arith.constant 0 : index
    %20 = vector.load %arg7[%c0_6, %c0_7] : memref<4x1xf32, #tpu.memory_space<vmem>>, vector<4x1xf32>
    %21 = vector.broadcast %20 : vector<4x1xf32> to vector<4x256xf32>
    %22 = vector.broadcast %19 : vector<1x256xf32> to vector<4x256xf32>
    %23 = arith.mulf %21, %22 : vector<4x256xf32>
    %24 = math.sin %23 : vector<4x256xf32>
    %25 = math.cos %23 : vector<4x256xf32>
    %cst = arith.constant 0.000000e+00 : f32
    %26 = vector.broadcast %cst : f32 to vector<7x256xf32>
    %27 = tpu.concatenate %19, %24, %25, %26 in 0 : vector<1x256xf32>, vector<4x256xf32>, vector<4x256xf32>, vector<7x256xf32> -> vector<16x256xf32>
    %c17_i32 = arith.constant 17 : i32
    %28 = tpu.dynamic_rotate %27 by %c17_i32 dim 1 : vector<16x256xf32>, i32 -> vector<16x256xf32>
    %29 = vector.broadcast %2 : vector<1x256xf32> to vector<16x256xf32>
    %30 = arith.mulf %28, %29 : vector<16x256xf32>
    %c16_i32 = arith.constant 16 : i32
    %31 = tpu.dynamic_rotate %27 by %c16_i32 dim 1 : vector<16x256xf32>, i32 -> vector<16x256xf32>
    %32 = vector.broadcast %3 : vector<1x256xf32> to vector<16x256xf32>
    %33 = arith.mulf %31, %32 : vector<16x256xf32>
    %c15_i32 = arith.constant 15 : i32
    %34 = tpu.dynamic_rotate %27 by %c15_i32 dim 1 : vector<16x256xf32>, i32 -> vector<16x256xf32>
    %35 = vector.broadcast %4 : vector<1x256xf32> to vector<16x256xf32>
    %36 = arith.mulf %34, %35 : vector<16x256xf32>
    %c1_i32 = arith.constant 1 : i32
    %37 = tpu.dynamic_rotate %27 by %c1_i32 dim 1 : vector<16x256xf32>, i32 -> vector<16x256xf32>
    %38 = vector.broadcast %5 : vector<1x256xf32> to vector<16x256xf32>
    %39 = arith.mulf %37, %38 : vector<16x256xf32>
    %c255_i32 = arith.constant 255 : i32
    %40 = tpu.dynamic_rotate %27 by %c255_i32 dim 1 : vector<16x256xf32>, i32 -> vector<16x256xf32>
    %41 = vector.broadcast %6 : vector<1x256xf32> to vector<16x256xf32>
    %42 = arith.mulf %40, %41 : vector<16x256xf32>
    %c241_i32 = arith.constant 241 : i32
    %43 = tpu.dynamic_rotate %27 by %c241_i32 dim 1 : vector<16x256xf32>, i32 -> vector<16x256xf32>
    %44 = vector.broadcast %7 : vector<1x256xf32> to vector<16x256xf32>
    %45 = arith.mulf %43, %44 : vector<16x256xf32>
    %c240_i32 = arith.constant 240 : i32
    %46 = tpu.dynamic_rotate %27 by %c240_i32 dim 1 : vector<16x256xf32>, i32 -> vector<16x256xf32>
    %47 = vector.broadcast %8 : vector<1x256xf32> to vector<16x256xf32>
    %48 = arith.mulf %46, %47 : vector<16x256xf32>
    %c239_i32 = arith.constant 239 : i32
    %49 = tpu.dynamic_rotate %27 by %c239_i32 dim 1 : vector<16x256xf32>, i32 -> vector<16x256xf32>
    %50 = vector.broadcast %9 : vector<1x256xf32> to vector<16x256xf32>
    %51 = arith.mulf %49, %50 : vector<16x256xf32>
    %52 = tpu.concatenate %30, %33, %36, %39, %27, %42, %45, %48, %51 in 0 : vector<16x256xf32>, vector<16x256xf32>, vector<16x256xf32>, vector<16x256xf32>, vector<16x256xf32>, vector<16x256xf32>, vector<16x256xf32>, vector<16x256xf32>, vector<16x256xf32> -> vector<144x256xf32>
    %53 = arith.truncf %52 : vector<144x256xf32> to vector<144x256xbf16>
    %c0_8 = arith.constant 0 : index
    %c0_9 = arith.constant 0 : index
    %54 = vector.load %arg8[%c0_8, %c0_9] : memref<8x144xbf16, #tpu.memory_space<vmem>>, vector<8x144xbf16>
    %cst_10 = arith.constant dense<0.000000e+00> : vector<8x256xf32>
    %55 = tpu.matmul %54, %53, %cst_10 {dimension_numbers = #tpu.dot_dimension_numbers<[1], [0], [0], [1], [0, 0, 1, 1], [], []>} : vector<8x144xbf16>, vector<144x256xbf16>, vector<8x256xf32> -> vector<8x256xf32>
    %c0_11 = arith.constant 0 : index
    %c0_12 = arith.constant 0 : index
    %56 = vector.load %arg9[%c0_11, %c0_12] : memref<8x1xf32, #tpu.memory_space<vmem>>, vector<8x1xf32>
    %57 = vector.broadcast %56 : vector<8x1xf32> to vector<8x256xf32>
    %58 = arith.addf %55, %57 : vector<8x256xf32>
    %cst_13 = arith.constant 0.000000e+00 : f32
    %59 = vector.broadcast %cst_13 : f32 to vector<8x256xf32>
    %60 = arith.maximumf %58, %59 : vector<8x256xf32>
    %c17_i32_14 = arith.constant 17 : i32
    %61 = tpu.dynamic_rotate %60 by %c17_i32_14 dim 1 : vector<8x256xf32>, i32 -> vector<8x256xf32>
    %62 = vector.broadcast %2 : vector<1x256xf32> to vector<8x256xf32>
    %63 = arith.mulf %61, %62 : vector<8x256xf32>
    %c16_i32_15 = arith.constant 16 : i32
    %64 = tpu.dynamic_rotate %60 by %c16_i32_15 dim 1 : vector<8x256xf32>, i32 -> vector<8x256xf32>
    %65 = vector.broadcast %3 : vector<1x256xf32> to vector<8x256xf32>
    %66 = arith.mulf %64, %65 : vector<8x256xf32>
    %c15_i32_16 = arith.constant 15 : i32
    %67 = tpu.dynamic_rotate %60 by %c15_i32_16 dim 1 : vector<8x256xf32>, i32 -> vector<8x256xf32>
    %68 = vector.broadcast %4 : vector<1x256xf32> to vector<8x256xf32>
    %69 = arith.mulf %67, %68 : vector<8x256xf32>
    %c1_i32_17 = arith.constant 1 : i32
    %70 = tpu.dynamic_rotate %60 by %c1_i32_17 dim 1 : vector<8x256xf32>, i32 -> vector<8x256xf32>
    %71 = vector.broadcast %5 : vector<1x256xf32> to vector<8x256xf32>
    %72 = arith.mulf %70, %71 : vector<8x256xf32>
    %c255_i32_18 = arith.constant 255 : i32
    %73 = tpu.dynamic_rotate %60 by %c255_i32_18 dim 1 : vector<8x256xf32>, i32 -> vector<8x256xf32>
    %74 = vector.broadcast %6 : vector<1x256xf32> to vector<8x256xf32>
    %75 = arith.mulf %73, %74 : vector<8x256xf32>
    %c241_i32_19 = arith.constant 241 : i32
    %76 = tpu.dynamic_rotate %60 by %c241_i32_19 dim 1 : vector<8x256xf32>, i32 -> vector<8x256xf32>
    %77 = vector.broadcast %7 : vector<1x256xf32> to vector<8x256xf32>
    %78 = arith.mulf %76, %77 : vector<8x256xf32>
    %c240_i32_20 = arith.constant 240 : i32
    %79 = tpu.dynamic_rotate %60 by %c240_i32_20 dim 1 : vector<8x256xf32>, i32 -> vector<8x256xf32>
    %80 = vector.broadcast %8 : vector<1x256xf32> to vector<8x256xf32>
    %81 = arith.mulf %79, %80 : vector<8x256xf32>
    %c239_i32_21 = arith.constant 239 : i32
    %82 = tpu.dynamic_rotate %60 by %c239_i32_21 dim 1 : vector<8x256xf32>, i32 -> vector<8x256xf32>
    %83 = vector.broadcast %9 : vector<1x256xf32> to vector<8x256xf32>
    %84 = arith.mulf %82, %83 : vector<8x256xf32>
    %85 = tpu.concatenate %63, %66, %69, %72, %60, %75, %78, %81, %84 in 0 : vector<8x256xf32>, vector<8x256xf32>, vector<8x256xf32>, vector<8x256xf32>, vector<8x256xf32>, vector<8x256xf32>, vector<8x256xf32>, vector<8x256xf32>, vector<8x256xf32> -> vector<72x256xf32>
    %86 = arith.truncf %85 : vector<72x256xf32> to vector<72x256xbf16>
    %c0_22 = arith.constant 0 : index
    %c0_23 = arith.constant 0 : index
    %87 = vector.load %arg10[%c0_22, %c0_23] : memref<8x72xbf16, #tpu.memory_space<vmem>>, vector<8x72xbf16>
    %cst_24 = arith.constant dense<0.000000e+00> : vector<8x256xf32>
    %88 = tpu.matmul %87, %86, %cst_24 {dimension_numbers = #tpu.dot_dimension_numbers<[1], [0], [0], [1], [0, 0, 1, 1], [], []>} : vector<8x72xbf16>, vector<72x256xbf16>, vector<8x256xf32> -> vector<8x256xf32>
    %c0_25 = arith.constant 0 : index
    %c0_26 = arith.constant 0 : index
    %89 = vector.load %arg11[%c0_25, %c0_26] : memref<8x1xf32, #tpu.memory_space<vmem>>, vector<8x1xf32>
    %90 = vector.broadcast %89 : vector<8x1xf32> to vector<8x256xf32>
    %91 = arith.addf %88, %90 : vector<8x256xf32>
    %cst_27 = arith.constant 0.000000e+00 : f32
    %92 = vector.broadcast %cst_27 : f32 to vector<8x256xf32>
    %93 = arith.maximumf %91, %92 : vector<8x256xf32>
    %94 = vector.shape_cast %93 : vector<8x256xf32> to vector<8x8x32xf32>
    %95 = vector.shape_cast %94 : vector<8x8x32xf32> to vector<64x32xf32>
    %c0_28 = arith.constant 0 : index
    %c0_29 = arith.constant 0 : index
    %96 = vector.load %arg5[%c0_28, %c0_29] : memref<32x8xf32, #tpu.memory_space<vmem>>, vector<32x8xf32>
    %cst_30 = arith.constant dense<0.000000e+00> : vector<64x8xf32>
    %97 = tpu.matmul %95, %96, %cst_30 {dimension_numbers = #tpu.dot_dimension_numbers<[1], [0], [0], [1], [0, 0, 1, 1], [], []>} : vector<64x32xf32>, vector<32x8xf32>, vector<64x8xf32> -> vector<64x8xf32>
    %98 = vector.shape_cast %97 : vector<64x8xf32> to vector<8x8x8xf32>
    %99 = vector.shape_cast %98 : vector<8x8x8xf32> to vector<8x64xf32>
    %c9_i32 = arith.constant 9 : i32
    %100 = tpu.dynamic_rotate %99 by %c9_i32 dim 1 : vector<8x64xf32>, i32 -> vector<8x64xf32>
    %101 = vector.broadcast %10 : vector<1x64xf32> to vector<8x64xf32>
    %102 = arith.mulf %100, %101 : vector<8x64xf32>
    %c8_i32 = arith.constant 8 : i32
    %103 = tpu.dynamic_rotate %99 by %c8_i32 dim 1 : vector<8x64xf32>, i32 -> vector<8x64xf32>
    %104 = vector.broadcast %11 : vector<1x64xf32> to vector<8x64xf32>
    %105 = arith.mulf %103, %104 : vector<8x64xf32>
    %c7_i32 = arith.constant 7 : i32
    %106 = tpu.dynamic_rotate %99 by %c7_i32 dim 1 : vector<8x64xf32>, i32 -> vector<8x64xf32>
    %107 = vector.broadcast %12 : vector<1x64xf32> to vector<8x64xf32>
    %108 = arith.mulf %106, %107 : vector<8x64xf32>
    %c1_i32_31 = arith.constant 1 : i32
    %109 = tpu.dynamic_rotate %99 by %c1_i32_31 dim 1 : vector<8x64xf32>, i32 -> vector<8x64xf32>
    %110 = vector.broadcast %13 : vector<1x64xf32> to vector<8x64xf32>
    %111 = arith.mulf %109, %110 : vector<8x64xf32>
    %c63_i32 = arith.constant 63 : i32
    %112 = tpu.dynamic_rotate %99 by %c63_i32 dim 1 : vector<8x64xf32>, i32 -> vector<8x64xf32>
    %113 = vector.broadcast %14 : vector<1x64xf32> to vector<8x64xf32>
    %114 = arith.mulf %112, %113 : vector<8x64xf32>
    %c57_i32 = arith.constant 57 : i32
    %115 = tpu.dynamic_rotate %99 by %c57_i32 dim 1 : vector<8x64xf32>, i32 -> vector<8x64xf32>
    %116 = vector.broadcast %15 : vector<1x64xf32> to vector<8x64xf32>
    %117 = arith.mulf %115, %116 : vector<8x64xf32>
    %c56_i32 = arith.constant 56 : i32
    %118 = tpu.dynamic_rotate %99 by %c56_i32 dim 1 : vector<8x64xf32>, i32 -> vector<8x64xf32>
    %119 = vector.broadcast %16 : vector<1x64xf32> to vector<8x64xf32>
    %120 = arith.mulf %118, %119 : vector<8x64xf32>
    %c55_i32 = arith.constant 55 : i32
    %121 = tpu.dynamic_rotate %99 by %c55_i32 dim 1 : vector<8x64xf32>, i32 -> vector<8x64xf32>
    %122 = vector.broadcast %17 : vector<1x64xf32> to vector<8x64xf32>
    %123 = arith.mulf %121, %122 : vector<8x64xf32>
    %124 = tpu.concatenate %102, %105, %108, %111, %99, %114, %117, %120, %123 in 0 : vector<8x64xf32>, vector<8x64xf32>, vector<8x64xf32>, vector<8x64xf32>, vector<8x64xf32>, vector<8x64xf32>, vector<8x64xf32>, vector<8x64xf32>, vector<8x64xf32> -> vector<72x64xf32>
    %125 = arith.truncf %124 : vector<72x64xf32> to vector<72x64xbf16>
    %c0_32 = arith.constant 0 : index
    %c0_33 = arith.constant 0 : index
    %126 = vector.load %arg12[%c0_32, %c0_33] : memref<16x72xbf16, #tpu.memory_space<vmem>>, vector<16x72xbf16>
    %cst_34 = arith.constant dense<0.000000e+00> : vector<16x64xf32>
    %127 = tpu.matmul %126, %125, %cst_34 {dimension_numbers = #tpu.dot_dimension_numbers<[1], [0], [0], [1], [0, 0, 1, 1], [], []>} : vector<16x72xbf16>, vector<72x64xbf16>, vector<16x64xf32> -> vector<16x64xf32>
    %c0_35 = arith.constant 0 : index
    %c0_36 = arith.constant 0 : index
    %128 = vector.load %arg13[%c0_35, %c0_36] : memref<16x1xf32, #tpu.memory_space<vmem>>, vector<16x1xf32>
    %129 = vector.broadcast %128 : vector<16x1xf32> to vector<16x64xf32>
    %130 = arith.addf %127, %129 : vector<16x64xf32>
    %cst_37 = arith.constant 0.000000e+00 : f32
    %131 = vector.broadcast %cst_37 : f32 to vector<16x64xf32>
    %132 = arith.maximumf %130, %131 : vector<16x64xf32>
    %c9_i32_38 = arith.constant 9 : i32
    %133 = tpu.dynamic_rotate %132 by %c9_i32_38 dim 1 : vector<16x64xf32>, i32 -> vector<16x64xf32>
    %134 = vector.broadcast %10 : vector<1x64xf32> to vector<16x64xf32>
    %135 = arith.mulf %133, %134 : vector<16x64xf32>
    %c8_i32_39 = arith.constant 8 : i32
    %136 = tpu.dynamic_rotate %132 by %c8_i32_39 dim 1 : vector<16x64xf32>, i32 -> vector<16x64xf32>
    %137 = vector.broadcast %11 : vector<1x64xf32> to vector<16x64xf32>
    %138 = arith.mulf %136, %137 : vector<16x64xf32>
    %c7_i32_40 = arith.constant 7 : i32
    %139 = tpu.dynamic_rotate %132 by %c7_i32_40 dim 1 : vector<16x64xf32>, i32 -> vector<16x64xf32>
    %140 = vector.broadcast %12 : vector<1x64xf32> to vector<16x64xf32>
    %141 = arith.mulf %139, %140 : vector<16x64xf32>
    %c1_i32_41 = arith.constant 1 : i32
    %142 = tpu.dynamic_rotate %132 by %c1_i32_41 dim 1 : vector<16x64xf32>, i32 -> vector<16x64xf32>
    %143 = vector.broadcast %13 : vector<1x64xf32> to vector<16x64xf32>
    %144 = arith.mulf %142, %143 : vector<16x64xf32>
    %c63_i32_42 = arith.constant 63 : i32
    %145 = tpu.dynamic_rotate %132 by %c63_i32_42 dim 1 : vector<16x64xf32>, i32 -> vector<16x64xf32>
    %146 = vector.broadcast %14 : vector<1x64xf32> to vector<16x64xf32>
    %147 = arith.mulf %145, %146 : vector<16x64xf32>
    %c57_i32_43 = arith.constant 57 : i32
    %148 = tpu.dynamic_rotate %132 by %c57_i32_43 dim 1 : vector<16x64xf32>, i32 -> vector<16x64xf32>
    %149 = vector.broadcast %15 : vector<1x64xf32> to vector<16x64xf32>
    %150 = arith.mulf %148, %149 : vector<16x64xf32>
    %c56_i32_44 = arith.constant 56 : i32
    %151 = tpu.dynamic_rotate %132 by %c56_i32_44 dim 1 : vector<16x64xf32>, i32 -> vector<16x64xf32>
    %152 = vector.broadcast %16 : vector<1x64xf32> to vector<16x64xf32>
    %153 = arith.mulf %151, %152 : vector<16x64xf32>
    %c55_i32_45 = arith.constant 55 : i32
    %154 = tpu.dynamic_rotate %132 by %c55_i32_45 dim 1 : vector<16x64xf32>, i32 -> vector<16x64xf32>
    %155 = vector.broadcast %17 : vector<1x64xf32> to vector<16x64xf32>
    %156 = arith.mulf %154, %155 : vector<16x64xf32>
    %157 = tpu.concatenate %135, %138, %141, %144, %132, %147, %150, %153, %156 in 0 : vector<16x64xf32>, vector<16x64xf32>, vector<16x64xf32>, vector<16x64xf32>, vector<16x64xf32>, vector<16x64xf32>, vector<16x64xf32>, vector<16x64xf32>, vector<16x64xf32> -> vector<144x64xf32>
    %158 = arith.truncf %157 : vector<144x64xf32> to vector<144x64xbf16>
    %c0_46 = arith.constant 0 : index
    %c0_47 = arith.constant 0 : index
    %159 = vector.load %arg14[%c0_46, %c0_47] : memref<16x144xbf16, #tpu.memory_space<vmem>>, vector<16x144xbf16>
    %cst_48 = arith.constant dense<0.000000e+00> : vector<16x64xf32>
    %160 = tpu.matmul %159, %158, %cst_48 {dimension_numbers = #tpu.dot_dimension_numbers<[1], [0], [0], [1], [0, 0, 1, 1], [], []>} : vector<16x144xbf16>, vector<144x64xbf16>, vector<16x64xf32> -> vector<16x64xf32>
    %c0_49 = arith.constant 0 : index
    %c0_50 = arith.constant 0 : index
    %161 = vector.load %arg15[%c0_49, %c0_50] : memref<16x1xf32, #tpu.memory_space<vmem>>, vector<16x1xf32>
    %162 = vector.broadcast %161 : vector<16x1xf32> to vector<16x64xf32>
    %163 = arith.addf %160, %162 : vector<16x64xf32>
    %cst_51 = arith.constant 0.000000e+00 : f32
    %164 = vector.broadcast %cst_51 : f32 to vector<16x64xf32>
    %165 = arith.maximumf %163, %164 : vector<16x64xf32>
    %166 = vector.shape_cast %165 : vector<16x64xf32> to vector<16x8x8xf32>
    %167 = vector.shape_cast %166 : vector<16x8x8xf32> to vector<128x8xf32>
    %c0_52 = arith.constant 0 : index
    %c0_53 = arith.constant 0 : index
    %168 = vector.load %arg6[%c0_52, %c0_53] : memref<8x32xf32, #tpu.memory_space<vmem>>, vector<8x32xf32>
    %cst_54 = arith.constant dense<0.000000e+00> : vector<128x32xf32>
    %169 = tpu.matmul %167, %168, %cst_54 {dimension_numbers = #tpu.dot_dimension_numbers<[1], [0], [0], [1], [0, 0, 1, 1], [], []>} : vector<128x8xf32>, vector<8x32xf32>, vector<128x32xf32> -> vector<128x32xf32>
    %170 = vector.shape_cast %169 : vector<128x32xf32> to vector<16x8x32xf32>
    %171 = vector.shape_cast %170 : vector<16x8x32xf32> to vector<16x256xf32>
    %c17_i32_55 = arith.constant 17 : i32
    %172 = tpu.dynamic_rotate %171 by %c17_i32_55 dim 1 : vector<16x256xf32>, i32 -> vector<16x256xf32>
    %173 = vector.broadcast %2 : vector<1x256xf32> to vector<16x256xf32>
    %174 = arith.mulf %172, %173 : vector<16x256xf32>
    %c17_i32_56 = arith.constant 17 : i32
    %175 = tpu.dynamic_rotate %93 by %c17_i32_56 dim 1 : vector<8x256xf32>, i32 -> vector<8x256xf32>
    %176 = vector.broadcast %2 : vector<1x256xf32> to vector<8x256xf32>
    %177 = arith.mulf %175, %176 : vector<8x256xf32>
    %c16_i32_57 = arith.constant 16 : i32
    %178 = tpu.dynamic_rotate %171 by %c16_i32_57 dim 1 : vector<16x256xf32>, i32 -> vector<16x256xf32>
    %179 = vector.broadcast %3 : vector<1x256xf32> to vector<16x256xf32>
    %180 = arith.mulf %178, %179 : vector<16x256xf32>
    %c16_i32_58 = arith.constant 16 : i32
    %181 = tpu.dynamic_rotate %93 by %c16_i32_58 dim 1 : vector<8x256xf32>, i32 -> vector<8x256xf32>
    %182 = vector.broadcast %3 : vector<1x256xf32> to vector<8x256xf32>
    %183 = arith.mulf %181, %182 : vector<8x256xf32>
    %c15_i32_59 = arith.constant 15 : i32
    %184 = tpu.dynamic_rotate %171 by %c15_i32_59 dim 1 : vector<16x256xf32>, i32 -> vector<16x256xf32>
    %185 = vector.broadcast %4 : vector<1x256xf32> to vector<16x256xf32>
    %186 = arith.mulf %184, %185 : vector<16x256xf32>
    %c15_i32_60 = arith.constant 15 : i32
    %187 = tpu.dynamic_rotate %93 by %c15_i32_60 dim 1 : vector<8x256xf32>, i32 -> vector<8x256xf32>
    %188 = vector.broadcast %4 : vector<1x256xf32> to vector<8x256xf32>
    %189 = arith.mulf %187, %188 : vector<8x256xf32>
    %c1_i32_61 = arith.constant 1 : i32
    %190 = tpu.dynamic_rotate %171 by %c1_i32_61 dim 1 : vector<16x256xf32>, i32 -> vector<16x256xf32>
    %191 = vector.broadcast %5 : vector<1x256xf32> to vector<16x256xf32>
    %192 = arith.mulf %190, %191 : vector<16x256xf32>
    %c1_i32_62 = arith.constant 1 : i32
    %193 = tpu.dynamic_rotate %93 by %c1_i32_62 dim 1 : vector<8x256xf32>, i32 -> vector<8x256xf32>
    %194 = vector.broadcast %5 : vector<1x256xf32> to vector<8x256xf32>
    %195 = arith.mulf %193, %194 : vector<8x256xf32>
    %c255_i32_63 = arith.constant 255 : i32
    %196 = tpu.dynamic_rotate %171 by %c255_i32_63 dim 1 : vector<16x256xf32>, i32 -> vector<16x256xf32>
    %197 = vector.broadcast %6 : vector<1x256xf32> to vector<16x256xf32>
    %198 = arith.mulf %196, %197 : vector<16x256xf32>
    %c255_i32_64 = arith.constant 255 : i32
    %199 = tpu.dynamic_rotate %93 by %c255_i32_64 dim 1 : vector<8x256xf32>, i32 -> vector<8x256xf32>
    %200 = vector.broadcast %6 : vector<1x256xf32> to vector<8x256xf32>
    %201 = arith.mulf %199, %200 : vector<8x256xf32>
    %c241_i32_65 = arith.constant 241 : i32
    %202 = tpu.dynamic_rotate %171 by %c241_i32_65 dim 1 : vector<16x256xf32>, i32 -> vector<16x256xf32>
    %203 = vector.broadcast %7 : vector<1x256xf32> to vector<16x256xf32>
    %204 = arith.mulf %202, %203 : vector<16x256xf32>
    %c241_i32_66 = arith.constant 241 : i32
    %205 = tpu.dynamic_rotate %93 by %c241_i32_66 dim 1 : vector<8x256xf32>, i32 -> vector<8x256xf32>
    %206 = vector.broadcast %7 : vector<1x256xf32> to vector<8x256xf32>
    %207 = arith.mulf %205, %206 : vector<8x256xf32>
    %c240_i32_67 = arith.constant 240 : i32
    %208 = tpu.dynamic_rotate %171 by %c240_i32_67 dim 1 : vector<16x256xf32>, i32 -> vector<16x256xf32>
    %209 = vector.broadcast %8 : vector<1x256xf32> to vector<16x256xf32>
    %210 = arith.mulf %208, %209 : vector<16x256xf32>
    %c240_i32_68 = arith.constant 240 : i32
    %211 = tpu.dynamic_rotate %93 by %c240_i32_68 dim 1 : vector<8x256xf32>, i32 -> vector<8x256xf32>
    %212 = vector.broadcast %8 : vector<1x256xf32> to vector<8x256xf32>
    %213 = arith.mulf %211, %212 : vector<8x256xf32>
    %c239_i32_69 = arith.constant 239 : i32
    %214 = tpu.dynamic_rotate %171 by %c239_i32_69 dim 1 : vector<16x256xf32>, i32 -> vector<16x256xf32>
    %215 = vector.broadcast %9 : vector<1x256xf32> to vector<16x256xf32>
    %216 = arith.mulf %214, %215 : vector<16x256xf32>
    %c239_i32_70 = arith.constant 239 : i32
    %217 = tpu.dynamic_rotate %93 by %c239_i32_70 dim 1 : vector<8x256xf32>, i32 -> vector<8x256xf32>
    %218 = vector.broadcast %9 : vector<1x256xf32> to vector<8x256xf32>
    %219 = arith.mulf %217, %218 : vector<8x256xf32>
    %220 = tpu.concatenate %174, %177, %180, %183, %186, %189, %192, %195, %171, %93, %198, %201, %204, %207, %210, %213 in 0 : vector<16x256xf32>, vector<8x256xf32>, vector<16x256xf32>, vector<8x256xf32>, vector<16x256xf32>, vector<8x256xf32>, vector<16x256xf32>, vector<8x256xf32>, vector<16x256xf32>, vector<8x256xf32>, vector<16x256xf32>, vector<8x256xf32>, vector<16x256xf32>, vector<8x256xf32>, vector<16x256xf32>, vector<8x256xf32> -> vector<192x256xf32>
    %221 = tpu.concatenate %216, %219 in 0 : vector<16x256xf32>, vector<8x256xf32> -> vector<24x256xf32>
    %222 = tpu.concatenate %220, %221 in 0 : vector<192x256xf32>, vector<24x256xf32> -> vector<216x256xf32>
    %223 = arith.truncf %222 : vector<216x256xf32> to vector<216x256xbf16>
    %c0_71 = arith.constant 0 : index
    %c0_72 = arith.constant 0 : index
    %224 = vector.load %arg16[%c0_71, %c0_72] : memref<8x216xbf16, #tpu.memory_space<vmem>>, vector<8x216xbf16>
    %cst_73 = arith.constant dense<0.000000e+00> : vector<8x256xf32>
    %225 = tpu.matmul %224, %223, %cst_73 {dimension_numbers = #tpu.dot_dimension_numbers<[1], [0], [0], [1], [0, 0, 1, 1], [], []>} : vector<8x216xbf16>, vector<216x256xbf16>, vector<8x256xf32> -> vector<8x256xf32>
    %c0_74 = arith.constant 0 : index
    %c0_75 = arith.constant 0 : index
    %226 = vector.load %arg17[%c0_74, %c0_75] : memref<8x1xf32, #tpu.memory_space<vmem>>, vector<8x1xf32>
    %227 = vector.broadcast %226 : vector<8x1xf32> to vector<8x256xf32>
    %228 = arith.addf %225, %227 : vector<8x256xf32>
    %cst_76 = arith.constant 0.000000e+00 : f32
    %229 = vector.broadcast %cst_76 : f32 to vector<8x256xf32>
    %230 = arith.maximumf %228, %229 : vector<8x256xf32>
    %c17_i32_77 = arith.constant 17 : i32
    %231 = tpu.dynamic_rotate %230 by %c17_i32_77 dim 1 : vector<8x256xf32>, i32 -> vector<8x256xf32>
    %232 = vector.broadcast %2 : vector<1x256xf32> to vector<8x256xf32>
    %233 = arith.mulf %231, %232 : vector<8x256xf32>
    %c16_i32_78 = arith.constant 16 : i32
    %234 = tpu.dynamic_rotate %230 by %c16_i32_78 dim 1 : vector<8x256xf32>, i32 -> vector<8x256xf32>
    %235 = vector.broadcast %3 : vector<1x256xf32> to vector<8x256xf32>
    %236 = arith.mulf %234, %235 : vector<8x256xf32>
    %c15_i32_79 = arith.constant 15 : i32
    %237 = tpu.dynamic_rotate %230 by %c15_i32_79 dim 1 : vector<8x256xf32>, i32 -> vector<8x256xf32>
    %238 = vector.broadcast %4 : vector<1x256xf32> to vector<8x256xf32>
    %239 = arith.mulf %237, %238 : vector<8x256xf32>
    %c1_i32_80 = arith.constant 1 : i32
    %240 = tpu.dynamic_rotate %230 by %c1_i32_80 dim 1 : vector<8x256xf32>, i32 -> vector<8x256xf32>
    %241 = vector.broadcast %5 : vector<1x256xf32> to vector<8x256xf32>
    %242 = arith.mulf %240, %241 : vector<8x256xf32>
    %c255_i32_81 = arith.constant 255 : i32
    %243 = tpu.dynamic_rotate %230 by %c255_i32_81 dim 1 : vector<8x256xf32>, i32 -> vector<8x256xf32>
    %244 = vector.broadcast %6 : vector<1x256xf32> to vector<8x256xf32>
    %245 = arith.mulf %243, %244 : vector<8x256xf32>
    %c241_i32_82 = arith.constant 241 : i32
    %246 = tpu.dynamic_rotate %230 by %c241_i32_82 dim 1 : vector<8x256xf32>, i32 -> vector<8x256xf32>
    %247 = vector.broadcast %7 : vector<1x256xf32> to vector<8x256xf32>
    %248 = arith.mulf %246, %247 : vector<8x256xf32>
    %c240_i32_83 = arith.constant 240 : i32
    %249 = tpu.dynamic_rotate %230 by %c240_i32_83 dim 1 : vector<8x256xf32>, i32 -> vector<8x256xf32>
    %250 = vector.broadcast %8 : vector<1x256xf32> to vector<8x256xf32>
    %251 = arith.mulf %249, %250 : vector<8x256xf32>
    %c239_i32_84 = arith.constant 239 : i32
    %252 = tpu.dynamic_rotate %230 by %c239_i32_84 dim 1 : vector<8x256xf32>, i32 -> vector<8x256xf32>
    %253 = vector.broadcast %9 : vector<1x256xf32> to vector<8x256xf32>
    %254 = arith.mulf %252, %253 : vector<8x256xf32>
    %255 = tpu.concatenate %233, %236, %239, %242, %230, %245, %248, %251, %254 in 0 : vector<8x256xf32>, vector<8x256xf32>, vector<8x256xf32>, vector<8x256xf32>, vector<8x256xf32>, vector<8x256xf32>, vector<8x256xf32>, vector<8x256xf32>, vector<8x256xf32> -> vector<72x256xf32>
    %256 = arith.truncf %255 : vector<72x256xf32> to vector<72x256xbf16>
    %c0_85 = arith.constant 0 : index
    %c0_86 = arith.constant 0 : index
    %257 = vector.load %arg18[%c0_85, %c0_86] : memref<8x72xbf16, #tpu.memory_space<vmem>>, vector<8x72xbf16>
    %cst_87 = arith.constant dense<0.000000e+00> : vector<8x256xf32>
    %258 = tpu.matmul %257, %256, %cst_87 {dimension_numbers = #tpu.dot_dimension_numbers<[1], [0], [0], [1], [0, 0, 1, 1], [], []>} : vector<8x72xbf16>, vector<72x256xbf16>, vector<8x256xf32> -> vector<8x256xf32>
    %c0_88 = arith.constant 0 : index
    %c0_89 = arith.constant 0 : index
    %259 = vector.load %arg19[%c0_88, %c0_89] : memref<8x1xf32, #tpu.memory_space<vmem>>, vector<8x1xf32>
    %260 = vector.broadcast %259 : vector<8x1xf32> to vector<8x256xf32>
    %261 = arith.addf %258, %260 : vector<8x256xf32>
    %cst_90 = arith.constant 0.000000e+00 : f32
    %262 = vector.broadcast %cst_90 : f32 to vector<8x256xf32>
    %263 = arith.maximumf %261, %262 : vector<8x256xf32>
    %c0_91 = arith.constant 0 : index
    %c0_92 = arith.constant 0 : index
    %264 = vector.load %arg20[%c0_91, %c0_92] : memref<8x1xf32, #tpu.memory_space<vmem>>, vector<8x1xf32>
    %265 = vector.broadcast %264 : vector<8x1xf32> to vector<8x256xf32>
    %266 = arith.mulf %263, %265 : vector<8x256xf32>
    %cst_93 = arith.constant dense<0.000000e+00> : vector<256xf32>
    %267 = vector.multi_reduction <add>, %266, %cst_93 [0] : vector<8x256xf32> to vector<256xf32>
    %268 = vector.shape_cast %267 : vector<256xf32> to vector<1x256xf32>
    %c0_94 = arith.constant 0 : index
    %c0_95 = arith.constant 0 : index
    %269 = vector.load %arg21[%c0_94, %c0_95] : memref<1x1xf32, #tpu.memory_space<vmem>>, vector<1x1xf32>
    %270 = vector.broadcast %269 : vector<1x1xf32> to vector<1x256xf32>
    %271 = arith.addf %268, %270 : vector<1x256xf32>
    %c0_96 = arith.constant 0 : index
    %c0_97 = arith.constant 0 : index
    %c0_98 = arith.constant 0 : index
    %272 = vector.load %arg2[%c0_96, %c0_97, %c0_98] : memref<1x1x256xf32, #tpu.memory_space<vmem>>, vector<1x1x256xf32>
    %273 = vector.shape_cast %272 : vector<1x1x256xf32> to vector<1x256xf32>
    %274 = arith.mulf %273, %19 : vector<1x256xf32>
    %cst_99 = arith.constant 1.000000e+00 : f32
    %275 = vector.broadcast %cst_99 : f32 to vector<1x256xf32>
    %276 = arith.subf %275, %273 : vector<1x256xf32>
    %277 = arith.mulf %276, %271 : vector<1x256xf32>
    %278 = arith.addf %274, %277 : vector<1x256xf32>
    %c0_100 = arith.constant 0 : index
    %c0_101 = arith.constant 0 : index
    %c0_102 = arith.constant 0 : index
    %279 = vector.load %arg22[%c0_100, %c0_101, %c0_102] : memref<1x1x256xf32, #tpu.memory_space<vmem>>, vector<1x1x256xf32>
    %280 = vector.shape_cast %279 : vector<1x1x256xf32> to vector<1x256xf32>
    %281 = vector.shape_cast %278 : vector<1x256xf32> to vector<1x1x256xf32>
    tpu.vector_store %arg22[%c0_100, %c0_101, %c0_102], %281 {strides = array<i32>} : memref<1x1x256xf32, #tpu.memory_space<vmem>>, vector<1x1x256xf32>,
    return
  }
  func.func @transform_0(%arg0: i32) -> (i32, i32, i32) {
    %c0_i32 = arith.constant 0 : i32
    %c0_i32_0 = arith.constant 0 : i32
    %c0_i32_1 = arith.constant 0 : i32
    return %arg0, %c0_i32, %c0_i32_0 : i32, i32, i32
  }
  func.func @transform_1(%arg0: i32) -> (i32, i32, i32) {
    %c0_i32 = arith.constant 0 : i32
    %c0_i32_0 = arith.constant 0 : i32
    %c0_i32_1 = arith.constant 0 : i32
    return %arg0, %c0_i32, %c0_i32_0 : i32, i32, i32
  }
  func.func @transform_2(%arg0: i32) -> (i32, i32) {
    %c0_i32 = arith.constant 0 : i32
    %c0_i32_0 = arith.constant 0 : i32
    %c0_i32_1 = arith.constant 0 : i32
    return %c0_i32, %c0_i32_0 : i32, i32
  }
  func.func @transform_3(%arg0: i32) -> (i32, i32) {
    %c0_i32 = arith.constant 0 : i32
    %c0_i32_0 = arith.constant 0 : i32
    %c0_i32_1 = arith.constant 0 : i32
    return %c0_i32, %c0_i32_0 : i32, i32
  }
  func.func @transform_4(%arg0: i32) -> (i32, i32) {
    %c0_i32 = arith.constant 0 : i32
    %c0_i32_0 = arith.constant 0 : i32
    %c0_i32_1 = arith.constant 0 : i32
    return %c0_i32, %c0_i32_0 : i32, i32
  }
  func.func @transform_5(%arg0: i32) -> (i32, i32) {
    %c0_i32 = arith.constant 0 : i32
    %c0_i32_0 = arith.constant 0 : i32
    %c0_i32_1 = arith.constant 0 : i32
    return %c0_i32, %c0_i32_0 : i32, i32
  }
  func.func @transform_6(%arg0: i32) -> (i32, i32) {
    %c0_i32 = arith.constant 0 : i32
    %c0_i32_0 = arith.constant 0 : i32
    %c0_i32_1 = arith.constant 0 : i32
    return %c0_i32, %c0_i32_0 : i32, i32
  }
  func.func @transform_7(%arg0: i32) -> (i32, i32) {
    %c0_i32 = arith.constant 0 : i32
    %c0_i32_0 = arith.constant 0 : i32
    %c0_i32_1 = arith.constant 0 : i32
    return %c0_i32, %c0_i32_0 : i32, i32
  }
  func.func @transform_8(%arg0: i32) -> (i32, i32) {
    %c0_i32 = arith.constant 0 : i32
    %c0_i32_0 = arith.constant 0 : i32
    %c0_i32_1 = arith.constant 0 : i32
    return %c0_i32, %c0_i32_0 : i32, i32
  }
  func.func @transform_9(%arg0: i32) -> (i32, i32) {
    %c0_i32 = arith.constant 0 : i32
    %c0_i32_0 = arith.constant 0 : i32
    %c0_i32_1 = arith.constant 0 : i32
    return %c0_i32, %c0_i32_0 : i32, i32
  }
  func.func @transform_10(%arg0: i32) -> (i32, i32) {
    %c0_i32 = arith.constant 0 : i32
    %c0_i32_0 = arith.constant 0 : i32
    %c0_i32_1 = arith.constant 0 : i32
    return %c0_i32, %c0_i32_0 : i32, i32
  }
  func.func @transform_11(%arg0: i32) -> (i32, i32) {
    %c0_i32 = arith.constant 0 : i32
    %c0_i32_0 = arith.constant 0 : i32
    %c0_i32_1 = arith.constant 0 : i32
    return %c0_i32, %c0_i32_0 : i32, i32
  }
  func.func @transform_12(%arg0: i32) -> (i32, i32) {
    %c0_i32 = arith.constant 0 : i32
    %c0_i32_0 = arith.constant 0 : i32
    %c0_i32_1 = arith.constant 0 : i32
    return %c0_i32, %c0_i32_0 : i32, i32
  }
  func.func @transform_13(%arg0: i32) -> (i32, i32) {
    %c0_i32 = arith.constant 0 : i32
    %c0_i32_0 = arith.constant 0 : i32
    %c0_i32_1 = arith.constant 0 : i32
    return %c0_i32, %c0_i32_0 : i32, i32
  }
  func.func @transform_14(%arg0: i32) -> (i32, i32) {
    %c0_i32 = arith.constant 0 : i32
    %c0_i32_0 = arith.constant 0 : i32
    %c0_i32_1 = arith.constant 0 : i32
    return %c0_i32, %c0_i32_0 : i32, i32
  }
  func.func @transform_15(%arg0: i32) -> (i32, i32) {
    %c0_i32 = arith.constant 0 : i32
    %c0_i32_0 = arith.constant 0 : i32
    %c0_i32_1 = arith.constant 0 : i32
    return %c0_i32, %c0_i32_0 : i32, i32
  }
  func.func @transform_16(%arg0: i32) -> (i32, i32) {
    %c0_i32 = arith.constant 0 : i32
    %c0_i32_0 = arith.constant 0 : i32
    %c0_i32_1 = arith.constant 0 : i32
    return %c0_i32, %c0_i32_0 : i32, i32
  }
  func.func @transform_17(%arg0: i32) -> (i32, i32) {
    %c0_i32 = arith.constant 0 : i32
    %c0_i32_0 = arith.constant 0 : i32
    %c0_i32_1 = arith.constant 0 : i32
    return %c0_i32, %c0_i32_0 : i32, i32
  }
  func.func @transform_18(%arg0: i32) -> (i32, i32) {
    %c0_i32 = arith.constant 0 : i32
    %c0_i32_0 = arith.constant 0 : i32
    %c0_i32_1 = arith.constant 0 : i32
    return %c0_i32, %c0_i32_0 : i32, i32
  }
  func.func @transform_19(%arg0: i32) -> (i32, i32) {
    %c0_i32 = arith.constant 0 : i32
    %c0_i32_0 = arith.constant 0 : i32
    %c0_i32_1 = arith.constant 0 : i32
    return %c0_i32, %c0_i32_0 : i32, i32
  }
  func.func @transform_20(%arg0: i32) -> (i32, i32) {
    %c0_i32 = arith.constant 0 : i32
    %c0_i32_0 = arith.constant 0 : i32
    %c0_i32_1 = arith.constant 0 : i32
    return %c0_i32, %c0_i32_0 : i32, i32
  }
  func.func @transform_21(%arg0: i32) -> (i32, i32, i32) {
    %c0_i32 = arith.constant 0 : i32
    %c0_i32_0 = arith.constant 0 : i32
    %c0_i32_1 = arith.constant 0 : i32
    return %arg0, %c0_i32, %c0_i32_0 : i32, i32, i32
  }
}

module attributes {stable_mosaic.version = 11 : i64} {
  func.func @_cascade_unet_kernel(%arg0: i32, %arg1: memref<1x1x256xf32, #tpu.memory_space<vmem>>, %arg2: memref<1x1x256xf32, #tpu.memory_space<vmem>>, %arg3: memref<9x256xf32, #tpu.memory_space<vmem>>, %arg4: memref<9x64xf32, #tpu.memory_space<vmem>>, %arg5: memref<256x64xf32, #tpu.memory_space<vmem>>, %arg6: memref<64x256xf32, #tpu.memory_space<vmem>>, %arg7: memref<4x1xf32, #tpu.memory_space<vmem>>, %arg8: memref<8x144xbf16, #tpu.memory_space<vmem>>, %arg9: memref<8x1xf32, #tpu.memory_space<vmem>>, %arg10: memref<8x72xbf16, #tpu.memory_space<vmem>>, %arg11: memref<8x1xf32, #tpu.memory_space<vmem>>, %arg12: memref<16x72xbf16, #tpu.memory_space<vmem>>, %arg13: memref<16x1xf32, #tpu.memory_space<vmem>>, %arg14: memref<16x144xbf16, #tpu.memory_space<vmem>>, %arg15: memref<16x1xf32, #tpu.memory_space<vmem>>, %arg16: memref<8x216xbf16, #tpu.memory_space<vmem>>, %arg17: memref<8x1xf32, #tpu.memory_space<vmem>>, %arg18: memref<8x72xbf16, #tpu.memory_space<vmem>>, %arg19: memref<8x1xf32, #tpu.memory_space<vmem>>, %arg20: memref<8x1xf32, #tpu.memory_space<vmem>>, %arg21: memref<1x1xf32, #tpu.memory_space<vmem>>, %arg22: memref<1x1x256xf32, #tpu.memory_space<vmem>>) attributes {dimension_semantics = [#tpu.dimension_semantics<parallel>], iteration_bounds = array<i64: 2>, scalar_prefetch = 0 : i64, scratch_operands = 0 : i64, tpu.core_type = #tpu.core_type<tc>, window_params = [{transform_indices = @transform_0, window_bounds = array<i64: 1, 1, 256>}, {transform_indices = @transform_1, window_bounds = array<i64: 1, 1, 256>}, {pipeline_mode = #tpu.pipeline_mode<synchronous>, transform_indices = @transform_2, window_bounds = array<i64: 9, 256>}, {pipeline_mode = #tpu.pipeline_mode<synchronous>, transform_indices = @transform_3, window_bounds = array<i64: 9, 64>}, {pipeline_mode = #tpu.pipeline_mode<synchronous>, transform_indices = @transform_4, window_bounds = array<i64: 256, 64>}, {pipeline_mode = #tpu.pipeline_mode<synchronous>, transform_indices = @transform_5, window_bounds = array<i64: 64, 256>}, {pipeline_mode = #tpu.pipeline_mode<synchronous>, transform_indices = @transform_6, window_bounds = array<i64: 4, 1>}, {pipeline_mode = #tpu.pipeline_mode<synchronous>, transform_indices = @transform_7, window_bounds = array<i64: 8, 144>}, {pipeline_mode = #tpu.pipeline_mode<synchronous>, transform_indices = @transform_8, window_bounds = array<i64: 8, 1>}, {pipeline_mode = #tpu.pipeline_mode<synchronous>, transform_indices = @transform_9, window_bounds = array<i64: 8, 72>}, {pipeline_mode = #tpu.pipeline_mode<synchronous>, transform_indices = @transform_10, window_bounds = array<i64: 8, 1>}, {pipeline_mode = #tpu.pipeline_mode<synchronous>, transform_indices = @transform_11, window_bounds = array<i64: 16, 72>}, {pipeline_mode = #tpu.pipeline_mode<synchronous>, transform_indices = @transform_12, window_bounds = array<i64: 16, 1>}, {pipeline_mode = #tpu.pipeline_mode<synchronous>, transform_indices = @transform_13, window_bounds = array<i64: 16, 144>}, {pipeline_mode = #tpu.pipeline_mode<synchronous>, transform_indices = @transform_14, window_bounds = array<i64: 16, 1>}, {pipeline_mode = #tpu.pipeline_mode<synchronous>, transform_indices = @transform_15, window_bounds = array<i64: 8, 216>}, {pipeline_mode = #tpu.pipeline_mode<synchronous>, transform_indices = @transform_16, window_bounds = array<i64: 8, 1>}, {pipeline_mode = #tpu.pipeline_mode<synchronous>, transform_indices = @transform_17, window_bounds = array<i64: 8, 72>}, {pipeline_mode = #tpu.pipeline_mode<synchronous>, transform_indices = @transform_18, window_bounds = array<i64: 8, 1>}, {pipeline_mode = #tpu.pipeline_mode<synchronous>, transform_indices = @transform_19, window_bounds = array<i64: 8, 1>}, {pipeline_mode = #tpu.pipeline_mode<synchronous>, transform_indices = @transform_20, window_bounds = array<i64: 1, 1>}, {transform_indices = @transform_21, window_bounds = array<i64: 1, 1, 256>}]} {
    %c0 = arith.constant 0 : index
    %c0_0 = arith.constant 0 : index
    %0 = vector.load %arg3[%c0, %c0_0] : memref<9x256xf32, #tpu.memory_space<vmem>>, vector<9x256xf32>
    %c0_1 = arith.constant 0 : index
    %c0_2 = arith.constant 0 : index
    %1 = vector.load %arg4[%c0_1, %c0_2] : memref<9x64xf32, #tpu.memory_space<vmem>>, vector<9x64xf32>
    %2 = vector.extract_strided_slice %0 {offsets = [0, 0], sizes = [1, 256], strides = [1, 1]} : vector<9x256xf32> to vector<1x256xf32>
    %3 = vector.extract_strided_slice %0 {offsets = [1, 0], sizes = [1, 256], strides = [1, 1]} : vector<9x256xf32> to vector<1x256xf32>
    %4 = vector.extract_strided_slice %0 {offsets = [2, 0], sizes = [1, 256], strides = [1, 1]} : vector<9x256xf32> to vector<1x256xf32>
    %5 = vector.extract_strided_slice %0 {offsets = [3, 0], sizes = [1, 256], strides = [1, 1]} : vector<9x256xf32> to vector<1x256xf32>
    %6 = vector.extract_strided_slice %0 {offsets = [5, 0], sizes = [1, 256], strides = [1, 1]} : vector<9x256xf32> to vector<1x256xf32>
    %7 = vector.extract_strided_slice %0 {offsets = [6, 0], sizes = [1, 256], strides = [1, 1]} : vector<9x256xf32> to vector<1x256xf32>
    %8 = vector.extract_strided_slice %0 {offsets = [7, 0], sizes = [1, 256], strides = [1, 1]} : vector<9x256xf32> to vector<1x256xf32>
    %9 = vector.extract_strided_slice %0 {offsets = [8, 0], sizes = [1, 256], strides = [1, 1]} : vector<9x256xf32> to vector<1x256xf32>
    %10 = vector.extract_strided_slice %1 {offsets = [0, 0], sizes = [1, 64], strides = [1, 1]} : vector<9x64xf32> to vector<1x64xf32>
    %11 = vector.extract_strided_slice %1 {offsets = [1, 0], sizes = [1, 64], strides = [1, 1]} : vector<9x64xf32> to vector<1x64xf32>
    %12 = vector.extract_strided_slice %1 {offsets = [2, 0], sizes = [1, 64], strides = [1, 1]} : vector<9x64xf32> to vector<1x64xf32>
    %13 = vector.extract_strided_slice %1 {offsets = [3, 0], sizes = [1, 64], strides = [1, 1]} : vector<9x64xf32> to vector<1x64xf32>
    %14 = vector.extract_strided_slice %1 {offsets = [5, 0], sizes = [1, 64], strides = [1, 1]} : vector<9x64xf32> to vector<1x64xf32>
    %15 = vector.extract_strided_slice %1 {offsets = [6, 0], sizes = [1, 64], strides = [1, 1]} : vector<9x64xf32> to vector<1x64xf32>
    %16 = vector.extract_strided_slice %1 {offsets = [7, 0], sizes = [1, 64], strides = [1, 1]} : vector<9x64xf32> to vector<1x64xf32>
    %17 = vector.extract_strided_slice %1 {offsets = [8, 0], sizes = [1, 64], strides = [1, 1]} : vector<9x64xf32> to vector<1x64xf32>
    %c0_3 = arith.constant 0 : index
    %c0_4 = arith.constant 0 : index
    %c0_5 = arith.constant 0 : index
    %18 = vector.load %arg1[%c0_3, %c0_4, %c0_5] : memref<1x1x256xf32, #tpu.memory_space<vmem>>, vector<1x1x256xf32>
    %19 = vector.shape_cast %18 : vector<1x1x256xf32> to vector<1x256xf32>
    %c0_6 = arith.constant 0 : index
    %c0_7 = arith.constant 0 : index
    %20 = vector.load %arg7[%c0_6, %c0_7] : memref<4x1xf32, #tpu.memory_space<vmem>>, vector<4x1xf32>
    %21 = vector.broadcast %20 : vector<4x1xf32> to vector<4x256xf32>
    %22 = vector.broadcast %19 : vector<1x256xf32> to vector<4x256xf32>
    %23 = arith.mulf %21, %22 : vector<4x256xf32>
    %24 = math.sin %23 : vector<4x256xf32>
    %25 = math.cos %23 : vector<4x256xf32>
    %cst = arith.constant 0.000000e+00 : f32
    %26 = vector.broadcast %cst : f32 to vector<7x256xf32>
    %27 = tpu.concatenate %19, %24, %25, %26 in 0 : vector<1x256xf32>, vector<4x256xf32>, vector<4x256xf32>, vector<7x256xf32> -> vector<16x256xf32>
    %c17_i32 = arith.constant 17 : i32
    %28 = tpu.dynamic_rotate %27 by %c17_i32 dim 1 : vector<16x256xf32>, i32 -> vector<16x256xf32>
    %29 = vector.broadcast %2 : vector<1x256xf32> to vector<16x256xf32>
    %30 = arith.mulf %28, %29 : vector<16x256xf32>
    %c16_i32 = arith.constant 16 : i32
    %31 = tpu.dynamic_rotate %27 by %c16_i32 dim 1 : vector<16x256xf32>, i32 -> vector<16x256xf32>
    %32 = vector.broadcast %3 : vector<1x256xf32> to vector<16x256xf32>
    %33 = arith.mulf %31, %32 : vector<16x256xf32>
    %c15_i32 = arith.constant 15 : i32
    %34 = tpu.dynamic_rotate %27 by %c15_i32 dim 1 : vector<16x256xf32>, i32 -> vector<16x256xf32>
    %35 = vector.broadcast %4 : vector<1x256xf32> to vector<16x256xf32>
    %36 = arith.mulf %34, %35 : vector<16x256xf32>
    %c1_i32 = arith.constant 1 : i32
    %37 = tpu.dynamic_rotate %27 by %c1_i32 dim 1 : vector<16x256xf32>, i32 -> vector<16x256xf32>
    %38 = vector.broadcast %5 : vector<1x256xf32> to vector<16x256xf32>
    %39 = arith.mulf %37, %38 : vector<16x256xf32>
    %c255_i32 = arith.constant 255 : i32
    %40 = tpu.dynamic_rotate %27 by %c255_i32 dim 1 : vector<16x256xf32>, i32 -> vector<16x256xf32>
    %41 = vector.broadcast %6 : vector<1x256xf32> to vector<16x256xf32>
    %42 = arith.mulf %40, %41 : vector<16x256xf32>
    %c241_i32 = arith.constant 241 : i32
    %43 = tpu.dynamic_rotate %27 by %c241_i32 dim 1 : vector<16x256xf32>, i32 -> vector<16x256xf32>
    %44 = vector.broadcast %7 : vector<1x256xf32> to vector<16x256xf32>
    %45 = arith.mulf %43, %44 : vector<16x256xf32>
    %c240_i32 = arith.constant 240 : i32
    %46 = tpu.dynamic_rotate %27 by %c240_i32 dim 1 : vector<16x256xf32>, i32 -> vector<16x256xf32>
    %47 = vector.broadcast %8 : vector<1x256xf32> to vector<16x256xf32>
    %48 = arith.mulf %46, %47 : vector<16x256xf32>
    %c239_i32 = arith.constant 239 : i32
    %49 = tpu.dynamic_rotate %27 by %c239_i32 dim 1 : vector<16x256xf32>, i32 -> vector<16x256xf32>
    %50 = vector.broadcast %9 : vector<1x256xf32> to vector<16x256xf32>
    %51 = arith.mulf %49, %50 : vector<16x256xf32>
    %52 = tpu.concatenate %30, %33, %36, %39, %27, %42, %45, %48, %51 in 0 : vector<16x256xf32>, vector<16x256xf32>, vector<16x256xf32>, vector<16x256xf32>, vector<16x256xf32>, vector<16x256xf32>, vector<16x256xf32>, vector<16x256xf32>, vector<16x256xf32> -> vector<144x256xf32>
    %53 = arith.truncf %52 : vector<144x256xf32> to vector<144x256xbf16>
    %c0_8 = arith.constant 0 : index
    %c0_9 = arith.constant 0 : index
    %54 = vector.load %arg8[%c0_8, %c0_9] : memref<8x144xbf16, #tpu.memory_space<vmem>>, vector<8x144xbf16>
    %cst_10 = arith.constant dense<0.000000e+00> : vector<8x256xf32>
    %55 = tpu.matmul %54, %53, %cst_10 {dimension_numbers = #tpu.dot_dimension_numbers<[1], [0], [0], [1], [0, 0, 1, 1], [], []>} : vector<8x144xbf16>, vector<144x256xbf16>, vector<8x256xf32> -> vector<8x256xf32>
    %c0_11 = arith.constant 0 : index
    %c0_12 = arith.constant 0 : index
    %56 = vector.load %arg9[%c0_11, %c0_12] : memref<8x1xf32, #tpu.memory_space<vmem>>, vector<8x1xf32>
    %57 = vector.broadcast %56 : vector<8x1xf32> to vector<8x256xf32>
    %58 = arith.addf %55, %57 : vector<8x256xf32>
    %cst_13 = arith.constant 0.000000e+00 : f32
    %59 = vector.broadcast %cst_13 : f32 to vector<8x256xf32>
    %60 = arith.maximumf %58, %59 : vector<8x256xf32>
    %c17_i32_14 = arith.constant 17 : i32
    %61 = tpu.dynamic_rotate %60 by %c17_i32_14 dim 1 : vector<8x256xf32>, i32 -> vector<8x256xf32>
    %62 = vector.broadcast %2 : vector<1x256xf32> to vector<8x256xf32>
    %63 = arith.mulf %61, %62 : vector<8x256xf32>
    %c16_i32_15 = arith.constant 16 : i32
    %64 = tpu.dynamic_rotate %60 by %c16_i32_15 dim 1 : vector<8x256xf32>, i32 -> vector<8x256xf32>
    %65 = vector.broadcast %3 : vector<1x256xf32> to vector<8x256xf32>
    %66 = arith.mulf %64, %65 : vector<8x256xf32>
    %c15_i32_16 = arith.constant 15 : i32
    %67 = tpu.dynamic_rotate %60 by %c15_i32_16 dim 1 : vector<8x256xf32>, i32 -> vector<8x256xf32>
    %68 = vector.broadcast %4 : vector<1x256xf32> to vector<8x256xf32>
    %69 = arith.mulf %67, %68 : vector<8x256xf32>
    %c1_i32_17 = arith.constant 1 : i32
    %70 = tpu.dynamic_rotate %60 by %c1_i32_17 dim 1 : vector<8x256xf32>, i32 -> vector<8x256xf32>
    %71 = vector.broadcast %5 : vector<1x256xf32> to vector<8x256xf32>
    %72 = arith.mulf %70, %71 : vector<8x256xf32>
    %c255_i32_18 = arith.constant 255 : i32
    %73 = tpu.dynamic_rotate %60 by %c255_i32_18 dim 1 : vector<8x256xf32>, i32 -> vector<8x256xf32>
    %74 = vector.broadcast %6 : vector<1x256xf32> to vector<8x256xf32>
    %75 = arith.mulf %73, %74 : vector<8x256xf32>
    %c241_i32_19 = arith.constant 241 : i32
    %76 = tpu.dynamic_rotate %60 by %c241_i32_19 dim 1 : vector<8x256xf32>, i32 -> vector<8x256xf32>
    %77 = vector.broadcast %7 : vector<1x256xf32> to vector<8x256xf32>
    %78 = arith.mulf %76, %77 : vector<8x256xf32>
    %c240_i32_20 = arith.constant 240 : i32
    %79 = tpu.dynamic_rotate %60 by %c240_i32_20 dim 1 : vector<8x256xf32>, i32 -> vector<8x256xf32>
    %80 = vector.broadcast %8 : vector<1x256xf32> to vector<8x256xf32>
    %81 = arith.mulf %79, %80 : vector<8x256xf32>
    %c239_i32_21 = arith.constant 239 : i32
    %82 = tpu.dynamic_rotate %60 by %c239_i32_21 dim 1 : vector<8x256xf32>, i32 -> vector<8x256xf32>
    %83 = vector.broadcast %9 : vector<1x256xf32> to vector<8x256xf32>
    %84 = arith.mulf %82, %83 : vector<8x256xf32>
    %85 = tpu.concatenate %63, %66, %69, %72, %60, %75, %78, %81, %84 in 0 : vector<8x256xf32>, vector<8x256xf32>, vector<8x256xf32>, vector<8x256xf32>, vector<8x256xf32>, vector<8x256xf32>, vector<8x256xf32>, vector<8x256xf32>, vector<8x256xf32> -> vector<72x256xf32>
    %86 = arith.truncf %85 : vector<72x256xf32> to vector<72x256xbf16>
    %c0_22 = arith.constant 0 : index
    %c0_23 = arith.constant 0 : index
    %87 = vector.load %arg10[%c0_22, %c0_23] : memref<8x72xbf16, #tpu.memory_space<vmem>>, vector<8x72xbf16>
    %cst_24 = arith.constant dense<0.000000e+00> : vector<8x256xf32>
    %88 = tpu.matmul %87, %86, %cst_24 {dimension_numbers = #tpu.dot_dimension_numbers<[1], [0], [0], [1], [0, 0, 1, 1], [], []>} : vector<8x72xbf16>, vector<72x256xbf16>, vector<8x256xf32> -> vector<8x256xf32>
    %c0_25 = arith.constant 0 : index
    %c0_26 = arith.constant 0 : index
    %89 = vector.load %arg11[%c0_25, %c0_26] : memref<8x1xf32, #tpu.memory_space<vmem>>, vector<8x1xf32>
    %90 = vector.broadcast %89 : vector<8x1xf32> to vector<8x256xf32>
    %91 = arith.addf %88, %90 : vector<8x256xf32>
    %cst_27 = arith.constant 0.000000e+00 : f32
    %92 = vector.broadcast %cst_27 : f32 to vector<8x256xf32>
    %93 = arith.maximumf %91, %92 : vector<8x256xf32>
    %c0_28 = arith.constant 0 : index
    %c0_29 = arith.constant 0 : index
    %94 = vector.load %arg5[%c0_28, %c0_29] : memref<256x64xf32, #tpu.memory_space<vmem>>, vector<256x64xf32>
    %cst_30 = arith.constant dense<0.000000e+00> : vector<8x64xf32>
    %95 = tpu.matmul %93, %94, %cst_30 {dimension_numbers = #tpu.dot_dimension_numbers<[1], [0], [0], [1], [0, 0, 1, 1], [], []>} : vector<8x256xf32>, vector<256x64xf32>, vector<8x64xf32> -> vector<8x64xf32>
    %c9_i32 = arith.constant 9 : i32
    %96 = tpu.dynamic_rotate %95 by %c9_i32 dim 1 : vector<8x64xf32>, i32 -> vector<8x64xf32>
    %97 = vector.broadcast %10 : vector<1x64xf32> to vector<8x64xf32>
    %98 = arith.mulf %96, %97 : vector<8x64xf32>
    %c8_i32 = arith.constant 8 : i32
    %99 = tpu.dynamic_rotate %95 by %c8_i32 dim 1 : vector<8x64xf32>, i32 -> vector<8x64xf32>
    %100 = vector.broadcast %11 : vector<1x64xf32> to vector<8x64xf32>
    %101 = arith.mulf %99, %100 : vector<8x64xf32>
    %c7_i32 = arith.constant 7 : i32
    %102 = tpu.dynamic_rotate %95 by %c7_i32 dim 1 : vector<8x64xf32>, i32 -> vector<8x64xf32>
    %103 = vector.broadcast %12 : vector<1x64xf32> to vector<8x64xf32>
    %104 = arith.mulf %102, %103 : vector<8x64xf32>
    %c1_i32_31 = arith.constant 1 : i32
    %105 = tpu.dynamic_rotate %95 by %c1_i32_31 dim 1 : vector<8x64xf32>, i32 -> vector<8x64xf32>
    %106 = vector.broadcast %13 : vector<1x64xf32> to vector<8x64xf32>
    %107 = arith.mulf %105, %106 : vector<8x64xf32>
    %c63_i32 = arith.constant 63 : i32
    %108 = tpu.dynamic_rotate %95 by %c63_i32 dim 1 : vector<8x64xf32>, i32 -> vector<8x64xf32>
    %109 = vector.broadcast %14 : vector<1x64xf32> to vector<8x64xf32>
    %110 = arith.mulf %108, %109 : vector<8x64xf32>
    %c57_i32 = arith.constant 57 : i32
    %111 = tpu.dynamic_rotate %95 by %c57_i32 dim 1 : vector<8x64xf32>, i32 -> vector<8x64xf32>
    %112 = vector.broadcast %15 : vector<1x64xf32> to vector<8x64xf32>
    %113 = arith.mulf %111, %112 : vector<8x64xf32>
    %c56_i32 = arith.constant 56 : i32
    %114 = tpu.dynamic_rotate %95 by %c56_i32 dim 1 : vector<8x64xf32>, i32 -> vector<8x64xf32>
    %115 = vector.broadcast %16 : vector<1x64xf32> to vector<8x64xf32>
    %116 = arith.mulf %114, %115 : vector<8x64xf32>
    %c55_i32 = arith.constant 55 : i32
    %117 = tpu.dynamic_rotate %95 by %c55_i32 dim 1 : vector<8x64xf32>, i32 -> vector<8x64xf32>
    %118 = vector.broadcast %17 : vector<1x64xf32> to vector<8x64xf32>
    %119 = arith.mulf %117, %118 : vector<8x64xf32>
    %120 = tpu.concatenate %98, %101, %104, %107, %95, %110, %113, %116, %119 in 0 : vector<8x64xf32>, vector<8x64xf32>, vector<8x64xf32>, vector<8x64xf32>, vector<8x64xf32>, vector<8x64xf32>, vector<8x64xf32>, vector<8x64xf32>, vector<8x64xf32> -> vector<72x64xf32>
    %121 = arith.truncf %120 : vector<72x64xf32> to vector<72x64xbf16>
    %c0_32 = arith.constant 0 : index
    %c0_33 = arith.constant 0 : index
    %122 = vector.load %arg12[%c0_32, %c0_33] : memref<16x72xbf16, #tpu.memory_space<vmem>>, vector<16x72xbf16>
    %cst_34 = arith.constant dense<0.000000e+00> : vector<16x64xf32>
    %123 = tpu.matmul %122, %121, %cst_34 {dimension_numbers = #tpu.dot_dimension_numbers<[1], [0], [0], [1], [0, 0, 1, 1], [], []>} : vector<16x72xbf16>, vector<72x64xbf16>, vector<16x64xf32> -> vector<16x64xf32>
    %c0_35 = arith.constant 0 : index
    %c0_36 = arith.constant 0 : index
    %124 = vector.load %arg13[%c0_35, %c0_36] : memref<16x1xf32, #tpu.memory_space<vmem>>, vector<16x1xf32>
    %125 = vector.broadcast %124 : vector<16x1xf32> to vector<16x64xf32>
    %126 = arith.addf %123, %125 : vector<16x64xf32>
    %cst_37 = arith.constant 0.000000e+00 : f32
    %127 = vector.broadcast %cst_37 : f32 to vector<16x64xf32>
    %128 = arith.maximumf %126, %127 : vector<16x64xf32>
    %c9_i32_38 = arith.constant 9 : i32
    %129 = tpu.dynamic_rotate %128 by %c9_i32_38 dim 1 : vector<16x64xf32>, i32 -> vector<16x64xf32>
    %130 = vector.broadcast %10 : vector<1x64xf32> to vector<16x64xf32>
    %131 = arith.mulf %129, %130 : vector<16x64xf32>
    %c8_i32_39 = arith.constant 8 : i32
    %132 = tpu.dynamic_rotate %128 by %c8_i32_39 dim 1 : vector<16x64xf32>, i32 -> vector<16x64xf32>
    %133 = vector.broadcast %11 : vector<1x64xf32> to vector<16x64xf32>
    %134 = arith.mulf %132, %133 : vector<16x64xf32>
    %c7_i32_40 = arith.constant 7 : i32
    %135 = tpu.dynamic_rotate %128 by %c7_i32_40 dim 1 : vector<16x64xf32>, i32 -> vector<16x64xf32>
    %136 = vector.broadcast %12 : vector<1x64xf32> to vector<16x64xf32>
    %137 = arith.mulf %135, %136 : vector<16x64xf32>
    %c1_i32_41 = arith.constant 1 : i32
    %138 = tpu.dynamic_rotate %128 by %c1_i32_41 dim 1 : vector<16x64xf32>, i32 -> vector<16x64xf32>
    %139 = vector.broadcast %13 : vector<1x64xf32> to vector<16x64xf32>
    %140 = arith.mulf %138, %139 : vector<16x64xf32>
    %c63_i32_42 = arith.constant 63 : i32
    %141 = tpu.dynamic_rotate %128 by %c63_i32_42 dim 1 : vector<16x64xf32>, i32 -> vector<16x64xf32>
    %142 = vector.broadcast %14 : vector<1x64xf32> to vector<16x64xf32>
    %143 = arith.mulf %141, %142 : vector<16x64xf32>
    %c57_i32_43 = arith.constant 57 : i32
    %144 = tpu.dynamic_rotate %128 by %c57_i32_43 dim 1 : vector<16x64xf32>, i32 -> vector<16x64xf32>
    %145 = vector.broadcast %15 : vector<1x64xf32> to vector<16x64xf32>
    %146 = arith.mulf %144, %145 : vector<16x64xf32>
    %c56_i32_44 = arith.constant 56 : i32
    %147 = tpu.dynamic_rotate %128 by %c56_i32_44 dim 1 : vector<16x64xf32>, i32 -> vector<16x64xf32>
    %148 = vector.broadcast %16 : vector<1x64xf32> to vector<16x64xf32>
    %149 = arith.mulf %147, %148 : vector<16x64xf32>
    %c55_i32_45 = arith.constant 55 : i32
    %150 = tpu.dynamic_rotate %128 by %c55_i32_45 dim 1 : vector<16x64xf32>, i32 -> vector<16x64xf32>
    %151 = vector.broadcast %17 : vector<1x64xf32> to vector<16x64xf32>
    %152 = arith.mulf %150, %151 : vector<16x64xf32>
    %153 = tpu.concatenate %131, %134, %137, %140, %128, %143, %146, %149, %152 in 0 : vector<16x64xf32>, vector<16x64xf32>, vector<16x64xf32>, vector<16x64xf32>, vector<16x64xf32>, vector<16x64xf32>, vector<16x64xf32>, vector<16x64xf32>, vector<16x64xf32> -> vector<144x64xf32>
    %154 = arith.truncf %153 : vector<144x64xf32> to vector<144x64xbf16>
    %c0_46 = arith.constant 0 : index
    %c0_47 = arith.constant 0 : index
    %155 = vector.load %arg14[%c0_46, %c0_47] : memref<16x144xbf16, #tpu.memory_space<vmem>>, vector<16x144xbf16>
    %cst_48 = arith.constant dense<0.000000e+00> : vector<16x64xf32>
    %156 = tpu.matmul %155, %154, %cst_48 {dimension_numbers = #tpu.dot_dimension_numbers<[1], [0], [0], [1], [0, 0, 1, 1], [], []>} : vector<16x144xbf16>, vector<144x64xbf16>, vector<16x64xf32> -> vector<16x64xf32>
    %c0_49 = arith.constant 0 : index
    %c0_50 = arith.constant 0 : index
    %157 = vector.load %arg15[%c0_49, %c0_50] : memref<16x1xf32, #tpu.memory_space<vmem>>, vector<16x1xf32>
    %158 = vector.broadcast %157 : vector<16x1xf32> to vector<16x64xf32>
    %159 = arith.addf %156, %158 : vector<16x64xf32>
    %cst_51 = arith.constant 0.000000e+00 : f32
    %160 = vector.broadcast %cst_51 : f32 to vector<16x64xf32>
    %161 = arith.maximumf %159, %160 : vector<16x64xf32>
    %c0_52 = arith.constant 0 : index
    %c0_53 = arith.constant 0 : index
    %162 = vector.load %arg6[%c0_52, %c0_53] : memref<64x256xf32, #tpu.memory_space<vmem>>, vector<64x256xf32>
    %cst_54 = arith.constant dense<0.000000e+00> : vector<16x256xf32>
    %163 = tpu.matmul %161, %162, %cst_54 {dimension_numbers = #tpu.dot_dimension_numbers<[1], [0], [0], [1], [0, 0, 1, 1], [], []>} : vector<16x64xf32>, vector<64x256xf32>, vector<16x256xf32> -> vector<16x256xf32>
    %c17_i32_55 = arith.constant 17 : i32
    %164 = tpu.dynamic_rotate %163 by %c17_i32_55 dim 1 : vector<16x256xf32>, i32 -> vector<16x256xf32>
    %165 = vector.broadcast %2 : vector<1x256xf32> to vector<16x256xf32>
    %166 = arith.mulf %164, %165 : vector<16x256xf32>
    %c17_i32_56 = arith.constant 17 : i32
    %167 = tpu.dynamic_rotate %93 by %c17_i32_56 dim 1 : vector<8x256xf32>, i32 -> vector<8x256xf32>
    %168 = vector.broadcast %2 : vector<1x256xf32> to vector<8x256xf32>
    %169 = arith.mulf %167, %168 : vector<8x256xf32>
    %c16_i32_57 = arith.constant 16 : i32
    %170 = tpu.dynamic_rotate %163 by %c16_i32_57 dim 1 : vector<16x256xf32>, i32 -> vector<16x256xf32>
    %171 = vector.broadcast %3 : vector<1x256xf32> to vector<16x256xf32>
    %172 = arith.mulf %170, %171 : vector<16x256xf32>
    %c16_i32_58 = arith.constant 16 : i32
    %173 = tpu.dynamic_rotate %93 by %c16_i32_58 dim 1 : vector<8x256xf32>, i32 -> vector<8x256xf32>
    %174 = vector.broadcast %3 : vector<1x256xf32> to vector<8x256xf32>
    %175 = arith.mulf %173, %174 : vector<8x256xf32>
    %c15_i32_59 = arith.constant 15 : i32
    %176 = tpu.dynamic_rotate %163 by %c15_i32_59 dim 1 : vector<16x256xf32>, i32 -> vector<16x256xf32>
    %177 = vector.broadcast %4 : vector<1x256xf32> to vector<16x256xf32>
    %178 = arith.mulf %176, %177 : vector<16x256xf32>
    %c15_i32_60 = arith.constant 15 : i32
    %179 = tpu.dynamic_rotate %93 by %c15_i32_60 dim 1 : vector<8x256xf32>, i32 -> vector<8x256xf32>
    %180 = vector.broadcast %4 : vector<1x256xf32> to vector<8x256xf32>
    %181 = arith.mulf %179, %180 : vector<8x256xf32>
    %c1_i32_61 = arith.constant 1 : i32
    %182 = tpu.dynamic_rotate %163 by %c1_i32_61 dim 1 : vector<16x256xf32>, i32 -> vector<16x256xf32>
    %183 = vector.broadcast %5 : vector<1x256xf32> to vector<16x256xf32>
    %184 = arith.mulf %182, %183 : vector<16x256xf32>
    %c1_i32_62 = arith.constant 1 : i32
    %185 = tpu.dynamic_rotate %93 by %c1_i32_62 dim 1 : vector<8x256xf32>, i32 -> vector<8x256xf32>
    %186 = vector.broadcast %5 : vector<1x256xf32> to vector<8x256xf32>
    %187 = arith.mulf %185, %186 : vector<8x256xf32>
    %c255_i32_63 = arith.constant 255 : i32
    %188 = tpu.dynamic_rotate %163 by %c255_i32_63 dim 1 : vector<16x256xf32>, i32 -> vector<16x256xf32>
    %189 = vector.broadcast %6 : vector<1x256xf32> to vector<16x256xf32>
    %190 = arith.mulf %188, %189 : vector<16x256xf32>
    %c255_i32_64 = arith.constant 255 : i32
    %191 = tpu.dynamic_rotate %93 by %c255_i32_64 dim 1 : vector<8x256xf32>, i32 -> vector<8x256xf32>
    %192 = vector.broadcast %6 : vector<1x256xf32> to vector<8x256xf32>
    %193 = arith.mulf %191, %192 : vector<8x256xf32>
    %c241_i32_65 = arith.constant 241 : i32
    %194 = tpu.dynamic_rotate %163 by %c241_i32_65 dim 1 : vector<16x256xf32>, i32 -> vector<16x256xf32>
    %195 = vector.broadcast %7 : vector<1x256xf32> to vector<16x256xf32>
    %196 = arith.mulf %194, %195 : vector<16x256xf32>
    %c241_i32_66 = arith.constant 241 : i32
    %197 = tpu.dynamic_rotate %93 by %c241_i32_66 dim 1 : vector<8x256xf32>, i32 -> vector<8x256xf32>
    %198 = vector.broadcast %7 : vector<1x256xf32> to vector<8x256xf32>
    %199 = arith.mulf %197, %198 : vector<8x256xf32>
    %c240_i32_67 = arith.constant 240 : i32
    %200 = tpu.dynamic_rotate %163 by %c240_i32_67 dim 1 : vector<16x256xf32>, i32 -> vector<16x256xf32>
    %201 = vector.broadcast %8 : vector<1x256xf32> to vector<16x256xf32>
    %202 = arith.mulf %200, %201 : vector<16x256xf32>
    %c240_i32_68 = arith.constant 240 : i32
    %203 = tpu.dynamic_rotate %93 by %c240_i32_68 dim 1 : vector<8x256xf32>, i32 -> vector<8x256xf32>
    %204 = vector.broadcast %8 : vector<1x256xf32> to vector<8x256xf32>
    %205 = arith.mulf %203, %204 : vector<8x256xf32>
    %c239_i32_69 = arith.constant 239 : i32
    %206 = tpu.dynamic_rotate %163 by %c239_i32_69 dim 1 : vector<16x256xf32>, i32 -> vector<16x256xf32>
    %207 = vector.broadcast %9 : vector<1x256xf32> to vector<16x256xf32>
    %208 = arith.mulf %206, %207 : vector<16x256xf32>
    %c239_i32_70 = arith.constant 239 : i32
    %209 = tpu.dynamic_rotate %93 by %c239_i32_70 dim 1 : vector<8x256xf32>, i32 -> vector<8x256xf32>
    %210 = vector.broadcast %9 : vector<1x256xf32> to vector<8x256xf32>
    %211 = arith.mulf %209, %210 : vector<8x256xf32>
    %212 = tpu.concatenate %166, %169, %172, %175, %178, %181, %184, %187, %163, %93, %190, %193, %196, %199, %202, %205 in 0 : vector<16x256xf32>, vector<8x256xf32>, vector<16x256xf32>, vector<8x256xf32>, vector<16x256xf32>, vector<8x256xf32>, vector<16x256xf32>, vector<8x256xf32>, vector<16x256xf32>, vector<8x256xf32>, vector<16x256xf32>, vector<8x256xf32>, vector<16x256xf32>, vector<8x256xf32>, vector<16x256xf32>, vector<8x256xf32> -> vector<192x256xf32>
    %213 = tpu.concatenate %208, %211 in 0 : vector<16x256xf32>, vector<8x256xf32> -> vector<24x256xf32>
    %214 = tpu.concatenate %212, %213 in 0 : vector<192x256xf32>, vector<24x256xf32> -> vector<216x256xf32>
    %215 = arith.truncf %214 : vector<216x256xf32> to vector<216x256xbf16>
    %c0_71 = arith.constant 0 : index
    %c0_72 = arith.constant 0 : index
    %216 = vector.load %arg16[%c0_71, %c0_72] : memref<8x216xbf16, #tpu.memory_space<vmem>>, vector<8x216xbf16>
    %cst_73 = arith.constant dense<0.000000e+00> : vector<8x256xf32>
    %217 = tpu.matmul %216, %215, %cst_73 {dimension_numbers = #tpu.dot_dimension_numbers<[1], [0], [0], [1], [0, 0, 1, 1], [], []>} : vector<8x216xbf16>, vector<216x256xbf16>, vector<8x256xf32> -> vector<8x256xf32>
    %c0_74 = arith.constant 0 : index
    %c0_75 = arith.constant 0 : index
    %218 = vector.load %arg17[%c0_74, %c0_75] : memref<8x1xf32, #tpu.memory_space<vmem>>, vector<8x1xf32>
    %219 = vector.broadcast %218 : vector<8x1xf32> to vector<8x256xf32>
    %220 = arith.addf %217, %219 : vector<8x256xf32>
    %cst_76 = arith.constant 0.000000e+00 : f32
    %221 = vector.broadcast %cst_76 : f32 to vector<8x256xf32>
    %222 = arith.maximumf %220, %221 : vector<8x256xf32>
    %c17_i32_77 = arith.constant 17 : i32
    %223 = tpu.dynamic_rotate %222 by %c17_i32_77 dim 1 : vector<8x256xf32>, i32 -> vector<8x256xf32>
    %224 = vector.broadcast %2 : vector<1x256xf32> to vector<8x256xf32>
    %225 = arith.mulf %223, %224 : vector<8x256xf32>
    %c16_i32_78 = arith.constant 16 : i32
    %226 = tpu.dynamic_rotate %222 by %c16_i32_78 dim 1 : vector<8x256xf32>, i32 -> vector<8x256xf32>
    %227 = vector.broadcast %3 : vector<1x256xf32> to vector<8x256xf32>
    %228 = arith.mulf %226, %227 : vector<8x256xf32>
    %c15_i32_79 = arith.constant 15 : i32
    %229 = tpu.dynamic_rotate %222 by %c15_i32_79 dim 1 : vector<8x256xf32>, i32 -> vector<8x256xf32>
    %230 = vector.broadcast %4 : vector<1x256xf32> to vector<8x256xf32>
    %231 = arith.mulf %229, %230 : vector<8x256xf32>
    %c1_i32_80 = arith.constant 1 : i32
    %232 = tpu.dynamic_rotate %222 by %c1_i32_80 dim 1 : vector<8x256xf32>, i32 -> vector<8x256xf32>
    %233 = vector.broadcast %5 : vector<1x256xf32> to vector<8x256xf32>
    %234 = arith.mulf %232, %233 : vector<8x256xf32>
    %c255_i32_81 = arith.constant 255 : i32
    %235 = tpu.dynamic_rotate %222 by %c255_i32_81 dim 1 : vector<8x256xf32>, i32 -> vector<8x256xf32>
    %236 = vector.broadcast %6 : vector<1x256xf32> to vector<8x256xf32>
    %237 = arith.mulf %235, %236 : vector<8x256xf32>
    %c241_i32_82 = arith.constant 241 : i32
    %238 = tpu.dynamic_rotate %222 by %c241_i32_82 dim 1 : vector<8x256xf32>, i32 -> vector<8x256xf32>
    %239 = vector.broadcast %7 : vector<1x256xf32> to vector<8x256xf32>
    %240 = arith.mulf %238, %239 : vector<8x256xf32>
    %c240_i32_83 = arith.constant 240 : i32
    %241 = tpu.dynamic_rotate %222 by %c240_i32_83 dim 1 : vector<8x256xf32>, i32 -> vector<8x256xf32>
    %242 = vector.broadcast %8 : vector<1x256xf32> to vector<8x256xf32>
    %243 = arith.mulf %241, %242 : vector<8x256xf32>
    %c239_i32_84 = arith.constant 239 : i32
    %244 = tpu.dynamic_rotate %222 by %c239_i32_84 dim 1 : vector<8x256xf32>, i32 -> vector<8x256xf32>
    %245 = vector.broadcast %9 : vector<1x256xf32> to vector<8x256xf32>
    %246 = arith.mulf %244, %245 : vector<8x256xf32>
    %247 = tpu.concatenate %225, %228, %231, %234, %222, %237, %240, %243, %246 in 0 : vector<8x256xf32>, vector<8x256xf32>, vector<8x256xf32>, vector<8x256xf32>, vector<8x256xf32>, vector<8x256xf32>, vector<8x256xf32>, vector<8x256xf32>, vector<8x256xf32> -> vector<72x256xf32>
    %248 = arith.truncf %247 : vector<72x256xf32> to vector<72x256xbf16>
    %c0_85 = arith.constant 0 : index
    %c0_86 = arith.constant 0 : index
    %249 = vector.load %arg18[%c0_85, %c0_86] : memref<8x72xbf16, #tpu.memory_space<vmem>>, vector<8x72xbf16>
    %cst_87 = arith.constant dense<0.000000e+00> : vector<8x256xf32>
    %250 = tpu.matmul %249, %248, %cst_87 {dimension_numbers = #tpu.dot_dimension_numbers<[1], [0], [0], [1], [0, 0, 1, 1], [], []>} : vector<8x72xbf16>, vector<72x256xbf16>, vector<8x256xf32> -> vector<8x256xf32>
    %c0_88 = arith.constant 0 : index
    %c0_89 = arith.constant 0 : index
    %251 = vector.load %arg19[%c0_88, %c0_89] : memref<8x1xf32, #tpu.memory_space<vmem>>, vector<8x1xf32>
    %252 = vector.broadcast %251 : vector<8x1xf32> to vector<8x256xf32>
    %253 = arith.addf %250, %252 : vector<8x256xf32>
    %cst_90 = arith.constant 0.000000e+00 : f32
    %254 = vector.broadcast %cst_90 : f32 to vector<8x256xf32>
    %255 = arith.maximumf %253, %254 : vector<8x256xf32>
    %c0_91 = arith.constant 0 : index
    %c0_92 = arith.constant 0 : index
    %256 = vector.load %arg20[%c0_91, %c0_92] : memref<8x1xf32, #tpu.memory_space<vmem>>, vector<8x1xf32>
    %257 = vector.broadcast %256 : vector<8x1xf32> to vector<8x256xf32>
    %258 = arith.mulf %255, %257 : vector<8x256xf32>
    %cst_93 = arith.constant dense<0.000000e+00> : vector<256xf32>
    %259 = vector.multi_reduction <add>, %258, %cst_93 [0] : vector<8x256xf32> to vector<256xf32>
    %260 = vector.shape_cast %259 : vector<256xf32> to vector<1x256xf32>
    %c0_94 = arith.constant 0 : index
    %c0_95 = arith.constant 0 : index
    %261 = vector.load %arg21[%c0_94, %c0_95] : memref<1x1xf32, #tpu.memory_space<vmem>>, vector<1x1xf32>
    %262 = vector.broadcast %261 : vector<1x1xf32> to vector<1x256xf32>
    %263 = arith.addf %260, %262 : vector<1x256xf32>
    %c0_96 = arith.constant 0 : index
    %c0_97 = arith.constant 0 : index
    %c0_98 = arith.constant 0 : index
    %264 = vector.load %arg2[%c0_96, %c0_97, %c0_98] : memref<1x1x256xf32, #tpu.memory_space<vmem>>, vector<1x1x256xf32>
    %265 = vector.shape_cast %264 : vector<1x1x256xf32> to vector<1x256xf32>
    %266 = arith.mulf %265, %19 : vector<1x256xf32>
    %cst_99 = arith.constant 1.000000e+00 : f32
    %267 = vector.broadcast %cst_99 : f32 to vector<1x256xf32>
    %268 = arith.subf %267, %265 : vector<1x256xf32>
    %269 = arith.mulf %268, %263 : vector<1x256xf32>
    %270 = arith.addf %266, %269 : vector<1x256xf32>
    %c0_100 = arith.constant 0 : index
    %c0_101 = arith.constant 0 : index
    %c0_102 = arith.constant 0 : index
    %271 = vector.load %arg22[%c0_100, %c0_101, %c0_102] : memref<1x1x256xf32, #tpu.memory_space<vmem>>, vector<1x1x256xf32>
    %272 = vector.shape_cast %271 : vector<1x1x256xf32> to vector<1x256xf32>
    %273 = vector.shape_cast %270 : vector<1x256xf32> to vector<1x1x256xf32>
    tpu.vector_store %arg22[%c0_100, %c0_101, %c0_102], %273 {strides = array<i32>} : memref<1x1x256xf32, #tpu.memory_space<vmem>>, vector<1x1x256xf32>,
    return
  }
  func.func @transform_0(%arg0: i32) -> (i32, i32, i32) {
    %c0_i32 = arith.constant 0 : i32
    %c0_i32_0 = arith.constant 0 : i32
    %c0_i32_1 = arith.constant 0 : i32
    return %arg0, %c0_i32, %c0_i32_0 : i32, i32, i32
  }
  func.func @transform_1(%arg0: i32) -> (i32, i32, i32) {
    %c0_i32 = arith.constant 0 : i32
    %c0_i32_0 = arith.constant 0 : i32
    %c0_i32_1 = arith.constant 0 : i32
    return %arg0, %c0_i32, %c0_i32_0 : i32, i32, i32
  }
  func.func @transform_2(%arg0: i32) -> (i32, i32) {
    %c0_i32 = arith.constant 0 : i32
    %c0_i32_0 = arith.constant 0 : i32
    %c0_i32_1 = arith.constant 0 : i32
    return %c0_i32, %c0_i32_0 : i32, i32
  }
  func.func @transform_3(%arg0: i32) -> (i32, i32) {
    %c0_i32 = arith.constant 0 : i32
    %c0_i32_0 = arith.constant 0 : i32
    %c0_i32_1 = arith.constant 0 : i32
    return %c0_i32, %c0_i32_0 : i32, i32
  }
  func.func @transform_4(%arg0: i32) -> (i32, i32) {
    %c0_i32 = arith.constant 0 : i32
    %c0_i32_0 = arith.constant 0 : i32
    %c0_i32_1 = arith.constant 0 : i32
    return %c0_i32, %c0_i32_0 : i32, i32
  }
  func.func @transform_5(%arg0: i32) -> (i32, i32) {
    %c0_i32 = arith.constant 0 : i32
    %c0_i32_0 = arith.constant 0 : i32
    %c0_i32_1 = arith.constant 0 : i32
    return %c0_i32, %c0_i32_0 : i32, i32
  }
  func.func @transform_6(%arg0: i32) -> (i32, i32) {
    %c0_i32 = arith.constant 0 : i32
    %c0_i32_0 = arith.constant 0 : i32
    %c0_i32_1 = arith.constant 0 : i32
    return %c0_i32, %c0_i32_0 : i32, i32
  }
  func.func @transform_7(%arg0: i32) -> (i32, i32) {
    %c0_i32 = arith.constant 0 : i32
    %c0_i32_0 = arith.constant 0 : i32
    %c0_i32_1 = arith.constant 0 : i32
    return %c0_i32, %c0_i32_0 : i32, i32
  }
  func.func @transform_8(%arg0: i32) -> (i32, i32) {
    %c0_i32 = arith.constant 0 : i32
    %c0_i32_0 = arith.constant 0 : i32
    %c0_i32_1 = arith.constant 0 : i32
    return %c0_i32, %c0_i32_0 : i32, i32
  }
  func.func @transform_9(%arg0: i32) -> (i32, i32) {
    %c0_i32 = arith.constant 0 : i32
    %c0_i32_0 = arith.constant 0 : i32
    %c0_i32_1 = arith.constant 0 : i32
    return %c0_i32, %c0_i32_0 : i32, i32
  }
  func.func @transform_10(%arg0: i32) -> (i32, i32) {
    %c0_i32 = arith.constant 0 : i32
    %c0_i32_0 = arith.constant 0 : i32
    %c0_i32_1 = arith.constant 0 : i32
    return %c0_i32, %c0_i32_0 : i32, i32
  }
  func.func @transform_11(%arg0: i32) -> (i32, i32) {
    %c0_i32 = arith.constant 0 : i32
    %c0_i32_0 = arith.constant 0 : i32
    %c0_i32_1 = arith.constant 0 : i32
    return %c0_i32, %c0_i32_0 : i32, i32
  }
  func.func @transform_12(%arg0: i32) -> (i32, i32) {
    %c0_i32 = arith.constant 0 : i32
    %c0_i32_0 = arith.constant 0 : i32
    %c0_i32_1 = arith.constant 0 : i32
    return %c0_i32, %c0_i32_0 : i32, i32
  }
  func.func @transform_13(%arg0: i32) -> (i32, i32) {
    %c0_i32 = arith.constant 0 : i32
    %c0_i32_0 = arith.constant 0 : i32
    %c0_i32_1 = arith.constant 0 : i32
    return %c0_i32, %c0_i32_0 : i32, i32
  }
  func.func @transform_14(%arg0: i32) -> (i32, i32) {
    %c0_i32 = arith.constant 0 : i32
    %c0_i32_0 = arith.constant 0 : i32
    %c0_i32_1 = arith.constant 0 : i32
    return %c0_i32, %c0_i32_0 : i32, i32
  }
  func.func @transform_15(%arg0: i32) -> (i32, i32) {
    %c0_i32 = arith.constant 0 : i32
    %c0_i32_0 = arith.constant 0 : i32
    %c0_i32_1 = arith.constant 0 : i32
    return %c0_i32, %c0_i32_0 : i32, i32
  }
  func.func @transform_16(%arg0: i32) -> (i32, i32) {
    %c0_i32 = arith.constant 0 : i32
    %c0_i32_0 = arith.constant 0 : i32
    %c0_i32_1 = arith.constant 0 : i32
    return %c0_i32, %c0_i32_0 : i32, i32
  }
  func.func @transform_17(%arg0: i32) -> (i32, i32) {
    %c0_i32 = arith.constant 0 : i32
    %c0_i32_0 = arith.constant 0 : i32
    %c0_i32_1 = arith.constant 0 : i32
    return %c0_i32, %c0_i32_0 : i32, i32
  }
  func.func @transform_18(%arg0: i32) -> (i32, i32) {
    %c0_i32 = arith.constant 0 : i32
    %c0_i32_0 = arith.constant 0 : i32
    %c0_i32_1 = arith.constant 0 : i32
    return %c0_i32, %c0_i32_0 : i32, i32
  }
  func.func @transform_19(%arg0: i32) -> (i32, i32) {
    %c0_i32 = arith.constant 0 : i32
    %c0_i32_0 = arith.constant 0 : i32
    %c0_i32_1 = arith.constant 0 : i32
    return %c0_i32, %c0_i32_0 : i32, i32
  }
  func.func @transform_20(%arg0: i32) -> (i32, i32) {
    %c0_i32 = arith.constant 0 : i32
    %c0_i32_0 = arith.constant 0 : i32
    %c0_i32_1 = arith.constant 0 : i32
    return %c0_i32, %c0_i32_0 : i32, i32
  }
  func.func @transform_21(%arg0: i32) -> (i32, i32, i32) {
    %c0_i32 = arith.constant 0 : i32
    %c0_i32_0 = arith.constant 0 : i32
    %c0_i32_1 = arith.constant 0 : i32
    return %arg0, %c0_i32, %c0_i32_0 : i32, i32, i32
  }
}

</mosaic_0001>

<llo_original>
// kernel: tpu_custom_call.1
$region0: #{tpu_custom_call.1}
  #allocation0 [shape = 'u32[]', space=smem, size = 0x4, offset = 0x4, fixed_abs, tag = 'smem constant byte address 0x4 - core index']
  #allocation1 [shape = 'u32[72,128]{1,0:T(1,128)}', space=vmem, size = 0x9000, scoped, tag = 'internal scratch']
  #allocation2 [shape = 'f32[1,1]{1,0:T(1,128)S(1)}', space=vmem, size = 0x200, scoped, tag = 'scoped memory for tpu_custom_call.1']
  %s0 = inlined_call_operand.vmem [shape: f32[2,1,256], index: 0, kind: input, shape index: {}]
  %s1 = inlined_call_operand.vmem [shape: f32[2,1,256], index: 1, kind: input, shape index: {}]
  %s2 = inlined_call_operand.vmem [shape: f32[9,256], index: 2, kind: input, shape index: {}]
  %s3 = inlined_call_operand.vmem [shape: f32[9,64], index: 3, kind: input, shape index: {}]
  %s4 = inlined_call_operand.vmem [shape: f32[256,64], index: 4, kind: input, shape index: {}]
  %s5 = inlined_call_operand.vmem [shape: f32[64,256], index: 5, kind: input, shape index: {}]
  %s6 = inlined_call_operand.vmem [shape: f32[4,1], index: 6, kind: input, shape index: {}]
  %s7 = inlined_call_operand.vmem [shape: bf16[8,144], index: 7, kind: input, shape index: {}]
  %s8 = inlined_call_operand.vmem [shape: f32[8,1], index: 8, kind: input, shape index: {}]
  %s9 = inlined_call_operand.vmem [shape: bf16[8,72], index: 9, kind: input, shape index: {}]
  %s10 = inlined_call_operand.vmem [shape: f32[8,1], index: 10, kind: input, shape index: {}]
  %s11 = inlined_call_operand.vmem [shape: bf16[16,72], index: 11, kind: input, shape index: {}]
  %s12 = inlined_call_operand.vmem [shape: f32[16,1], index: 12, kind: input, shape index: {}]
  %s13 = inlined_call_operand.vmem [shape: bf16[16,144], index: 13, kind: input, shape index: {}]
  %s14 = inlined_call_operand.vmem [shape: f32[16,1], index: 14, kind: input, shape index: {}]
  %s15 = inlined_call_operand.vmem [shape: bf16[8,216], index: 15, kind: input, shape index: {}]
  %s16 = inlined_call_operand.vmem [shape: f32[8,1], index: 16, kind: input, shape index: {}]
  %s17 = inlined_call_operand.vmem [shape: bf16[8,72], index: 17, kind: input, shape index: {}]
  %s18 = inlined_call_operand.vmem [shape: f32[8,1], index: 18, kind: input, shape index: {}]
  %s19 = inlined_call_operand.vmem [shape: f32[8,1], index: 19, kind: input, shape index: {}]
  %s20 = inlined_call_operand.<no memory space> [shape: f32[1,1], index: 20, kind: input, shape index: {}]
  %s21 = inlined_call_operand.hbm [shape: f32[2,1,256], index: 21, kind: output, shape index: {}]
  %s22 = sld [smem:[#allocation0]]
  $region117: #{tpu_custom_call.1} parent=0
    _
  %s24 = ssub.s32 1, %s22
  %s25 = scalar_select 0, %s24, %s22
  %v26 = vstv %s20
  %27 = vst [vmem:[#allocation2] sm:$0x1] %v26
  $region1: #{tpu_custom_call.1} parent=0
    #allocation3 [shape = 'u8[2048]{0}', space=vmem, size = 0x800, scoped, tag = 'output window, operand 0']
    #allocation4 [shape = 's32[2]{0}', space=sflag, size = 0x8, scoped, tag = 'scoped memory for tpu_custom_call.1']
    %28 = vsyncpa [#allocation4], 0
    %s29 = scalar_lea.sflag [#allocation4], 1
    %30 = vsyncpa %s29, 0
    loop: start=0, step=1, limit=4
    $region2: #{tpu_custom_call.1} parent=1 // loop_pre_header
      _
    $region3: #{tpu_custom_call.1} parent=1 // loop_header
      %s32 = sphi 0, %s36
      %p33 = scmp.ge.s32.totalorder %s32, 4
      %s42 = sphi 0, %s44
      %s45 = sphi 0, %s42
      %s46 = sphi 0, %s45
      %s62 = sphi 0, %s46
      %s68 = sphi 0, %s70
      %s71 = sphi 0, %s68
      %s72 = sphi 0, %s71
      %s88 = sphi 0, %s72
      %s92 = sphi 0, %s92
      %s94 = sphi 0, %s92
      %s95 = sphi 0, %s94
      %s109 = sphi 0, %s95
      %s113 = sphi 0, %s113
      %s115 = sphi 0, %s113
      %s116 = sphi 0, %s115
      %s130 = sphi 0, %s116
      %s134 = sphi 0, %s134
      %s136 = sphi 0, %s134
      %s137 = sphi 0, %s136
      %s151 = sphi 0, %s137
      %s155 = sphi 0, %s155
      %s157 = sphi 0, %s155
      %s158 = sphi 0, %s157
      %s172 = sphi 0, %s158
      %s176 = sphi 0, %s176
      %s178 = sphi 0, %s176
      %s179 = sphi 0, %s178
      %s193 = sphi 0, %s179
      %s197 = sphi 0, %s197
      %s199 = sphi 0, %s197
      %s200 = sphi 0, %s199
      %s214 = sphi 0, %s200
      %s218 = sphi 0, %s218
      %s220 = sphi 0, %s218
      %s221 = sphi 0, %s220
      %s235 = sphi 0, %s221
      %s239 = sphi 0, %s239
      %s241 = sphi 0, %s239
      %s242 = sphi 0, %s241
      %s256 = sphi 0, %s242
      %s260 = sphi 0, %s260
      %s262 = sphi 0, %s260
      %s263 = sphi 0, %s262
      %s277 = sphi 0, %s263
      %s281 = sphi 0, %s281
      %s283 = sphi 0, %s281
      %s284 = sphi 0, %s283
      %s298 = sphi 0, %s284
      %s302 = sphi 0, %s302
      %s304 = sphi 0, %s302
      %s305 = sphi 0, %s304
      %s319 = sphi 0, %s305
      %s323 = sphi 0, %s323
      %s325 = sphi 0, %s323
      %s326 = sphi 0, %s325
      %s340 = sphi 0, %s326
      %s344 = sphi 0, %s344
      %s346 = sphi 0, %s344
      %s347 = sphi 0, %s346
      %s361 = sphi 0, %s347
      %s365 = sphi 0, %s365
      %s367 = sphi 0, %s365
      %s368 = sphi 0, %s367
      %s382 = sphi 0, %s368
      %s386 = sphi 0, %s386
      %s388 = sphi 0, %s386
      %s389 = sphi 0, %s388
      %s403 = sphi 0, %s389
      %s407 = sphi 0, %s407
      %s409 = sphi 0, %s407
      %s410 = sphi 0, %s409
      %s424 = sphi 0, %s410
      %s428 = sphi 0, %s428
      %s430 = sphi 0, %s428
      %s431 = sphi 0, %s430
      %s445 = sphi 0, %s431
      %s449 = sphi 0, %s449
      %s451 = sphi 0, %s449
      %s452 = sphi 0, %s451
      %s466 = sphi 0, %s452
      %s470 = sphi 0, %s470
      %s472 = sphi 0, %s470
      %s473 = sphi 0, %s472
      %s487 = sphi 0, %s473
      %s493 = sphi 0, %s495
      %s496 = sphi 0, %s493
      %s497 = sphi 0, %s496
      %s513 = sphi 0, %s497
    $region4: #{tpu_custom_call.1} parent=1 // loop_header_branch
      %35 = sbr.rel (%p33) target = $region8
    $region5: #{tpu_custom_call.1} parent=1 // loop_body
      %s37 = ssub.s32 %s32, 1
      %s38 = ssub.s32 %s32, 2
      %s39 = sadd.s32 %s32, 1
      %s40 = ssub.s32 %s32, %s39
      %p41 = scmp.eq.s32.totalorder %s40, 0
      %s43 = sadd.s32 %s42, 1
      %s44 = scalar_select %p41, %s42, %s43
      %p47 = pneg %p41
      %p48 = scmp.eq.s32.totalorder %s32, 1
      %p49 = por %p47, %p48
      %p50 = scmp.ne.s32.totalorder %s42, %s45
      %p51 = scmp.eq.s32.totalorder %s32, 0
      %p52 = por %p50, %p51
      %p53 = scmp.ne.s32.totalorder %s42, %s45
      %p54 = scmp.eq.s32.totalorder %s37, 1
      %p55 = por %p53, %p54
      %p56 = scmp.ne.s32.totalorder %s45, %s46
      %p57 = scmp.eq.s32.totalorder %s37, 0
      %p58 = por %p56, %p57
      %p59 = scmp.ne.s32.totalorder %s45, %s46
      %p60 = scmp.eq.s32.totalorder %s38, 1
      %p61 = por %p59, %p60
      %p63 = scmp.ne.s32.totalorder %s46, %s62
      %p64 = scmp.eq.s32.totalorder %s38, 0
      %p65 = por %p63, %p64
      %s66 = ssub.s32 %s32, %s39
      %p67 = scmp.eq.s32.totalorder %s66, 0
      %s69 = sadd.s32 %s68, 1
      %s70 = scalar_select %p67, %s68, %s69
      %p73 = pneg %p67
      %p74 = scmp.eq.s32.totalorder %s32, 1
      %p75 = por %p73, %p74
      %p76 = scmp.ne.s32.totalorder %s68, %s71
      %p77 = scmp.eq.s32.totalorder %s32, 0
      %p78 = por %p76, %p77
      %p79 = scmp.ne.s32.totalorder %s68, %s71
      %p80 = scmp.eq.s32.totalorder %s37, 1
      %p81 = por %p79, %p80
      %p82 = scmp.ne.s32.totalorder %s71, %s72
      %p83 = scmp.eq.s32.totalorder %s37, 0
      %p84 = por %p82, %p83
      %p85 = scmp.ne.s32.totalorder %s71, %s72
      %p86 = scmp.eq.s32.totalorder %s38, 1
      %p87 = por %p85, %p86
      %p89 = scmp.ne.s32.totalorder %s72, %s88
      %p90 = scmp.eq.s32.totalorder %s38, 0
      %p91 = por %p89, %p90
      %s93 = sadd.s32 %s92, 1
      %p96 = scmp.eq.s32.totalorder %s32, 1
      %p97 = scmp.ne.s32.totalorder %s92, %s94
      %p98 = scmp.eq.s32.totalorder %s32, 0
      %p99 = por %p97, %p98
      %p100 = scmp.ne.s32.totalorder %s92, %s94
      %p101 = scmp.eq.s32.totalorder %s37, 1
      %p102 = por %p100, %p101
      %p103 = scmp.ne.s32.totalorder %s94, %s95
      %p104 = scmp.eq.s32.totalorder %s37, 0
      %p105 = por %p103, %p104
      %p106 = scmp.ne.s32.totalorder %s94, %s95
      %p107 = scmp.eq.s32.totalorder %s38, 1
      %p108 = por %p106, %p107
      %p110 = scmp.ne.s32.totalorder %s95, %s109
      %p111 = scmp.eq.s32.totalorder %s38, 0
      %p112 = por %p110, %p111
      %s114 = sadd.s32 %s113, 1
      %p117 = scmp.eq.s32.totalorder %s32, 1
      %p118 = scmp.ne.s32.totalorder %s113, %s115
      %p119 = scmp.eq.s32.totalorder %s32, 0
      %p120 = por %p118, %p119
      %p121 = scmp.ne.s32.totalorder %s113, %s115
      %p122 = scmp.eq.s32.totalorder %s37, 1
      %p123 = por %p121, %p122
      %p124 = scmp.ne.s32.totalorder %s115, %s116
      %p125 = scmp.eq.s32.totalorder %s37, 0
      %p126 = por %p124, %p125
      %p127 = scmp.ne.s32.totalorder %s115, %s116
      %p128 = scmp.eq.s32.totalorder %s38, 1
      %p129 = por %p127, %p128
      %p131 = scmp.ne.s32.totalorder %s116, %s130
      %p132 = scmp.eq.s32.totalorder %s38, 0
      %p133 = por %p131, %p132
      %s135 = sadd.s32 %s134, 1
      %p138 = scmp.eq.s32.totalorder %s32, 1
      %p139 = scmp.ne.s32.totalorder %s134, %s136
      %p140 = scmp.eq.s32.totalorder %s32, 0
      %p141 = por %p139, %p140
      %p142 = scmp.ne.s32.totalorder %s134, %s136
      %p143 = scmp.eq.s32.totalorder %s37, 1
      %p144 = por %p142, %p143
      %p145 = scmp.ne.s32.totalorder %s136, %s137
      %p146 = scmp.eq.s32.totalorder %s37, 0
      %p147 = por %p145, %p146
      %p148 = scmp.ne.s32.totalorder %s136, %s137
      %p149 = scmp.eq.s32.totalorder %s38, 1
      %p150 = por %p148, %p149
      %p152 = scmp.ne.s32.totalorder %s137, %s151
      %p153 = scmp.eq.s32.totalorder %s38, 0
      %p154 = por %p152, %p153
      %s156 = sadd.s32 %s155, 1
      %p159 = scmp.eq.s32.totalorder %s32, 1
      %p160 = scmp.ne.s32.totalorder %s155, %s157
      %p161 = scmp.eq.s32.totalorder %s32, 0
      %p162 = por %p160, %p161
      %p163 = scmp.ne.s32.totalorder %s155, %s157
      %p164 = scmp.eq.s32.totalorder %s37, 1
      %p165 = por %p163, %p164
      %p166 = scmp.ne.s32.totalorder %s157, %s158
      %p167 = scmp.eq.s32.totalorder %s37, 0
      %p168 = por %p166, %p167
      %p169 = scmp.ne.s32.totalorder %s157, %s158
      %p170 = scmp.eq.s32.totalorder %s38, 1
      %p171 = por %p169, %p170
      %p173 = scmp.ne.s32.totalorder %s158, %s172
      %p174 = scmp.eq.s32.totalorder %s38, 0
      %p175 = por %p173, %p174
      %s177 = sadd.s32 %s176, 1
      %p180 = scmp.eq.s32.totalorder %s32, 1
      %p181 = scmp.ne.s32.totalorder %s176, %s178
      %p182 = scmp.eq.s32.totalorder %s32, 0
      %p183 = por %p181, %p182
      %p184 = scmp.ne.s32.totalorder %s176, %s178
      %p185 = scmp.eq.s32.totalorder %s37, 1
      %p186 = por %p184, %p185
      %p187 = scmp.ne.s32.totalorder %s178, %s179
      %p188 = scmp.eq.s32.totalorder %s37, 0
      %p189 = por %p187, %p188
      %p190 = scmp.ne.s32.totalorder %s178, %s179
      %p191 = scmp.eq.s32.totalorder %s38, 1
      %p192 = por %p190, %p191
      %p194 = scmp.ne.s32.totalorder %s179, %s193
      %p195 = scmp.eq.s32.totalorder %s38, 0
      %p196 = por %p194, %p195
      %s198 = sadd.s32 %s197, 1
      %p201 = scmp.eq.s32.totalorder %s32, 1
      %p202 = scmp.ne.s32.totalorder %s197, %s199
      %p203 = scmp.eq.s32.totalorder %s32, 0
      %p204 = por %p202, %p203
      %p205 = scmp.ne.s32.totalorder %s197, %s199
      %p206 = scmp.eq.s32.totalorder %s37, 1
      %p207 = por %p205, %p206
      %p208 = scmp.ne.s32.totalorder %s199, %s200
      %p209 = scmp.eq.s32.totalorder %s37, 0
      %p210 = por %p208, %p209
      %p211 = scmp.ne.s32.totalorder %s199, %s200
      %p212 = scmp.eq.s32.totalorder %s38, 1
      %p213 = por %p211, %p212
      %p215 = scmp.ne.s32.totalorder %s200, %s214
      %p216 = scmp.eq.s32.totalorder %s38, 0
      %p217 = por %p215, %p216
      %s219 = sadd.s32 %s218, 1
      %p222 = scmp.eq.s32.totalorder %s32, 1
      %p223 = scmp.ne.s32.totalorder %s218, %s220
      %p224 = scmp.eq.s32.totalorder %s32, 0
      %p225 = por %p223, %p224
      %p226 = scmp.ne.s32.totalorder %s218, %s220
      %p227 = scmp.eq.s32.totalorder %s37, 1
      %p228 = por %p226, %p227
      %p229 = scmp.ne.s32.totalorder %s220, %s221
      %p230 = scmp.eq.s32.totalorder %s37, 0
      %p231 = por %p229, %p230
      %p232 = scmp.ne.s32.totalorder %s220, %s221
      %p233 = scmp.eq.s32.totalorder %s38, 1
      %p234 = por %p232, %p233
      %p236 = scmp.ne.s32.totalorder %s221, %s235
      %p237 = scmp.eq.s32.totalorder %s38, 0
      %p238 = por %p236, %p237
      %s240 = sadd.s32 %s239, 1
      %p243 = scmp.eq.s32.totalorder %s32, 1
      %p244 = scmp.ne.s32.totalorder %s239, %s241
      %p245 = scmp.eq.s32.totalorder %s32, 0
      %p246 = por %p244, %p245
      %p247 = scmp.ne.s32.totalorder %s239, %s241
      %p248 = scmp.eq.s32.totalorder %s37, 1
      %p249 = por %p247, %p248
      %p250 = scmp.ne.s32.totalorder %s241, %s242
      %p251 = scmp.eq.s32.totalorder %s37, 0
      %p252 = por %p250, %p251
      %p253 = scmp.ne.s32.totalorder %s241, %s242
      %p254 = scmp.eq.s32.totalorder %s38, 1
      %p255 = por %p253, %p254
      %p257 = scmp.ne.s32.totalorder %s242, %s256
      %p258 = scmp.eq.s32.totalorder %s38, 0
      %p259 = por %p257, %p258
      %s261 = sadd.s32 %s260, 1
      %p264 = scmp.eq.s32.totalorder %s32, 1
      %p265 = scmp.ne.s32.totalorder %s260, %s262
      %p266 = scmp.eq.s32.totalorder %s32, 0
      %p267 = por %p265, %p266
      %p268 = scmp.ne.s32.totalorder %s260, %s262
      %p269 = scmp.eq.s32.totalorder %s37, 1
      %p270 = por %p268, %p269
      %p271 = scmp.ne.s32.totalorder %s262, %s263
      %p272 = scmp.eq.s32.totalorder %s37, 0
      %p273 = por %p271, %p272
      %p274 = scmp.ne.s32.totalorder %s262, %s263
      %p275 = scmp.eq.s32.totalorder %s38, 1
      %p276 = por %p274, %p275
      %p278 = scmp.ne.s32.totalorder %s263, %s277
      %p279 = scmp.eq.s32.totalorder %s38, 0
      %p280 = por %p278, %p279
      %s282 = sadd.s32 %s281, 1
      %p285 = scmp.eq.s32.totalorder %s32, 1
      %p286 = scmp.ne.s32.totalorder %s281, %s283
      %p287 = scmp.eq.s32.totalorder %s32, 0
      %p288 = por %p286, %p287
      %p289 = scmp.ne.s32.totalorder %s281, %s283
      %p290 = scmp.eq.s32.totalorder %s37, 1
      %p291 = por %p289, %p290
      %p292 = scmp.ne.s32.totalorder %s283, %s284
      %p293 = scmp.eq.s32.totalorder %s37, 0
      %p294 = por %p292, %p293
      %p295 = scmp.ne.s32.totalorder %s283, %s284
      %p296 = scmp.eq.s32.totalorder %s38, 1
      %p297 = por %p295, %p296
      %p299 = scmp.ne.s32.totalorder %s284, %s298
      %p300 = scmp.eq.s32.totalorder %s38, 0
      %p301 = por %p299, %p300
      %s303 = sadd.s32 %s302, 1
      %p306 = scmp.eq.s32.totalorder %s32, 1
      %p307 = scmp.ne.s32.totalorder %s302, %s304
      %p308 = scmp.eq.s32.totalorder %s32, 0
      %p309 = por %p307, %p308
      %p310 = scmp.ne.s32.totalorder %s302, %s304
      %p311 = scmp.eq.s32.totalorder %s37, 1
      %p312 = por %p310, %p311
      %p313 = scmp.ne.s32.totalorder %s304, %s305
      %p314 = scmp.eq.s32.totalorder %s37, 0
      %p315 = por %p313, %p314
      %p316 = scmp.ne.s32.totalorder %s304, %s305
      %p317 = scmp.eq.s32.totalorder %s38, 1
      %p318 = por %p316, %p317
      %p320 = scmp.ne.s32.totalorder %s305, %s319
      %p321 = scmp.eq.s32.totalorder %s38, 0
      %p322 = por %p320, %p321
      %s324 = sadd.s32 %s323, 1
      %p327 = scmp.eq.s32.totalorder %s32, 1
      %p328 = scmp.ne.s32.totalorder %s323, %s325
      %p329 = scmp.eq.s32.totalorder %s32, 0
      %p330 = por %p328, %p329
      %p331 = scmp.ne.s32.totalorder %s323, %s325
      %p332 = scmp.eq.s32.totalorder %s37, 1
      %p333 = por %p331, %p332
      %p334 = scmp.ne.s32.totalorder %s325, %s326
      %p335 = scmp.eq.s32.totalorder %s37, 0
      %p336 = por %p334, %p335
      %p337 = scmp.ne.s32.totalorder %s325, %s326
      %p338 = scmp.eq.s32.totalorder %s38, 1
      %p339 = por %p337, %p338
      %p341 = scmp.ne.s32.totalorder %s326, %s340
      %p342 = scmp.eq.s32.totalorder %s38, 0
      %p343 = por %p341, %p342
      %s345 = sadd.s32 %s344, 1
      %p348 = scmp.eq.s32.totalorder %s32, 1
      %p349 = scmp.ne.s32.totalorder %s344, %s346
      %p350 = scmp.eq.s32.totalorder %s32, 0
      %p351 = por %p349, %p350
      %p352 = scmp.ne.s32.totalorder %s344, %s346
      %p353 = scmp.eq.s32.totalorder %s37, 1
      %p354 = por %p352, %p353
      %p355 = scmp.ne.s32.totalorder %s346, %s347
      %p356 = scmp.eq.s32.totalorder %s37, 0
      %p357 = por %p355, %p356
      %p358 = scmp.ne.s32.totalorder %s346, %s347
      %p359 = scmp.eq.s32.totalorder %s38, 1
      %p360 = por %p358, %p359
      %p362 = scmp.ne.s32.totalorder %s347, %s361
      %p363 = scmp.eq.s32.totalorder %s38, 0
      %p364 = por %p362, %p363
      %s366 = sadd.s32 %s365, 1
      %p369 = scmp.eq.s32.totalorder %s32, 1
      %p370 = scmp.ne.s32.totalorder %s365, %s367
      %p371 = scmp.eq.s32.totalorder %s32, 0
      %p372 = por %p370, %p371
      %p373 = scmp.ne.s32.totalorder %s365, %s367
      %p374 = scmp.eq.s32.totalorder %s37, 1
      %p375 = por %p373, %p374
      %p376 = scmp.ne.s32.totalorder %s367, %s368
      %p377 = scmp.eq.s32.totalorder %s37, 0
      %p378 = por %p376, %p377
      %p379 = scmp.ne.s32.totalorder %s367, %s368
      %p380 = scmp.eq.s32.totalorder %s38, 1
      %p381 = por %p379, %p380
      %p383 = scmp.ne.s32.totalorder %s368, %s382
      %p384 = scmp.eq.s32.totalorder %s38, 0
      %p385 = por %p383, %p384
      %s387 = sadd.s32 %s386, 1
      %p390 = scmp.eq.s32.totalorder %s32, 1
      %p391 = scmp.ne.s32.totalorder %s386, %s388
      %p392 = scmp.eq.s32.totalorder %s32, 0
      %p393 = por %p391, %p392
      %p394 = scmp.ne.s32.totalorder %s386, %s388
      %p395 = scmp.eq.s32.totalorder %s37, 1
      %p396 = por %p394, %p395
      %p397 = scmp.ne.s32.totalorder %s388, %s389
      %p398 = scmp.eq.s32.totalorder %s37, 0
      %p399 = por %p397, %p398
      %p400 = scmp.ne.s32.totalorder %s388, %s389
      %p401 = scmp.eq.s32.totalorder %s38, 1
      %p402 = por %p400, %p401
      %p404 = scmp.ne.s32.totalorder %s389, %s403
      %p405 = scmp.eq.s32.totalorder %s38, 0
      %p406 = por %p404, %p405
      %s408 = sadd.s32 %s407, 1
      %p411 = scmp.eq.s32.totalorder %s32, 1
      %p412 = scmp.ne.s32.totalorder %s407, %s409
      %p413 = scmp.eq.s32.totalorder %s32, 0
      %p414 = por %p412, %p413
      %p415 = scmp.ne.s32.totalorder %s407, %s409
      %p416 = scmp.eq.s32.totalorder %s37, 1
      %p417 = por %p415, %p416
      %p418 = scmp.ne.s32.totalorder %s409, %s410
      %p419 = scmp.eq.s32.totalorder %s37, 0
      %p420 = por %p418, %p419
      %p421 = scmp.ne.s32.totalorder %s409, %s410
      %p422 = scmp.eq.s32.totalorder %s38, 1
      %p423 = por %p421, %p422
      %p425 = scmp.ne.s32.totalorder %s410, %s424
      %p426 = scmp.eq.s32.totalorder %s38, 0
      %p427 = por %p425, %p426
      %s429 = sadd.s32 %s428, 1
      %p432 = scmp.eq.s32.totalorder %s32, 1
      %p433 = scmp.ne.s32.totalorder %s428, %s430
      %p434 = scmp.eq.s32.totalorder %s32, 0
      %p435 = por %p433, %p434
      %p436 = scmp.ne.s32.totalorder %s428, %s430
      %p437 = scmp.eq.s32.totalorder %s37, 1
      %p438 = por %p436, %p437
      %p439 = scmp.ne.s32.totalorder %s430, %s431
      %p440 = scmp.eq.s32.totalorder %s37, 0
      %p441 = por %p439, %p440
      %p442 = scmp.ne.s32.totalorder %s430, %s431
      %p443 = scmp.eq.s32.totalorder %s38, 1
      %p444 = por %p442, %p443
      %p446 = scmp.ne.s32.totalorder %s431, %s445
      %p447 = scmp.eq.s32.totalorder %s38, 0
      %p448 = por %p446, %p447
      %s450 = sadd.s32 %s449, 1
      %p453 = scmp.eq.s32.totalorder %s32, 1
      %p454 = scmp.ne.s32.totalorder %s449, %s451
      %p455 = scmp.eq.s32.totalorder %s32, 0
      %p456 = por %p454, %p455
      %p457 = scmp.ne.s32.totalorder %s449, %s451
      %p458 = scmp.eq.s32.totalorder %s37, 1
      %p459 = por %p457, %p458
      %p460 = scmp.ne.s32.totalorder %s451, %s452
      %p461 = scmp.eq.s32.totalorder %s37, 0
      %p462 = por %p460, %p461
      %p463 = scmp.ne.s32.totalorder %s451, %s452
      %p464 = scmp.eq.s32.totalorder %s38, 1
      %p465 = por %p463, %p464
      %p467 = scmp.ne.s32.totalorder %s452, %s466
      %p468 = scmp.eq.s32.totalorder %s38, 0
      %p469 = por %p467, %p468
      %s471 = sadd.s32 %s470, 1
      %p474 = scmp.eq.s32.totalorder %s32, 1
      %p475 = scmp.ne.s32.totalorder %s470, %s472
      %p476 = scmp.eq.s32.totalorder %s32, 0
      %p477 = por %p475, %p476
      %p478 = scmp.ne.s32.totalorder %s470, %s472
      %p479 = scmp.eq.s32.totalorder %s37, 1
      %p480 = por %p478, %p479
      %p481 = scmp.ne.s32.totalorder %s472, %s473
      %p482 = scmp.eq.s32.totalorder %s37, 0
      %p483 = por %p481, %p482
      %p484 = scmp.ne.s32.totalorder %s472, %s473
      %p485 = scmp.eq.s32.totalorder %s38, 1
      %p486 = por %p484, %p485
      %p488 = scmp.ne.s32.totalorder %s473, %s487
      %p489 = scmp.eq.s32.totalorder %s38, 0
      %p490 = por %p488, %p489
      %s491 = ssub.s32 %s32, %s39
      %p492 = scmp.eq.s32.totalorder %s491, 0
      %s494 = sadd.s32 %s493, 1
      %s495 = scalar_select %p492, %s493, %s494
      %p498 = pneg %p492
      %p499 = scmp.eq.s32.totalorder %s32, 1
      %p500 = por %p498, %p499
      %p501 = scmp.ne.s32.totalorder %s493, %s496
      %p502 = scmp.eq.s32.totalorder %s32, 0
      %p503 = por %p501, %p502
      %p504 = scmp.ne.s32.totalorder %s493, %s496
      %p505 = scmp.eq.s32.totalorder %s37, 1
      %p506 = por %p504, %p505
      %p507 = scmp.ne.s32.totalorder %s496, %s497
      %p508 = scmp.eq.s32.totalorder %s37, 0
      %p509 = por %p507, %p508
      %p510 = scmp.ne.s32.totalorder %s496, %s497
      %p511 = scmp.eq.s32.totalorder %s38, 1
      %p512 = por %p510, %p511
      %p514 = scmp.ne.s32.totalorder %s497, %s513
      %p515 = scmp.eq.s32.totalorder %s38, 0
      %p516 = por %p514, %p515
      %p517 = scmp.le.s32.totalorder 1, %s32
      %p518 = scmp.lt.s32.totalorder %s32, 3
      %p519 = pnand %p517, %p518
      %p520 = pneg %p519
      // Predicated region
      $region9: #{tpu_custom_call.1} parent=5 // pred_check
        _
      $region10: #{tpu_custom_call.1} parent=5 // pred_check_branch
        %522 = sbr.rel (%p519) target = $region12
      $region11: #{tpu_custom_call.1} parent=5 // pred_region
        %s523 = ssub.s32 %s32, 1
        // Predicated region
        $region13: #{tpu_custom_call.1} parent=11 // pred_check
          %p524 = pneg %p105
        $region14: #{tpu_custom_call.1} parent=11 // pred_check_branch
          %526 = sbr.rel (%p524) target = $region16
        $region15: #{tpu_custom_call.1} parent=11 // pred_region
          _
        $region16: #{tpu_custom_call.1} parent=11 // pred_fallthru
          _
        // Predicated region
        $region17: #{tpu_custom_call.1} parent=11 // pred_check
          %p527 = pneg %p126
        $region18: #{tpu_custom_call.1} parent=11 // pred_check_branch
          %529 = sbr.rel (%p527) target = $region20
        $region19: #{tpu_custom_call.1} parent=11 // pred_region
          _
        $region20: #{tpu_custom_call.1} parent=11 // pred_fallthru
          _
        // Predicated region
        $region21: #{tpu_custom_call.1} parent=11 // pred_check
          %p530 = pneg %p147
        $region22: #{tpu_custom_call.1} parent=11 // pred_check_branch
          %532 = sbr.rel (%p530) target = $region24
        $region23: #{tpu_custom_call.1} parent=11 // pred_region
          _
        $region24: #{tpu_custom_call.1} parent=11 // pred_fallthru
          _
        // Predicated region
        $region25: #{tpu_custom_call.1} parent=11 // pred_check
          %p533 = pneg %p168
        $region26: #{tpu_custom_call.1} parent=11 // pred_check_branch
          %535 = sbr.rel (%p533) target = $region28
        $region27: #{tpu_custom_call.1} parent=11 // pred_region
          _
        $region28: #{tpu_custom_call.1} parent=11 // pred_fallthru
          _
        // Predicated region
        $region29: #{tpu_custom_call.1} parent=11 // pred_check
          %p536 = pneg %p189
        $region30: #{tpu_custom_call.1} parent=11 // pred_check_branch
          %538 = sbr.rel (%p536) target = $region32
        $region31: #{tpu_custom_call.1} parent=11 // pred_region
          _
        $region32: #{tpu_custom_call.1} parent=11 // pred_fallthru
          _
        // Predicated region
        $region33: #{tpu_custom_call.1} parent=11 // pred_check
          %p539 = pneg %p210
        $region34: #{tpu_custom_call.1} parent=11 // pred_check_branch
          %541 = sbr.rel (%p539) target = $region36
        $region35: #{tpu_custom_call.1} parent=11 // pred_region
          _
        $region36: #{tpu_custom_call.1} parent=11 // pred_fallthru
          _
        // Predicated region
        $region37: #{tpu_custom_call.1} parent=11 // pred_check
          %p542 = pneg %p231
        $region38: #{tpu_custom_call.1} parent=11 // pred_check_branch
          %544 = sbr.rel (%p542) target = $region40
        $region39: #{tpu_custom_call.1} parent=11 // pred_region
          _
        $region40: #{tpu_custom_call.1} parent=11 // pred_fallthru
          _
        // Predicated region
        $region41: #{tpu_custom_call.1} parent=11 // pred_check
          %p545 = pneg %p252
        $region42: #{tpu_custom_call.1} parent=11 // pred_check_branch
          %547 = sbr.rel (%p545) target = $region44
        $region43: #{tpu_custom_call.1} parent=11 // pred_region
          _
        $region44: #{tpu_custom_call.1} parent=11 // pred_fallthru
          _
        // Predicated region
        $region45: #{tpu_custom_call.1} parent=11 // pred_check
          %p548 = pneg %p273
        $region46: #{tpu_custom_call.1} parent=11 // pred_check_branch
          %550 = sbr.rel (%p548) target = $region48
        $region47: #{tpu_custom_call.1} parent=11 // pred_region
          _
        $region48: #{tpu_custom_call.1} parent=11 // pred_fallthru
          _
        // Predicated region
        $region49: #{tpu_custom_call.1} parent=11 // pred_check
          %p551 = pneg %p294
        $region50: #{tpu_custom_call.1} parent=11 // pred_check_branch
          %553 = sbr.rel (%p551) target = $region52
        $region51: #{tpu_custom_call.1} parent=11 // pred_region
          _
        $region52: #{tpu_custom_call.1} parent=11 // pred_fallthru
          _
        // Predicated region
        $region53: #{tpu_custom_call.1} parent=11 // pred_check
          %p554 = pneg %p315
        $region54: #{tpu_custom_call.1} parent=11 // pred_check_branch
          %556 = sbr.rel (%p554) target = $region56
        $region55: #{tpu_custom_call.1} parent=11 // pred_region
          _
        $region56: #{tpu_custom_call.1} parent=11 // pred_fallthru
          _
        // Predicated region
        $region57: #{tpu_custom_call.1} parent=11 // pred_check
          %p557 = pneg %p336
        $region58: #{tpu_custom_call.1} parent=11 // pred_check_branch
          %559 = sbr.rel (%p557) target = $region60
        $region59: #{tpu_custom_call.1} parent=11 // pred_region
          _
        $region60: #{tpu_custom_call.1} parent=11 // pred_fallthru
          _
        // Predicated region
        $region61: #{tpu_custom_call.1} parent=11 // pred_check
          %p560 = pneg %p357
        $region62: #{tpu_custom_call.1} parent=11 // pred_check_branch
          %562 = sbr.rel (%p560) target = $region64
        $region63: #{tpu_custom_call.1} parent=11 // pred_region
          _
        $region64: #{tpu_custom_call.1} parent=11 // pred_fallthru
          _
        // Predicated region
        $region65: #{tpu_custom_call.1} parent=11 // pred_check
          %p563 = pneg %p378
        $region66: #{tpu_custom_call.1} parent=11 // pred_check_branch
          %565 = sbr.rel (%p563) target = $region68
        $region67: #{tpu_custom_call.1} parent=11 // pred_region
          _
        $region68: #{tpu_custom_call.1} parent=11 // pred_fallthru
          _
        // Predicated region
        $region69: #{tpu_custom_call.1} parent=11 // pred_check
          %p566 = pneg %p399
        $region70: #{tpu_custom_call.1} parent=11 // pred_check_branch
          %568 = sbr.rel (%p566) target = $region72
        $region71: #{tpu_custom_call.1} parent=11 // pred_region
          _
        $region72: #{tpu_custom_call.1} parent=11 // pred_fallthru
          _
        // Predicated region
        $region73: #{tpu_custom_call.1} parent=11 // pred_check
          %p569 = pneg %p420
        $region74: #{tpu_custom_call.1} parent=11 // pred_check_branch
          %571 = sbr.rel (%p569) target = $region76
        $region75: #{tpu_custom_call.1} parent=11 // pred_region
          _
        $region76: #{tpu_custom_call.1} parent=11 // pred_fallthru
          _
        // Predicated region
        $region77: #{tpu_custom_call.1} parent=11 // pred_check
          %p572 = pneg %p441
        $region78: #{tpu_custom_call.1} parent=11 // pred_check_branch
          %574 = sbr.rel (%p572) target = $region80
        $region79: #{tpu_custom_call.1} parent=11 // pred_region
          _
        $region80: #{tpu_custom_call.1} parent=11 // pred_fallthru
          _
        // Predicated region
        $region81: #{tpu_custom_call.1} parent=11 // pred_check
          %p575 = pneg %p462
        $region82: #{tpu_custom_call.1} parent=11 // pred_check_branch
          %577 = sbr.rel (%p575) target = $region84
        $region83: #{tpu_custom_call.1} parent=11 // pred_region
          _
        $region84: #{tpu_custom_call.1} parent=11 // pred_fallthru
          _
        // Predicated region
        $region85: #{tpu_custom_call.1} parent=11 // pred_check
          %p578 = pneg %p483
        $region86: #{tpu_custom_call.1} parent=11 // pred_check_branch
          %580 = sbr.rel (%p578) target = $region88
        $region87: #{tpu_custom_call.1} parent=11 // pred_region
          _
        $region88: #{tpu_custom_call.1} parent=11 // pred_fallthru
          _
      $region12: #{tpu_custom_call.1} parent=5 // pred_fallthru
        _
      %p581 = scmp.lt.s32.totalorder %s32, 2
      // Predicated region
      $region89: #{tpu_custom_call.1} parent=5 // pred_check
        %p582 = pneg %p581
      $region90: #{tpu_custom_call.1} parent=5 // pred_check_branch
        %584 = sbr.rel (%p582) target = $region92
      $region91: #{tpu_custom_call.1} parent=5 // pred_region
        // Predicated region
        $region93: #{tpu_custom_call.1} parent=91 // pred_check
          %p585 = pneg %p52
        $region94: #{tpu_custom_call.1} parent=91 // pred_check_branch
          %587 = sbr.rel (%p585) target = $region96
        $region95: #{tpu_custom_call.1} parent=91 // pred_region
          %p588 = scmp.lt.s32.totalorder %s32, 1
          %s589 = scalar_select %p588, %s32, 1
          %s590 = smul.addr %s589, 2
          %s591 = scalar_lea.vmem %s0, %s590
        $region96: #{tpu_custom_call.1} parent=91 // pred_fallthru
          _
        // Predicated region
        $region97: #{tpu_custom_call.1} parent=91 // pred_check
          %p592 = pneg %p78
        $region98: #{tpu_custom_call.1} parent=91 // pred_check_branch
          %594 = sbr.rel (%p592) target = $region100
        $region99: #{tpu_custom_call.1} parent=91 // pred_region
          %p595 = scmp.lt.s32.totalorder %s32, 1
          %s596 = scalar_select %p595, %s32, 1
          %s597 = smul.addr %s596, 2
          %s598 = scalar_lea.vmem %s1, %s597
        $region100: #{tpu_custom_call.1} parent=91 // pred_fallthru
          _
      $region92: #{tpu_custom_call.1} parent=5 // pred_fallthru
        _
      %p599 = scmp.le.s32.totalorder 1, %s32
      %p600 = scmp.lt.s32.totalorder %s32, 3
      %p601 = pnand %p599, %p600
      %p602 = pneg %p601
      // Predicated region
      $region101: #{tpu_custom_call.1} parent=5 // pred_check
        _
      $region102: #{tpu_custom_call.1} parent=5 // pred_check_branch
        %604 = sbr.rel (%p601) target = $region104
      $region103: #{tpu_custom_call.1} parent=5 // pred_region
        %s605 = ssub.s32 %s32, 1
        %p606 = scmp.lt.s32.totalorder %s37, 1
        %s607 = scalar_select %p606, %s37, 1
        %s608 = smul.addr %s607, 2
        %s609 = scalar_lea.vmem %s0, %s608
        %p610 = pneg %p58
        %p611 = pneg %p55
        %p612 = scmp.lt.s32.totalorder %s37, 1
        %s613 = scalar_select %p612, %s37, 1
        %s614 = smul.addr %s613, 2
        %s615 = scalar_lea.vmem %s1, %s614
        %p616 = pneg %p84
        %p617 = pneg %p81
        %p618 = pneg %p105
        %p619 = pneg %p102
        %p620 = pneg %p126
        %p621 = pneg %p123
        %p622 = pneg %p147
        %p623 = pneg %p144
        %p624 = pneg %p168
        %p625 = pneg %p165
        %p626 = pneg %p189
        %p627 = pneg %p186
        %p628 = pneg %p210
        %p629 = pneg %p207
        %p630 = pneg %p231
        %p631 = pneg %p228
        %p632 = pneg %p252
        %p633 = pneg %p249
        %p634 = pneg %p273
        %p635 = pneg %p270
        %p636 = pneg %p294
        %p637 = pneg %p291
        %p638 = pneg %p315
        %p639 = pneg %p312
        %p640 = pneg %p336
        %p641 = pneg %p333
        %p642 = pneg %p357
        %p643 = pneg %p354
        %p644 = pneg %p378
        %p645 = pneg %p375
        %p646 = pneg %p399
        %p647 = pneg %p396
        %p648 = pneg %p420
        %p649 = pneg %p417
        %p650 = pneg %p441
        %p651 = pneg %p438
        %p652 = pneg %p462
        %p653 = pneg %p459
        %p654 = pneg %p483
        %p655 = pneg %p480
        %p656 = pneg %p509
        %p657 = pneg %p506
        %s658 = sand.u32 %s496, 1
        %s659 = scalar_lea.sflag [#allocation4], %s658
        %s660 = sand.u32 %s496, 1
        %s661 = smul.addr %s660, 2
        %s662 = scalar_lea.vmem [#allocation3], %s661
        %p663 = scmp.lt.s32.totalorder %s37, 1
        %s664 = scalar_select %p663, %s37, 1
        %s665 = smul.addr %s664, 2
        %s666 = scalar_lea.vmem %s0, %s665
        %p667 = scmp.lt.s32.totalorder %s37, 1
        %s668 = scalar_select %p667, %s37, 1
        %s669 = smul.addr %s668, 2
        %s670 = scalar_lea.vmem %s1, %s669
        %v672 = vld [vmem:[%s2] sm:$0xff]
        %v673 = vld [vmem:[%s2 + $0x8] sm:$0xff]
        %v674 = vld [vmem:[%s2 + $0x10] sm:$0x1]
        %v675 = vld [vmem:[%s2 + $0x18] sm:$0x1]
        %v676 = vld [vmem:[%s3] sm:$0xff]
        %v677 = vld [vmem:[%s3 + $0x8] sm:$0x1]
        %v678 = vld [vmem:[%s666] sm:$0x3]
        %v679 = vld [vmem:[%s6] sm:$0xf]
        %681 = vset.pattern.permute.xlu0 0
        %682 = vperm.xlu0 %681, %v679
        %v683 = vpop.permute.xlu0 %682
        %v686 = vperm.slane %v678, 0
        %v687 = vperm.slane %v678, 1
        %v690 = vmul.f32 %v683, %v686
        %v691 = vmul.f32 %v683, %v687
        %v692 = vand.u32 2147483647, %v690
        %vm693 = vcmp.le.f32.partialorder %v692, 0.7853982
        %vm694 = vcmp.lt.s32.totalorder %v690, 0
        %v695 = vand.u32 %v690, 2139095040
        %v696 = vshrl.u32 %v695, 23
        %v697 = vsub.s32 %v696, 127
        %v698 = vand.u32 2147483647, %v690
        %v699 = vand.u32 %v698, 8388607
        %v700 = vor.u32 %v699, 8388608
        %v701 = vsub.s32 0, %v700
        %v702 = vadd.s32 %v697, 1
        %vm703 = vcmp.gt.s32.totalorder %v702, 0
        %v704 = vsel %vm703, %v702, 0
        %v705 = vshrl.u32 %v704, 5
        %v706 = vand.u32 %v704, 31
        %v707 = vsub.s32 32, %v706
        %v708 = vshrl.u32 683565275, %v707
        %v709 = vshll.u32 683565275, %v706
        %v710 = vshrl.u32 2475754826, %v707
        %v711 = vor.u32 %v709, %v710
        %v712 = vshll.u32 2475754826, %v706
        %v713 = vshrl.u32 2131351028, %v707
        %v714 = vor.u32 %v712, %v713
        %v715 = vshll.u32 2131351028, %v706
        %v716 = vshrl.u32 2102212464, %v707
        %v717 = vor.u32 %v715, %v716
        %v718 = vshll.u32 2102212464, %v706
        %v719 = vshrl.u32 920167782, %v707
        %v720 = vor.u32 %v718, %v719
        %v721 = vshll.u32 920167782, %v706
        %v722 = vshrl.u32 1326507024, %v707
        %v723 = vor.u32 %v721, %v722
        %vm724 = vcmp.lt.s32.totalorder %v705, 1
        %vm725 = vcmp.lt.s32.totalorder %v705, 2
        %vm726 = vcmp.lt.s32.totalorder %v705, 3
        %vm727 = vcmp.lt.s32.totalorder %v705, 4
        %v728 = vsel %vm724, %v708, %v711
        %v729 = vsel %vm727, %v717, 2102212464
        %v730 = vsel %vm726, %v714, %v729
        %v731 = vsel %vm725, %v728, %v730
        %v732 = vsel %vm724, %v711, %v714
        %v733 = vsel %vm727, %v720, 920167782
        %v734 = vsel %vm726, %v717, %v733
        %v735 = vsel %vm725, %v732, %v734
        %v736 = vsel %vm724, %v714, %v717
        %v737 = vsel %vm727, %v723, 1326507024
        %v738 = vsel %vm726, %v720, %v737
        %v739 = vsel %vm725, %v736, %v738
        %v740 = vshll.u32 %v700, 8
        %v741 = vand.u32 %v740, 65535
        %v742 = vshrl.u32 %v740, 16
        %v743 = vand.u32 %v739, 65535
        %v744 = vshrl.u32 %v739, 16
        %v745 = vmul.u32 %v741, %v743
        %v746 = vmul.u32 %v741, %v744
        %v747 = vmul.u32 %v742, %v743
        %v748 = vmul.u32 %v742, %v744
        %v749 = vshll.u32 %v746, 16
        %v750 = vshrl.u32 %v746, 16
        %v751 = vshll.u32 %v747, 16
        %v752 = vshrl.u32 %v747, 16
        %vm753 = vc.u32 %v745, %v749
        %v754 = vsel %vm753, 1, 0
        %v755 = vadd.s32 %v745, %v749
        %v756 = vadd.s32 %v748, %v754
        %vm757 = vc.u32 %v755, %v751
        %v758 = vsel %vm757, 1, 0
        %v759 = vadd.s32 %v755, %v751
        %v760 = vadd.s32 %v756, %v758
        %v761 = vadd.s32 %v760, %v750
        %v762 = vadd.s32 %v761, %v752
        %v763 = vand.u32 %v740, 65535
        %v764 = vshrl.u32 %v740, 16
        %v765 = vand.u32 %v735, 65535
        %v766 = vshrl.u32 %v735, 16
        %v767 = vmul.u32 %v763, %v765
        %v768 = vmul.u32 %v763, %v766
        %v769 = vmul.u32 %v764, %v765
        %v770 = vmul.u32 %v764, %v766
        %v771 = vshll.u32 %v768, 16
        %v772 = vshrl.u32 %v768, 16
        %v773 = vshll.u32 %v769, 16
        %v774 = vshrl.u32 %v769, 16
        %vm775 = vc.u32 %v767, %v771
        %v776 = vsel %vm775, 1, 0
        %v777 = vadd.s32 %v767, %v771
        %v778 = vadd.s32 %v770, %v776
        %vm779 = vc.u32 %v777, %v773
        %v780 = vsel %vm779, 1, 0
        %v781 = vadd.s32 %v777, %v773
        %v782 = vadd.s32 %v778, %v780
        %v783 = vadd.s32 %v782, %v772
        %v784 = vadd.s32 %v783, %v774
        %v785 = vmul.u32 %v740, %v731
        %v786 = vadd.s32 %v762, %v781
        %vm787 = vc.u32 %v762, %v781
        %v788 = vadd.s32 %v784, 1
        %v789 = vsel %vm787, %v788, %v784
        %v790 = vadd.s32 %v785, %v789
        %v791 = vadd.s32 %v790, 536870912
        %v792 = vshrl.u32 %v791, 30
        %v793 = vshll.u32 %v792, 30
        %v794 = vsub.s32 %v790, %v793
        %vm795 = vcmp.lt.s32.totalorder %v794, 0
        %v796 = vsub.s32 0, %v794
        %v797 = vsel %vm795, %v796, %v794
        %v798 = vclz %v797
        %v799 = vsub.s32 %v798, 2
        %vm800 = vcmp.gt.s32.totalorder 0, %v799
        %v801 = vsel %vm800, 0, %v799
        %v802 = vsub.s32 32, %v801
        %v803 = vshll.u32 %v794, %v801
        %v804 = vshrl.u32 %v786, %v802
        %v805 = vor.u32 %v803, %v804
        %v806 = vsub.s32 4294967266, %v801
        %v807 = vadd.s32 %v806, 127
        %v808 = vshll.u32 %v807, 23
        %v809 = vor.u32 4788187, %v808
        %v810 = vand.u32 2147483647, %v809
        %v812 = vcvt.s32.f32 %v805
        %v813 = vmul.f32 %v812, %v810
        %v814 = vxor.u32 %v813, 2147483648
        %v815 = vsel %vm694, %v814, %v813
        %v816 = vsub.s32 4, %v792
        %v817 = vsel %vm694, %v816, %v792
        %v818 = vsel %vm693, %v690, %v815
        %v819 = vsel %vm693, 0, %v817
        %v820 = vmul.f32 %v818, %v818
        %v821 = vmul.f32 %v820, -0.001358992
        %v822 = vadd.f32 %v821, 0.041655596
        %v823 = vmul.f32 %v820, %v822
        %v824 = vadd.f32 %v823, -0.4999988
        %v825 = vmul.f32 %v820, %v824
        %v826 = vadd.f32 1.0, %v825
        %v827 = vmul.f32 %v818, %v818
        %v828 = vmul.f32 %v827, -0.00019511016
        %v829 = vadd.f32 %v828, 0.008332121
        %v830 = vmul.f32 %v827, %v829
        %v831 = vadd.f32 %v830, -0.16666654
        %v832 = vmul.f32 %v827, %v831
        %v833 = vadd.f32 %v832, 1.0
        %v834 = vmul.f32 %v833, %v818
        %vm835 = vweird.f32 %v690
        %v836 = vadd.s32 %v819, 3
        %v837 = vand.u32 %v836, 3
        %vm838 = vcmp.lt.s32.totalorder %v837, 2
        %vm839 = vcmp.eq.s32.totalorder %v837, 0
        %v840 = vxor.u32 %v834, 2147483648
        %v841 = vsel %vm839, %v826, %v840
        %vm842 = vcmp.eq.s32.totalorder %v837, 2
        %v843 = vxor.u32 %v826, 2147483648
        %v844 = vsel %vm842, %v843, %v834
        %v845 = vsel %vm838, %v841, %v844
        %v846 = vsel %vm835, nan, %v845
        %v847 = vand.u32 2147483647, %v691
        %vm848 = vcmp.le.f32.partialorder %v847, 0.7853982
        %vm849 = vcmp.lt.s32.totalorder %v691, 0
        %v850 = vand.u32 %v691, 2139095040
        %v851 = vshrl.u32 %v850, 23
        %v852 = vsub.s32 %v851, 127
        %v853 = vand.u32 2147483647, %v691
        %v854 = vand.u32 %v853, 8388607
        %v855 = vor.u32 %v854, 8388608
        %v856 = vsub.s32 0, %v855
        %v857 = vadd.s32 %v852, 1
        %vm858 = vcmp.gt.s32.totalorder %v857, 0
        %v859 = vsel %vm858, %v857, 0
        %v860 = vshrl.u32 %v859, 5
        %v861 = vand.u32 %v859, 31
        %v862 = vsub.s32 32, %v861
        %v863 = vshrl.u32 683565275, %v862
        %v864 = vshll.u32 683565275, %v861
        %v865 = vshrl.u32 2475754826, %v862
        %v866 = vor.u32 %v864, %v865
        %v867 = vshll.u32 2475754826, %v861
        %v868 = vshrl.u32 2131351028, %v862
        %v869 = vor.u32 %v867, %v868
        %v870 = vshll.u32 2131351028, %v861
        %v871 = vshrl.u32 2102212464, %v862
        %v872 = vor.u32 %v870, %v871
        %v873 = vshll.u32 2102212464, %v861
        %v874 = vshrl.u32 920167782, %v862
        %v875 = vor.u32 %v873, %v874
        %v876 = vshll.u32 920167782, %v861
        %v877 = vshrl.u32 1326507024, %v862
        %v878 = vor.u32 %v876, %v877
        %vm879 = vcmp.lt.s32.totalorder %v860, 1
        %vm880 = vcmp.lt.s32.totalorder %v860, 2
        %vm881 = vcmp.lt.s32.totalorder %v860, 3
        %vm882 = vcmp.lt.s32.totalorder %v860, 4
        %v883 = vsel %vm879, %v863, %v866
        %v884 = vsel %vm882, %v872, 2102212464
        %v885 = vsel %vm881, %v869, %v884
        %v886 = vsel %vm880, %v883, %v885
        %v887 = vsel %vm879, %v866, %v869
        %v888 = vsel %vm882, %v875, 920167782
        %v889 = vsel %vm881, %v872, %v888
        %v890 = vsel %vm880, %v887, %v889
        %v891 = vsel %vm879, %v869, %v872
        %v892 = vsel %vm882, %v878, 1326507024
        %v893 = vsel %vm881, %v875, %v892
        %v894 = vsel %vm880, %v891, %v893
        %v895 = vshll.u32 %v855, 8
        %v896 = vand.u32 %v895, 65535
        %v897 = vshrl.u32 %v895, 16
        %v898 = vand.u32 %v894, 65535
        %v899 = vshrl.u32 %v894, 16
        %v900 = vmul.u32 %v896, %v898
        %v901 = vmul.u32 %v896, %v899
        %v902 = vmul.u32 %v897, %v898
        %v903 = vmul.u32 %v897, %v899
        %v904 = vshll.u32 %v901, 16
        %v905 = vshrl.u32 %v901, 16
        %v906 = vshll.u32 %v902, 16
        %v907 = vshrl.u32 %v902, 16
        %vm908 = vc.u32 %v900, %v904
        %v909 = vsel %vm908, 1, 0
        %v910 = vadd.s32 %v900, %v904
        %v911 = vadd.s32 %v903, %v909
        %vm912 = vc.u32 %v910, %v906
        %v913 = vsel %vm912, 1, 0
        %v914 = vadd.s32 %v910, %v906
        %v915 = vadd.s32 %v911, %v913
        %v916 = vadd.s32 %v915, %v905
        %v917 = vadd.s32 %v916, %v907
        %v918 = vand.u32 %v895, 65535
        %v919 = vshrl.u32 %v895, 16
        %v920 = vand.u32 %v890, 65535
        %v921 = vshrl.u32 %v890, 16
        %v922 = vmul.u32 %v918, %v920
        %v923 = vmul.u32 %v918, %v921
        %v924 = vmul.u32 %v919, %v920
        %v925 = vmul.u32 %v919, %v921
        %v926 = vshll.u32 %v923, 16
        %v927 = vshrl.u32 %v923, 16
        %v928 = vshll.u32 %v924, 16
        %v929 = vshrl.u32 %v924, 16
        %vm930 = vc.u32 %v922, %v926
        %v931 = vsel %vm930, 1, 0
        %v932 = vadd.s32 %v922, %v926
        %v933 = vadd.s32 %v925, %v931
        %vm934 = vc.u32 %v932, %v928
        %v935 = vsel %vm934, 1, 0
        %v936 = vadd.s32 %v932, %v928
        %v937 = vadd.s32 %v933, %v935
        %v938 = vadd.s32 %v937, %v927
        %v939 = vadd.s32 %v938, %v929
        %v940 = vmul.u32 %v895, %v886
        %v941 = vadd.s32 %v917, %v936
        %vm942 = vc.u32 %v917, %v936
        %v943 = vadd.s32 %v939, 1
        %v944 = vsel %vm942, %v943, %v939
        %v945 = vadd.s32 %v940, %v944
        %v946 = vadd.s32 %v945, 536870912
        %v947 = vshrl.u32 %v946, 30
        %v948 = vshll.u32 %v947, 30
        %v949 = vsub.s32 %v945, %v948
        %vm950 = vcmp.lt.s32.totalorder %v949, 0
        %v951 = vsub.s32 0, %v949
        %v952 = vsel %vm950, %v951, %v949
        %v953 = vclz %v952
        %v954 = vsub.s32 %v953, 2
        %vm955 = vcmp.gt.s32.totalorder 0, %v954
        %v956 = vsel %vm955, 0, %v954
        %v957 = vsub.s32 32, %v956
        %v958 = vshll.u32 %v949, %v956
        %v959 = vshrl.u32 %v941, %v957
        %v960 = vor.u32 %v958, %v959
        %v961 = vsub.s32 4294967266, %v956
        %v962 = vadd.s32 %v961, 127
        %v963 = vshll.u32 %v962, 23
        %v964 = vor.u32 4788187, %v963
        %v965 = vand.u32 2147483647, %v964
        %v967 = vcvt.s32.f32 %v960
        %v968 = vmul.f32 %v967, %v965
        %v969 = vxor.u32 %v968, 2147483648
        %v970 = vsel %vm849, %v969, %v968
        %v971 = vsub.s32 4, %v947
        %v972 = vsel %vm849, %v971, %v947
        %v973 = vsel %vm848, %v691, %v970
        %v974 = vsel %vm848, 0, %v972
        %v975 = vmul.f32 %v973, %v973
        %v976 = vmul.f32 %v975, -0.001358992
        %v977 = vadd.f32 %v976, 0.041655596
        %v978 = vmul.f32 %v975, %v977
        %v979 = vadd.f32 %v978, -0.4999988
        %v980 = vmul.f32 %v975, %v979
        %v981 = vadd.f32 1.0, %v980
        %v982 = vmul.f32 %v973, %v973
        %v983 = vmul.f32 %v982, -0.00019511016
        %v984 = vadd.f32 %v983, 0.008332121
        %v985 = vmul.f32 %v982, %v984
        %v986 = vadd.f32 %v985, -0.16666654
        %v987 = vmul.f32 %v982, %v986
        %v988 = vadd.f32 %v987, 1.0
        %v989 = vmul.f32 %v988, %v973
        %vm990 = vweird.f32 %v691
        %v991 = vadd.s32 %v974, 3
        %v992 = vand.u32 %v991, 3
        %vm993 = vcmp.lt.s32.totalorder %v992, 2
        %vm994 = vcmp.eq.s32.totalorder %v992, 0
        %v995 = vxor.u32 %v989, 2147483648
        %v996 = vsel %vm994, %v981, %v995
        %vm997 = vcmp.eq.s32.totalorder %v992, 2
        %v998 = vxor.u32 %v981, 2147483648
        %v999 = vsel %vm997, %v998, %v989
        %v1000 = vsel %vm993, %v996, %v999
        %v1001 = vsel %vm990, nan, %v1000
        %v1002 = vand.u32 2147483647, %v690
        %vm1003 = vcmp.le.f32.partialorder %v1002, 0.7853982
        %vm1004 = vcmp.lt.s32.totalorder %v690, 0
        %v1005 = vand.u32 %v690, 2139095040
        %v1006 = vshrl.u32 %v1005, 23
        %v1007 = vsub.s32 %v1006, 127
        %v1008 = vand.u32 2147483647, %v690
        %v1009 = vand.u32 %v1008, 8388607
        %v1010 = vor.u32 %v1009, 8388608
        %v1011 = vsub.s32 0, %v1010
        %v1012 = vadd.s32 %v1007, 1
        %vm1013 = vcmp.gt.s32.totalorder %v1012, 0
        %v1014 = vsel %vm1013, %v1012, 0
        %v1015 = vshrl.u32 %v1014, 5
        %v1016 = vand.u32 %v1014, 31
        %v1017 = vsub.s32 32, %v1016
        %v1018 = vshrl.u32 683565275, %v1017
        %v1019 = vshll.u32 683565275, %v1016
        %v1020 = vshrl.u32 2475754826, %v1017
        %v1021 = vor.u32 %v1019, %v1020
        %v1022 = vshll.u32 2475754826, %v1016
        %v1023 = vshrl.u32 2131351028, %v1017
        %v1024 = vor.u32 %v1022, %v1023
        %v1025 = vshll.u32 2131351028, %v1016
        %v1026 = vshrl.u32 2102212464, %v1017
        %v1027 = vor.u32 %v1025, %v1026
        %v1028 = vshll.u32 2102212464, %v1016
        %v1029 = vshrl.u32 920167782, %v1017
        %v1030 = vor.u32 %v1028, %v1029
        %v1031 = vshll.u32 920167782, %v1016
        %v1032 = vshrl.u32 1326507024, %v1017
        %v1033 = vor.u32 %v1031, %v1032
        %vm1034 = vcmp.lt.s32.totalorder %v1015, 1
        %vm1035 = vcmp.lt.s32.totalorder %v1015, 2
        %vm1036 = vcmp.lt.s32.totalorder %v1015, 3
        %vm1037 = vcmp.lt.s32.totalorder %v1015, 4
        %v1038 = vsel %vm1034, %v1018, %v1021
        %v1039 = vsel %vm1037, %v1027, 2102212464
        %v1040 = vsel %vm1036, %v1024, %v1039
        %v1041 = vsel %vm1035, %v1038, %v1040
        %v1042 = vsel %vm1034, %v1021, %v1024
        %v1043 = vsel %vm1037, %v1030, 920167782
        %v1044 = vsel %vm1036, %v1027, %v1043
        %v1045 = vsel %vm1035, %v1042, %v1044
        %v1046 = vsel %vm1034, %v1024, %v1027
        %v1047 = vsel %vm1037, %v1033, 1326507024
        %v1048 = vsel %vm1036, %v1030, %v1047
        %v1049 = vsel %vm1035, %v1046, %v1048
        %v1050 = vshll.u32 %v1010, 8
        %v1051 = vand.u32 %v1050, 65535
        %v1052 = vshrl.u32 %v1050, 16
        %v1053 = vand.u32 %v1049, 65535
        %v1054 = vshrl.u32 %v1049, 16
        %v1055 = vmul.u32 %v1051, %v1053
        %v1056 = vmul.u32 %v1051, %v1054
        %v1057 = vmul.u32 %v1052, %v1053
        %v1058 = vmul.u32 %v1052, %v1054
        %v1059 = vshll.u32 %v1056, 16
        %v1060 = vshrl.u32 %v1056, 16
        %v1061 = vshll.u32 %v1057, 16
        %v1062 = vshrl.u32 %v1057, 16
        %vm1063 = vc.u32 %v1055, %v1059
        %v1064 = vsel %vm1063, 1, 0
        %v1065 = vadd.s32 %v1055, %v1059
        %v1066 = vadd.s32 %v1058, %v1064
        %vm1067 = vc.u32 %v1065, %v1061
        %v1068 = vsel %vm1067, 1, 0
        %v1069 = vadd.s32 %v1065, %v1061
        %v1070 = vadd.s32 %v1066, %v1068
        %v1071 = vadd.s32 %v1070, %v1060
        %v1072 = vadd.s32 %v1071, %v1062
        %v1073 = vand.u32 %v1050, 65535
        %v1074 = vshrl.u32 %v1050, 16
        %v1075 = vand.u32 %v1045, 65535
        %v1076 = vshrl.u32 %v1045, 16
        %v1077 = vmul.u32 %v1073, %v1075
        %v1078 = vmul.u32 %v1073, %v1076
        %v1079 = vmul.u32 %v1074, %v1075
        %v1080 = vmul.u32 %v1074, %v1076
        %v1081 = vshll.u32 %v1078, 16
        %v1082 = vshrl.u32 %v1078, 16
        %v1083 = vshll.u32 %v1079, 16
        %v1084 = vshrl.u32 %v1079, 16
        %vm1085 = vc.u32 %v1077, %v1081
        %v1086 = vsel %vm1085, 1, 0
        %v1087 = vadd.s32 %v1077, %v1081
        %v1088 = vadd.s32 %v1080, %v1086
        %vm1089 = vc.u32 %v1087, %v1083
        %v1090 = vsel %vm1089, 1, 0
        %v1091 = vadd.s32 %v1087, %v1083
        %v1092 = vadd.s32 %v1088, %v1090
        %v1093 = vadd.s32 %v1092, %v1082
        %v1094 = vadd.s32 %v1093, %v1084
        %v1095 = vmul.u32 %v1050, %v1041
        %v1096 = vadd.s32 %v1072, %v1091
        %vm1097 = vc.u32 %v1072, %v1091
        %v1098 = vadd.s32 %v1094, 1
        %v1099 = vsel %vm1097, %v1098, %v1094
        %v1100 = vadd.s32 %v1095, %v1099
        %v1101 = vadd.s32 %v1100, 536870912
        %v1102 = vshrl.u32 %v1101, 30
        %v1103 = vshll.u32 %v1102, 30
        %v1104 = vsub.s32 %v1100, %v1103
        %vm1105 = vcmp.lt.s32.totalorder %v1104, 0
        %v1106 = vsub.s32 0, %v1104
        %v1107 = vsel %vm1105, %v1106, %v1104
        %v1108 = vclz %v1107
        %v1109 = vsub.s32 %v1108, 2
        %vm1110 = vcmp.gt.s32.totalorder 0, %v1109
        %v1111 = vsel %vm1110, 0, %v1109
        %v1112 = vsub.s32 32, %v1111
        %v1113 = vshll.u32 %v1104, %v1111
        %v1114 = vshrl.u32 %v1096, %v1112
        %v1115 = vor.u32 %v1113, %v1114
        %v1116 = vsub.s32 4294967266, %v1111
        %v1117 = vadd.s32 %v1116, 127
        %v1118 = vshll.u32 %v1117, 23
        %v1119 = vor.u32 4788187, %v1118
        %v1120 = vand.u32 2147483647, %v1119
        %v1122 = vcvt.s32.f32 %v1115
        %v1123 = vmul.f32 %v1122, %v1120
        %v1124 = vxor.u32 %v1123, 2147483648
        %v1125 = vsel %vm1004, %v1124, %v1123
        %v1126 = vsub.s32 4, %v1102
        %v1127 = vsel %vm1004, %v1126, %v1102
        %v1128 = vsel %vm1003, %v690, %v1125
        %v1129 = vsel %vm1003, 0, %v1127
        %v1130 = vmul.f32 %v1128, %v1128
        %v1131 = vmul.f32 %v1130, -0.001358992
        %v1132 = vadd.f32 %v1131, 0.041655596
        %v1133 = vmul.f32 %v1130, %v1132
        %v1134 = vadd.f32 %v1133, -0.4999988
        %v1135 = vmul.f32 %v1130, %v1134
        %v1136 = vadd.f32 1.0, %v1135
        %v1137 = vmul.f32 %v1128, %v1128
        %v1138 = vmul.f32 %v1137, -0.00019511016
        %v1139 = vadd.f32 %v1138, 0.008332121
        %v1140 = vmul.f32 %v1137, %v1139
        %v1141 = vadd.f32 %v1140, -0.16666654
        %v1142 = vmul.f32 %v1137, %v1141
        %v1143 = vadd.f32 %v1142, 1.0
        %v1144 = vmul.f32 %v1143, %v1128
        %vm1145 = vweird.f32 %v690
        %v1146 = vand.u32 %v1129, 3
        %vm1147 = vcmp.lt.s32.totalorder %v1146, 2
        %vm1148 = vcmp.eq.s32.totalorder %v1146, 0
        %v1149 = vxor.u32 %v1144, 2147483648
        %v1150 = vsel %vm1148, %v1136, %v1149
        %vm1151 = vcmp.eq.s32.totalorder %v1146, 2
        %v1152 = vxor.u32 %v1136, 2147483648
        %v1153 = vsel %vm1151, %v1152, %v1144
        %v1154 = vsel %vm1147, %v1150, %v1153
        %v1155 = vsel %vm1145, nan, %v1154
        %v1156 = vand.u32 2147483647, %v691
        %vm1157 = vcmp.le.f32.partialorder %v1156, 0.7853982
        %vm1158 = vcmp.lt.s32.totalorder %v691, 0
        %v1159 = vand.u32 %v691, 2139095040
        %v1160 = vshrl.u32 %v1159, 23
        %v1161 = vsub.s32 %v1160, 127
        %v1162 = vand.u32 2147483647, %v691
        %v1163 = vand.u32 %v1162, 8388607
        %v1164 = vor.u32 %v1163, 8388608
        %v1165 = vsub.s32 0, %v1164
        %v1166 = vadd.s32 %v1161, 1
        %vm1167 = vcmp.gt.s32.totalorder %v1166, 0
        %v1168 = vsel %vm1167, %v1166, 0
        %v1169 = vshrl.u32 %v1168, 5
        %v1170 = vand.u32 %v1168, 31
        %v1171 = vsub.s32 32, %v1170
        %v1172 = vshrl.u32 683565275, %v1171
        %v1173 = vshll.u32 683565275, %v1170
        %v1174 = vshrl.u32 2475754826, %v1171
        %v1175 = vor.u32 %v1173, %v1174
        %v1176 = vshll.u32 2475754826, %v1170
        %v1177 = vshrl.u32 2131351028, %v1171
        %v1178 = vor.u32 %v1176, %v1177
        %v1179 = vshll.u32 2131351028, %v1170
        %v1180 = vshrl.u32 2102212464, %v1171
        %v1181 = vor.u32 %v1179, %v1180
        %v1182 = vshll.u32 2102212464, %v1170
        %v1183 = vshrl.u32 920167782, %v1171
        %v1184 = vor.u32 %v1182, %v1183
        %v1185 = vshll.u32 920167782, %v1170
        %v1186 = vshrl.u32 1326507024, %v1171
        %v1187 = vor.u32 %v1185, %v1186
        %vm1188 = vcmp.lt.s32.totalorder %v1169, 1
        %vm1189 = vcmp.lt.s32.totalorder %v1169, 2
        %vm1190 = vcmp.lt.s32.totalorder %v1169, 3
        %vm1191 = vcmp.lt.s32.totalorder %v1169, 4
        %v1192 = vsel %vm1188, %v1172, %v1175
        %v1193 = vsel %vm1191, %v1181, 2102212464
        %v1194 = vsel %vm1190, %v1178, %v1193
        %v1195 = vsel %vm1189, %v1192, %v1194
        %v1196 = vsel %vm1188, %v1175, %v1178
        %v1197 = vsel %vm1191, %v1184, 920167782
        %v1198 = vsel %vm1190, %v1181, %v1197
        %v1199 = vsel %vm1189, %v1196, %v1198
        %v1200 = vsel %vm1188, %v1178, %v1181
        %v1201 = vsel %vm1191, %v1187, 1326507024
        %v1202 = vsel %vm1190, %v1184, %v1201
        %v1203 = vsel %vm1189, %v1200, %v1202
        %v1204 = vshll.u32 %v1164, 8
        %v1205 = vand.u32 %v1204, 65535
        %v1206 = vshrl.u32 %v1204, 16
        %v1207 = vand.u32 %v1203, 65535
        %v1208 = vshrl.u32 %v1203, 16
        %v1209 = vmul.u32 %v1205, %v1207
        %v1210 = vmul.u32 %v1205, %v1208
        %v1211 = vmul.u32 %v1206, %v1207
        %v1212 = vmul.u32 %v1206, %v1208
        %v1213 = vshll.u32 %v1210, 16
        %v1214 = vshrl.u32 %v1210, 16
        %v1215 = vshll.u32 %v1211, 16
        %v1216 = vshrl.u32 %v1211, 16
        %vm1217 = vc.u32 %v1209, %v1213
        %v1218 = vsel %vm1217, 1, 0
        %v1219 = vadd.s32 %v1209, %v1213
        %v1220 = vadd.s32 %v1212, %v1218
        %vm1221 = vc.u32 %v1219, %v1215
        %v1222 = vsel %vm1221, 1, 0
        %v1223 = vadd.s32 %v1219, %v1215
        %v1224 = vadd.s32 %v1220, %v1222
        %v1225 = vadd.s32 %v1224, %v1214
        %v1226 = vadd.s32 %v1225, %v1216
        %v1227 = vand.u32 %v1204, 65535
        %v1228 = vshrl.u32 %v1204, 16
        %v1229 = vand.u32 %v1199, 65535
        %v1230 = vshrl.u32 %v1199, 16
        %v1231 = vmul.u32 %v1227, %v1229
        %v1232 = vmul.u32 %v1227, %v1230
        %v1233 = vmul.u32 %v1228, %v1229
        %v1234 = vmul.u32 %v1228, %v1230
        %v1235 = vshll.u32 %v1232, 16
        %v1236 = vshrl.u32 %v1232, 16
        %v1237 = vshll.u32 %v1233, 16
        %v1238 = vshrl.u32 %v1233, 16
        %vm1239 = vc.u32 %v1231, %v1235
        %v1240 = vsel %vm1239, 1, 0
        %v1241 = vadd.s32 %v1231, %v1235
        %v1242 = vadd.s32 %v1234, %v1240
        %vm1243 = vc.u32 %v1241, %v1237
        %v1244 = vsel %vm1243, 1, 0
        %v1245 = vadd.s32 %v1241, %v1237
        %v1246 = vadd.s32 %v1242, %v1244
        %v1247 = vadd.s32 %v1246, %v1236
        %v1248 = vadd.s32 %v1247, %v1238
        %v1249 = vmul.u32 %v1204, %v1195
        %v1250 = vadd.s32 %v1226, %v1245
        %vm1251 = vc.u32 %v1226, %v1245
        %v1252 = vadd.s32 %v1248, 1
        %v1253 = vsel %vm1251, %v1252, %v1248
        %v1254 = vadd.s32 %v1249, %v1253
        %v1255 = vadd.s32 %v1254, 536870912
        %v1256 = vshrl.u32 %v1255, 30
        %v1257 = vshll.u32 %v1256, 30
        %v1258 = vsub.s32 %v1254, %v1257
        %vm1259 = vcmp.lt.s32.totalorder %v1258, 0
        %v1260 = vsub.s32 0, %v1258
        %v1261 = vsel %vm1259, %v1260, %v1258
        %v1262 = vclz %v1261
        %v1263 = vsub.s32 %v1262, 2
        %vm1264 = vcmp.gt.s32.totalorder 0, %v1263
        %v1265 = vsel %vm1264, 0, %v1263
        %v1266 = vsub.s32 32, %v1265
        %v1267 = vshll.u32 %v1258, %v1265
        %v1268 = vshrl.u32 %v1250, %v1266
        %v1269 = vor.u32 %v1267, %v1268
        %v1270 = vsub.s32 4294967266, %v1265
        %v1271 = vadd.s32 %v1270, 127
        %v1272 = vshll.u32 %v1271, 23
        %v1273 = vor.u32 4788187, %v1272
        %v1274 = vand.u32 2147483647, %v1273
        %v1276 = vcvt.s32.f32 %v1269
        %v1277 = vmul.f32 %v1276, %v1274
        %v1278 = vxor.u32 %v1277, 2147483648
        %v1279 = vsel %vm1158, %v1278, %v1277
        %v1280 = vsub.s32 4, %v1256
        %v1281 = vsel %vm1158, %v1280, %v1256
        %v1282 = vsel %vm1157, %v691, %v1279
        %v1283 = vsel %vm1157, 0, %v1281
        %v1284 = vmul.f32 %v1282, %v1282
        %v1285 = vmul.f32 %v1284, -0.001358992
        %v1286 = vadd.f32 %v1285, 0.041655596
        %v1287 = vmul.f32 %v1284, %v1286
        %v1288 = vadd.f32 %v1287, -0.4999988
        %v1289 = vmul.f32 %v1284, %v1288
        %v1290 = vadd.f32 1.0, %v1289
        %v1291 = vmul.f32 %v1282, %v1282
        %v1292 = vmul.f32 %v1291, -0.00019511016
        %v1293 = vadd.f32 %v1292, 0.008332121
        %v1294 = vmul.f32 %v1291, %v1293
        %v1295 = vadd.f32 %v1294, -0.16666654
        %v1296 = vmul.f32 %v1291, %v1295
        %v1297 = vadd.f32 %v1296, 1.0
        %v1298 = vmul.f32 %v1297, %v1282
        %vm1299 = vweird.f32 %v691
        %v1300 = vand.u32 %v1283, 3
        %vm1301 = vcmp.lt.s32.totalorder %v1300, 2
        %vm1302 = vcmp.eq.s32.totalorder %v1300, 0
        %v1303 = vxor.u32 %v1298, 2147483648
        %v1304 = vsel %vm1302, %v1290, %v1303
        %vm1305 = vcmp.eq.s32.totalorder %v1300, 2
        %v1306 = vxor.u32 %v1290, 2147483648
        %v1307 = vsel %vm1305, %v1306, %v1298
        %v1308 = vsel %vm1301, %v1304, %v1307
        %v1309 = vsel %vm1299, nan, %v1308
        %v1312 = vrot.slane %v846, 7
        %v1313 = vrot.slane %v1001, 7
        %v1318 = vrot.slane %v1155, 3
        %v1319 = vrot.slane %v1309, 3
        %vm1322 = vcmask 1040384
        %v1323 = vsel %vm1322, %v686, %v1312
        %v1324 = vsel %vm1322, %v687, %v1313
        %vm1325 = vcmask 1044480
        %v1326 = vsel %vm1325, %v1323, %v1318
        %v1327 = vsel %vm1325, %v1324, %v1319
        %v1328 = vsel %vm1322, %v1318, 0.0
        %v1329 = vsel %vm1322, %v1319, 0.0
        %1330 = vrot.lane.b32.xlu0 %v1326, 17
        %v1331 = vpop.permute.xlu0 %1330
        %1332 = vrot.lane.b32.xlu0 %v1328, 17
        %v1333 = vpop.permute.xlu0 %1332
        %1334 = vrot.lane.b32.xlu0 %v1327, 17
        %v1335 = vpop.permute.xlu0 %1334
        %1336 = vrot.lane.b32.xlu0 %v1329, 17
        %v1337 = vpop.permute.xlu0 %1336
        %v1338 = vlaneseq
        %v1339 = vand.u32 %v1338, 127
        %vm1340 = vcmp.lt.s32.totalorder %v1339, 17
        %v1341 = vsel %vm1340, %v1331, %v1335
        %v1342 = vsel %vm1340, %v1333, %v1337
        %v1343 = vsel %vm1340, %v1335, %v1331
        %v1344 = vsel %vm1340, %v1337, %v1333
        %v1345 = vperm.slane %v672, 0
        %v1346 = vperm.slane %v673, 0
        %v1347 = vmul.f32 %v1343, %v1345
        %v1348 = vmul.f32 %v1341, %v1346
        %v1349 = vmul.f32 %v1344, %v1345
        %v1350 = vmul.f32 %v1342, %v1346
        %1351 = vrot.lane.b32.xlu0 %v1326, 16
        %v1352 = vpop.permute.xlu0 %1351
        %1353 = vrot.lane.b32.xlu0 %v1328, 16
        %v1354 = vpop.permute.xlu0 %1353
        %1355 = vrot.lane.b32.xlu0 %v1327, 16
        %v1356 = vpop.permute.xlu0 %1355
        %1357 = vrot.lane.b32.xlu0 %v1329, 16
        %v1358 = vpop.permute.xlu0 %1357
        %vm1359 = vcmp.lt.s32.totalorder %v1339, 16
        %v1360 = vsel %vm1359, %v1352, %v1356
        %v1361 = vsel %vm1359, %v1354, %v1358
        %v1362 = vsel %vm1359, %v1356, %v1352
        %v1363 = vsel %vm1359, %v1358, %v1354
        %v1364 = vperm.slane %v672, 1
        %v1365 = vperm.slane %v673, 1
        %v1366 = vmul.f32 %v1362, %v1364
        %v1367 = vmul.f32 %v1360, %v1365
        %v1368 = vmul.f32 %v1363, %v1364
        %v1369 = vmul.f32 %v1361, %v1365
        %1370 = vrot.lane.b32.xlu0 %v1326, 15
        %v1371 = vpop.permute.xlu0 %1370
        %1372 = vrot.lane.b32.xlu0 %v1328, 15
        %v1373 = vpop.permute.xlu0 %1372
        %1374 = vrot.lane.b32.xlu0 %v1327, 15
        %v1375 = vpop.permute.xlu0 %1374
        %1376 = vrot.lane.b32.xlu0 %v1329, 15
        %v1377 = vpop.permute.xlu0 %1376
        %vm1378 = vcmp.lt.s32.totalorder %v1339, 15
        %v1379 = vsel %vm1378, %v1371, %v1375
        %v1380 = vsel %vm1378, %v1373, %v1377
        %v1381 = vsel %vm1378, %v1375, %v1371
        %v1382 = vsel %vm1378, %v1377, %v1373
        %v1383 = vperm.slane %v672, 2
        %v1384 = vperm.slane %v673, 2
        %v1385 = vmul.f32 %v1381, %v1383
        %v1386 = vmul.f32 %v1379, %v1384
        %v1387 = vmul.f32 %v1382, %v1383
        %v1388 = vmul.f32 %v1380, %v1384
        %1389 = vrot.lane.b32.xlu0 %v1326, 1
        %v1390 = vpop.permute.xlu0 %1389
        %1391 = vrot.lane.b32.xlu0 %v1328, 1
        %v1392 = vpop.permute.xlu0 %1391
        %1393 = vrot.lane.b32.xlu0 %v1327, 1
        %v1394 = vpop.permute.xlu0 %1393
        %1395 = vrot.lane.b32.xlu0 %v1329, 1
        %v1396 = vpop.permute.xlu0 %1395
        %vm1397 = vcmp.lt.s32.totalorder %v1339, 1
        %v1398 = vsel %vm1397, %v1390, %v1394
        %v1399 = vsel %vm1397, %v1392, %v1396
        %v1400 = vsel %vm1397, %v1394, %v1390
        %v1401 = vsel %vm1397, %v1396, %v1392
        %v1402 = vperm.slane %v672, 3
        %v1403 = vperm.slane %v673, 3
        %v1404 = vmul.f32 %v1400, %v1402
        %v1405 = vmul.f32 %v1398, %v1403
        %v1406 = vmul.f32 %v1401, %v1402
        %v1407 = vmul.f32 %v1399, %v1403
        %1408 = vrot.lane.b32.xlu0 %v1326, 127
        %v1409 = vpop.permute.xlu0 %1408
        %1410 = vrot.lane.b32.xlu0 %v1328, 127
        %v1411 = vpop.permute.xlu0 %1410
        %1412 = vrot.lane.b32.xlu0 %v1327, 127
        %v1413 = vpop.permute.xlu0 %1412
        %1414 = vrot.lane.b32.xlu0 %v1329, 127
        %v1415 = vpop.permute.xlu0 %1414
        %vm1416 = vcmp.lt.s32.totalorder %v1339, 127
        %v1417 = vsel %vm1416, %v1409, %v1413
        %v1418 = vsel %vm1416, %v1411, %v1415
        %v1419 = vsel %vm1416, %v1413, %v1409
        %v1420 = vsel %vm1416, %v1415, %v1411
        %v1421 = vperm.slane %v672, 5
        %v1422 = vperm.slane %v673, 5
        %v1423 = vmul.f32 %v1417, %v1421
        %v1424 = vmul.f32 %v1419, %v1422
        %v1425 = vmul.f32 %v1418, %v1421
        %v1426 = vmul.f32 %v1420, %v1422
        %1427 = vrot.lane.b32.xlu0 %v1326, 113
        %v1428 = vpop.permute.xlu0 %1427
        %1429 = vrot.lane.b32.xlu0 %v1328, 113
        %v1430 = vpop.permute.xlu0 %1429
        %1431 = vrot.lane.b32.xlu0 %v1327, 113
        %v1432 = vpop.permute.xlu0 %1431
        %1433 = vrot.lane.b32.xlu0 %v1329, 113
        %v1434 = vpop.permute.xlu0 %1433
        %vm1435 = vcmp.lt.s32.totalorder %v1339, 113
        %v1436 = vsel %vm1435, %v1428, %v1432
        %v1437 = vsel %vm1435, %v1430, %v1434
        %v1438 = vsel %vm1435, %v1432, %v1428
        %v1439 = vsel %vm1435, %v1434, %v1430
        %v1440 = vperm.slane %v672, 6
        %v1441 = vperm.slane %v673, 6
        %v1442 = vmul.f32 %v1436, %v1440
        %v1443 = vmul.f32 %v1438, %v1441
        %v1444 = vmul.f32 %v1437, %v1440
        %v1445 = vmul.f32 %v1439, %v1441
        %1446 = vrot.lane.b32.xlu0 %v1326, 112
        %v1447 = vpop.permute.xlu0 %1446
        %1448 = vrot.lane.b32.xlu0 %v1328, 112
        %v1449 = vpop.permute.xlu0 %1448
        %1450 = vrot.lane.b32.xlu0 %v1327, 112
        %v1451 = vpop.permute.xlu0 %1450
        %1452 = vrot.lane.b32.xlu0 %v1329, 112
        %v1453 = vpop.permute.xlu0 %1452
        %vm1454 = vcmp.lt.s32.totalorder %v1339, 112
        %v1455 = vsel %vm1454, %v1447, %v1451
        %v1456 = vsel %vm1454, %v1449, %v1453
        %v1457 = vsel %vm1454, %v1451, %v1447
        %v1458 = vsel %vm1454, %v1453, %v1449
        %v1459 = vperm.slane %v672, 7
        %v1460 = vperm.slane %v673, 7
        %v1461 = vmul.f32 %v1455, %v1459
        %v1462 = vmul.f32 %v1457, %v1460
        %v1463 = vmul.f32 %v1456, %v1459
        %v1464 = vmul.f32 %v1458, %v1460
        %1465 = vrot.lane.b32.xlu0 %v1326, 111
        %v1466 = vpop.permute.xlu0 %1465
        %1467 = vrot.lane.b32.xlu0 %v1328, 111
        %v1468 = vpop.permute.xlu0 %1467
        %1469 = vrot.lane.b32.xlu0 %v1327, 111
        %v1470 = vpop.permute.xlu0 %1469
        %1471 = vrot.lane.b32.xlu0 %v1329, 111
        %v1472 = vpop.permute.xlu0 %1471
        %vm1473 = vcmp.lt.s32.totalorder %v1339, 111
        %v1474 = vsel %vm1473, %v1466, %v1470
        %v1475 = vsel %vm1473, %v1468, %v1472
        %v1476 = vsel %vm1473, %v1470, %v1466
        %v1477 = vsel %vm1473, %v1472, %v1468
        %v1478 = vperm.slane %v674, 0
        %v1479 = vperm.slane %v675, 0
        %v1480 = vmul.f32 %v1474, %v1478
        %v1481 = vmul.f32 %v1476, %v1479
        %v1482 = vmul.f32 %v1475, %v1478
        %v1483 = vmul.f32 %v1477, %v1479
        %v1484 = vpack.c.bf16 %v1349, %v1347
        %v1485 = vpack.c.bf16 %v1350, %v1348
        %v1486 = vpack.c.bf16 %v1368, %v1366
        %v1487 = vpack.c.bf16 %v1369, %v1367
        %v1488 = vpack.c.bf16 %v1387, %v1385
        %v1489 = vpack.c.bf16 %v1388, %v1386
        %v1490 = vpack.c.bf16 %v1406, %v1404
        %v1491 = vpack.c.bf16 %v1407, %v1405
        %v1492 = vpack.c.bf16 %v1328, %v1326
        %v1493 = vpack.c.bf16 %v1329, %v1327
        %v1494 = vpack.c.bf16 %v1425, %v1423
        %v1495 = vpack.c.bf16 %v1426, %v1424
        %v1496 = vpack.c.bf16 %v1444, %v1442
        %v1497 = vpack.c.bf16 %v1445, %v1443
        %v1498 = vpack.c.bf16 %v1463, %v1461
        %v1499 = vpack.c.bf16 %v1464, %v1462
        %v1500 = vpack.c.bf16 %v1482, %v1480
        %v1501 = vpack.c.bf16 %v1483, %v1481
        %v1502 = vld [vmem:[%s7] sm:$0xff]
        %v1503 = vld [vmem:[%s8] sm:$0xff]
        %1505 = vset.pattern.permute.xlu0 0
        %1506 = vperm.xlu0 %1505, %v1503
        %v1507 = vpop.permute.xlu0 %1506
        %v1510 = vunpack.c.l.b16 %v1502
        %v1511 = vunpack.c.h.b16 %v1502
        %v1512 = vpack.c.b16 %v1510, %v1510
        %v1513 = vpack.c.b16 %v1511, %v1511
        %vm1515 = vcmask 130048
        %v1517 = vsel %vm1515, %v1513, 0
        %1519 = vmatpush.bf16.msra.mxu0 %v1498
        %1520 = vmatpush.bf16.msra.mxu0 %v1496
        %1521 = vmatpush.bf16.msra.mxu0 %v1494
        %1522 = vmatpush.bf16.msra.mxu0 %v1492
        %1523 = vmatpush.bf16.msra.mxu0 %v1490
        %1524 = vmatpush.bf16.msra.mxu0 %v1488
        %1525 = vmatpush.bf16.msra.mxu0 %v1486
        %1526 = vmatpush.bf16.msra.mxu0 %v1484
        %1527 = vmatmul.bf16.gmra.mxu0 %v1512
        %v1528 = vpop.f32.mrf.mxu0
        %v1529 = vadd.f32 %v1507, %v1528
        %v1530 = vpop.f32.mrf.mxu0
        %1531 = vdwg.mxu0
        %1532 = vmatpush.bf16.msra.mxu0 0
        %1533 = vmatpush.bf16.msra.mxu0 0
        %1534 = vmatpush.bf16.msra.mxu0 0
        %1535 = vmatpush.bf16.msra.mxu0 0
        %1536 = vmatpush.bf16.msra.mxu0 0
        %1537 = vmatpush.bf16.msra.mxu0 0
        %1538 = vmatpush.bf16.msra.mxu0 0
        %1539 = vmatpush.bf16.msra.mxu0 %v1500
        %1540 = vmatmul.bf16.gmra.mxu0 %v1517
        %v1541 = vpop.f32.mrf.mxu0
        %v1542 = vadd.f32 %v1529, %v1541
        %v1543 = vpop.f32.mrf.mxu0
        %1544 = vdwg.mxu0
        %1545 = vmatpush.bf16.msra.mxu0 %v1499
        %1546 = vmatpush.bf16.msra.mxu0 %v1497
        %1547 = vmatpush.bf16.msra.mxu0 %v1495
        %1548 = vmatpush.bf16.msra.mxu0 %v1493
        %1549 = vmatpush.bf16.msra.mxu0 %v1491
        %1550 = vmatpush.bf16.msra.mxu0 %v1489
        %1551 = vmatpush.bf16.msra.mxu0 %v1487
        %1552 = vmatpush.bf16.msra.mxu0 %v1485
        %1553 = vmatmul.bf16.gmra.mxu0 %v1512
        %v1554 = vpop.f32.mrf.mxu0
        %v1555 = vadd.f32 %v1507, %v1554
        %v1556 = vpop.f32.mrf.mxu0
        %1557 = vdwg.mxu0
        %1558 = vmatpush.bf16.msra.mxu0 0
        %1559 = vmatpush.bf16.msra.mxu0 0
        %1560 = vmatpush.bf16.msra.mxu0 0
        %1561 = vmatpush.bf16.msra.mxu0 0
        %1562 = vmatpush.bf16.msra.mxu0 0
        %1563 = vmatpush.bf16.msra.mxu0 0
        %1564 = vmatpush.bf16.msra.mxu0 0
        %1565 = vmatpush.bf16.msra.mxu0 %v1501
        %1566 = vmatmul.bf16.gmra.mxu0 %v1517
        %v1567 = vpop.f32.mrf.mxu0
        %v1568 = vadd.f32 %v1555, %v1567
        %v1569 = vpop.f32.mrf.mxu0
        %1570 = vdwg.mxu0
        %v1571 = vmax.f32 %v1542, 0.0
        %v1572 = vmax.f32 %v1568, 0.0
        %1573 = vrot.lane.b32.xlu0 %v1571, 17
        %v1574 = vpop.permute.xlu0 %1573
        %1575 = vrot.lane.b32.xlu0 %v1572, 17
        %v1576 = vpop.permute.xlu0 %1575
        %v1577 = vsel %vm1340, %v1574, %v1576
        %v1578 = vsel %vm1340, %v1576, %v1574
        %v1579 = vmul.f32 %v1578, %v1345
        %v1580 = vmul.f32 %v1577, %v1346
        %1581 = vrot.lane.b32.xlu0 %v1571, 16
        %v1582 = vpop.permute.xlu0 %1581
        %1583 = vrot.lane.b32.xlu0 %v1572, 16
        %v1584 = vpop.permute.xlu0 %1583
        %v1585 = vsel %vm1359, %v1582, %v1584
        %v1586 = vsel %vm1359, %v1584, %v1582
        %v1587 = vmul.f32 %v1586, %v1364
        %v1588 = vmul.f32 %v1585, %v1365
        %1589 = vrot.lane.b32.xlu0 %v1571, 15
        %v1590 = vpop.permute.xlu0 %1589
        %1591 = vrot.lane.b32.xlu0 %v1572, 15
        %v1592 = vpop.permute.xlu0 %1591
        %v1593 = vsel %vm1378, %v1590, %v1592
        %v1594 = vsel %vm1378, %v1592, %v1590
        %v1595 = vmul.f32 %v1594, %v1383
        %v1596 = vmul.f32 %v1593, %v1384
        %1597 = vrot.lane.b32.xlu0 %v1571, 1
        %v1598 = vpop.permute.xlu0 %1597
        %1599 = vrot.lane.b32.xlu0 %v1572, 1
        %v1600 = vpop.permute.xlu0 %1599
        %v1601 = vsel %vm1397, %v1598, %v1600
        %v1602 = vsel %vm1397, %v1600, %v1598
        %v1603 = vmul.f32 %v1602, %v1402
        %v1604 = vmul.f32 %v1601, %v1403
        %1605 = vrot.lane.b32.xlu0 %v1571, 127
        %v1606 = vpop.permute.xlu0 %1605
        %1607 = vrot.lane.b32.xlu0 %v1572, 127
        %v1608 = vpop.permute.xlu0 %1607
        %v1609 = vsel %vm1416, %v1606, %v1608
        %v1610 = vsel %vm1416, %v1608, %v1606
        %v1611 = vmul.f32 %v1609, %v1421
        %v1612 = vmul.f32 %v1610, %v1422
        %1613 = vrot.lane.b32.xlu0 %v1571, 113
        %v1614 = vpop.permute.xlu0 %1613
        %1615 = vrot.lane.b32.xlu0 %v1572, 113
        %v1616 = vpop.permute.xlu0 %1615
        %v1617 = vsel %vm1435, %v1614, %v1616
        %v1618 = vsel %vm1435, %v1616, %v1614
        %v1619 = vmul.f32 %v1617, %v1440
        %v1620 = vmul.f32 %v1618, %v1441
        %1621 = vrot.lane.b32.xlu0 %v1571, 112
        %v1622 = vpop.permute.xlu0 %1621
        %1623 = vrot.lane.b32.xlu0 %v1572, 112
        %v1624 = vpop.permute.xlu0 %1623
        %v1625 = vsel %vm1454, %v1622, %v1624
        %v1626 = vsel %vm1454, %v1624, %v1622
        %v1627 = vmul.f32 %v1625, %v1459
        %v1628 = vmul.f32 %v1626, %v1460
        %1629 = vrot.lane.b32.xlu0 %v1571, 111
        %v1630 = vpop.permute.xlu0 %1629
        %1631 = vrot.lane.b32.xlu0 %v1572, 111
        %v1632 = vpop.permute.xlu0 %1631
        %v1633 = vsel %vm1473, %v1630, %v1632
        %v1634 = vsel %vm1473, %v1632, %v1630
        %v1635 = vmul.f32 %v1633, %v1478
        %v1636 = vmul.f32 %v1634, %v1479
        %v1637 = vpack.c.bf16 %v1587, %v1579
        %v1638 = vpack.c.bf16 %v1588, %v1580
        %v1639 = vpack.c.bf16 %v1603, %v1595
        %v1640 = vpack.c.bf16 %v1604, %v1596
        %v1641 = vpack.c.bf16 %v1611, %v1571
        %v1642 = vpack.c.bf16 %v1612, %v1572
        %v1643 = vpack.c.bf16 %v1627, %v1619
        %v1644 = vpack.c.bf16 %v1628, %v1620
        %v1645 = vpack.c.bf16 %v1635, %v1635
        %v1646 = vpack.c.bf16 %v1636, %v1636
        %v1647 = vld [vmem:[%s9] sm:$0xf]
        %v1648 = vld [vmem:[%s10] sm:$0xff]
        %1650 = vset.pattern.permute.xlu0 0
        %1651 = vperm.xlu0 %1650, %v1648
        %v1652 = vpop.permute.xlu0 %1651
        %vm1654 = vcmask 588800
        %v1656 = vsel %vm1654, %v1647, 0
        %vm1658 = vcmask 1043456
        %v1660 = vsel %vm1658, %v1645, 0
        %v1663 = vsel %vm1658, %v1646, 0
        %1665 = vmatpush.bf16.msra.mxu0 0
        %1666 = vmatpush.bf16.msra.mxu0 0
        %1667 = vmatpush.bf16.msra.mxu0 0
        %1668 = vmatpush.bf16.msra.mxu0 %v1660
        %1669 = vmatpush.bf16.msra.mxu0 %v1643
        %1670 = vmatpush.bf16.msra.mxu0 %v1641
        %1671 = vmatpush.bf16.msra.mxu0 %v1639
        %1672 = vmatpush.bf16.msra.mxu0 %v1637
        %1673 = vmatmul.bf16.gmra.mxu0 %v1656
        %v1674 = vpop.f32.mrf.mxu0
        %v1675 = vadd.f32 %v1652, %v1674
        %v1676 = vpop.f32.mrf.mxu0
        %1677 = vdwg.mxu0
        %1678 = vmatpush.bf16.msra.mxu0 0
        %1679 = vmatpush.bf16.msra.mxu0 0
        %1680 = vmatpush.bf16.msra.mxu0 0
        %1681 = vmatpush.bf16.msra.mxu0 %v1663
        %1682 = vmatpush.bf16.msra.mxu0 %v1644
        %1683 = vmatpush.bf16.msra.mxu0 %v1642
        %1684 = vmatpush.bf16.msra.mxu0 %v1640
        %1685 = vmatpush.bf16.msra.mxu0 %v1638
        %1686 = vmatmul.bf16.gmra.mxu0 %v1656
        %v1687 = vpop.f32.mrf.mxu0
        %v1688 = vadd.f32 %v1652, %v1687
        %v1689 = vpop.f32.mrf.mxu0
        %1690 = vdwg.mxu0
        %v1691 = vmax.f32 %v1675, 0.0
        %v1692 = vmax.f32 %v1688, 0.0
        %v1693 = vld [vmem:[%s4] sm:$0xff]
        %v1694 = vld [vmem:[%s4 + $0x8] sm:$0xff]
        %v1695 = vld [vmem:[%s4 + $0x10] sm:$0xff]
        %v1696 = vld [vmem:[%s4 + $0x18] sm:$0xff]
        %v1697 = vld [vmem:[%s4 + $0x20] sm:$0xff]
        %v1698 = vld [vmem:[%s4 + $0x28] sm:$0xff]
        %v1699 = vld [vmem:[%s4 + $0x30] sm:$0xff]
        %v1700 = vld [vmem:[%s4 + $0x38] sm:$0xff]
        %v1701 = vld [vmem:[%s4 + $0x40] sm:$0xff]
        %v1702 = vld [vmem:[%s4 + $0x48] sm:$0xff]
        %v1703 = vld [vmem:[%s4 + $0x50] sm:$0xff]
        %v1704 = vld [vmem:[%s4 + $0x58] sm:$0xff]
        %v1705 = vld [vmem:[%s4 + $0x60] sm:$0xff]
        %v1706 = vld [vmem:[%s4 + $0x68] sm:$0xff]
        %v1707 = vld [vmem:[%s4 + $0x70] sm:$0xff]
        %v1708 = vld [vmem:[%s4 + $0x78] sm:$0xff]
        %v1709 = vld [vmem:[%s4 + $0x80] sm:$0xff]
        %v1710 = vld [vmem:[%s4 + $0x88] sm:$0xff]
        %v1711 = vld [vmem:[%s4 + $0x90] sm:$0xff]
        %v1712 = vld [vmem:[%s4 + $0x98] sm:$0xff]
        %v1713 = vld [vmem:[%s4 + $0xa0] sm:$0xff]
        %v1714 = vld [vmem:[%s4 + $0xa8] sm:$0xff]
        %v1715 = vld [vmem:[%s4 + $0xb0] sm:$0xff]
        %v1716 = vld [vmem:[%s4 + $0xb8] sm:$0xff]
        %v1717 = vld [vmem:[%s4 + $0xc0] sm:$0xff]
        %v1718 = vld [vmem:[%s4 + $0xc8] sm:$0xff]
        %v1719 = vld [vmem:[%s4 + $0xd0] sm:$0xff]
        %v1720 = vld [vmem:[%s4 + $0xd8] sm:$0xff]
        %v1721 = vld [vmem:[%s4 + $0xe0] sm:$0xff]
        %v1722 = vld [vmem:[%s4 + $0xe8] sm:$0xff]
        %v1723 = vld [vmem:[%s4 + $0xf0] sm:$0xff]
        %v1724 = vld [vmem:[%s4 + $0xf8] sm:$0xff]
        %1725 = vmatpush.msra.mxu0 %v1708
        %1726 = vmatpush.msra.mxu0 %v1707
        %1727 = vmatpush.msra.mxu0 %v1706
        %1728 = vmatpush.msra.mxu0 %v1705
        %1729 = vmatpush.msra.mxu0 %v1704
        %1730 = vmatpush.msra.mxu0 %v1703
        %1731 = vmatpush.msra.mxu0 %v1702
        %1732 = vmatpush.msra.mxu0 %v1701
        %1733 = vmatpush.msra.mxu0 %v1700
        %1734 = vmatpush.msra.mxu0 %v1699
        %1735 = vmatpush.msra.mxu0 %v1698
        %1736 = vmatpush.msra.mxu0 %v1697
        %1737 = vmatpush.msra.mxu0 %v1696
        %1738 = vmatpush.msra.mxu0 %v1695
        %1739 = vmatpush.msra.mxu0 %v1694
        %1740 = vmatpush.msra.mxu0 %v1693
        %1741 = vmatmul.f32.gmra.mxu0 %v1691
        %v1742 = vpop.f32.mrf.mxu0
        %v1743 = vadd.f32 0.0, %v1742
        %1744 = vdwg.mxu0
        %1745 = vmatpush.msra.mxu0 %v1724
        %1746 = vmatpush.msra.mxu0 %v1723
        %1747 = vmatpush.msra.mxu0 %v1722
        %1748 = vmatpush.msra.mxu0 %v1721
        %1749 = vmatpush.msra.mxu0 %v1720
        %1750 = vmatpush.msra.mxu0 %v1719
        %1751 = vmatpush.msra.mxu0 %v1718
        %1752 = vmatpush.msra.mxu0 %v1717
        %1753 = vmatpush.msra.mxu0 %v1716
        %1754 = vmatpush.msra.mxu0 %v1715
        %1755 = vmatpush.msra.mxu0 %v1714
        %1756 = vmatpush.msra.mxu0 %v1713
        %1757 = vmatpush.msra.mxu0 %v1712
        %1758 = vmatpush.msra.mxu0 %v1711
        %1759 = vmatpush.msra.mxu0 %v1710
        %1760 = vmatpush.msra.mxu0 %v1709
        %1761 = vmatmul.f32.gmra.mxu0 %v1692
        %v1762 = vpop.f32.mrf.mxu0
        %v1763 = vadd.f32 %v1743, %v1762
        %1764 = vdwg.mxu0
        %vm1765 = vcmask 1048064
        %1766 = vrot.lane.b32.xlu0 %v1763, 64
        %v1767 = vpop.permute.xlu0 %1766
        %v1768 = vsel %vm1765, %v1767, %v1763
        %1769 = vrot.lane.b32.xlu0 %v1768, 64
        %v1770 = vpop.permute.xlu0 %1769
        %v1771 = vsel %vm1765, %v1770, %v1763
        %v1772 = vperm.slane %v676, 0
        %1774 = vrot.lane.b32.xlu0 %v1772, 55
        %v1775 = vpop.permute.xlu0 %1774
        %v1777 = vmul.f32 %v1771, %v1775
        %v1778 = vperm.slane %v676, 1
        %1780 = vrot.lane.b32.xlu0 %v1778, 56
        %v1781 = vpop.permute.xlu0 %1780
        %v1783 = vmul.f32 %v1771, %v1781
        %v1784 = vperm.slane %v676, 2
        %1786 = vrot.lane.b32.xlu0 %v1784, 57
        %v1787 = vpop.permute.xlu0 %1786
        %v1789 = vmul.f32 %v1771, %v1787
        %v1790 = vperm.slane %v676, 3
        %1792 = vrot.lane.b32.xlu0 %v1790, 63
        %v1793 = vpop.permute.xlu0 %1792
        %v1795 = vmul.f32 %v1771, %v1793
        %v1796 = vperm.slane %v676, 5
        %1798 = vrot.lane.b32.xlu0 %v1796, 1
        %v1799 = vpop.permute.xlu0 %1798
        %v1801 = vmul.f32 %v1771, %v1799
        %v1802 = vperm.slane %v676, 6
        %1804 = vrot.lane.b32.xlu0 %v1802, 7
        %v1805 = vpop.permute.xlu0 %1804
        %v1807 = vmul.f32 %v1771, %v1805
        %v1808 = vperm.slane %v676, 7
        %1810 = vrot.lane.b32.xlu0 %v1808, 8
        %v1811 = vpop.permute.xlu0 %1810
        %v1813 = vmul.f32 %v1771, %v1811
        %v1814 = vperm.slane %v677, 0
        %1816 = vrot.lane.b32.xlu0 %v1814, 9
        %v1817 = vpop.permute.xlu0 %1816
        %v1819 = vmul.f32 %v1771, %v1817
        %1821 = vrot.lane.b32.xlu0 %v1783, 127
        %v1822 = vpop.permute.xlu0 %1821
        %1825 = vrot.lane.b32.xlu0 %v1789, 126
        %v1826 = vpop.permute.xlu0 %1825
        %1829 = vrot.lane.b32.xlu0 %v1795, 120
        %v1830 = vpop.permute.xlu0 %1829
        %1833 = vrot.lane.b32.xlu0 %v1763, 55
        %v1834 = vpop.permute.xlu0 %1833
        %1837 = vrot.lane.b32.xlu0 %v1801, 54
        %v1838 = vpop.permute.xlu0 %1837
        %1841 = vrot.lane.b32.xlu0 %v1807, 48
        %v1842 = vpop.permute.xlu0 %1841
        %1845 = vrot.lane.b32.xlu0 %v1813, 47
        %v1846 = vpop.permute.xlu0 %1845
        %1849 = vrot.lane.b32.xlu0 %v1819, 46
        %v1850 = vpop.permute.xlu0 %1849
        %v1852 = vpack.c.bf16 %v1822, %v1777
        %v1853 = vpack.c.bf16 %v1830, %v1826
        %v1854 = vpack.c.bf16 %v1838, %v1834
        %v1855 = vpack.c.bf16 %v1846, %v1842
        %v1856 = vpack.c.bf16 %v1850, %v1850
        %v1857 = vld [vmem:[%s11] sm:$0xf]
        %v1858 = vld [vmem:[%s11 + $0x4] sm:$0xf]
        %v1859 = vld [vmem:[%s12] sm:$0xff]
        %v1860 = vld [vmem:[%s12 + $0x8] sm:$0xff]
        %1862 = vset.pattern.permute.xlu0 0
        %1863 = vperm.xlu0 %1862, %v1859
        %v1864 = vpop.permute.xlu0 %1863
        %1867 = vset.pattern.permute.xlu0 0
        %1868 = vperm.xlu0 %1867, %v1860
        %v1869 = vpop.permute.xlu0 %1868
        %v1873 = vunpack.c.l.b16 %v1857
        %v1874 = vunpack.c.l.b16 %v1858
        %v1875 = vpack.c.b16 %v1874, %v1873
        %1881 = vrot.lane.b32.xlu0 %v1852, 73
        %v1882 = vpop.permute.xlu0 %1881
        %1883 = vrot.lane.b32.xlu0 %v1853, 73
        %v1884 = vpop.permute.xlu0 %1883
        %1885 = vrot.lane.b32.xlu0 %v1854, 73
        %v1886 = vpop.permute.xlu0 %1885
        %1887 = vrot.lane.b32.xlu0 %v1855, 73
        %v1888 = vpop.permute.xlu0 %1887
        %1889 = vrot.lane.b32.xlu0 %v1856, 73
        %v1890 = vpop.permute.xlu0 %1889
        %v1896 = vsel %vm1654, %v1875, 0
        %v1899 = vsel %vm1658, %v1890, 0
        %1901 = vmatpush.bf16.msra.mxu0 0
        %1902 = vmatpush.bf16.msra.mxu0 0
        %1903 = vmatpush.bf16.msra.mxu0 0
        %1904 = vmatpush.bf16.msra.mxu0 %v1899
        %1905 = vmatpush.bf16.msra.mxu0 %v1888
        %1906 = vmatpush.bf16.msra.mxu0 %v1886
        %1907 = vmatpush.bf16.msra.mxu0 %v1884
        %1908 = vmatpush.bf16.msra.mxu0 %v1882
        %1909 = vmatmul.bf16.gmra.mxu0 %v1896
        %v1910 = vpop.f32.mrf.mxu0
        %v1911 = vadd.f32 %v1864, %v1910
        %v1912 = vpop.f32.mrf.mxu0
        %v1913 = vadd.f32 %v1869, %v1912
        %1914 = vdwg.mxu0
        %v1915 = vmax.f32 %v1911, 0.0
        %v1916 = vmax.f32 %v1913, 0.0
        %1917 = vrot.lane.b32.xlu0 %v1915, 64
        %v1918 = vpop.permute.xlu0 %1917
        %v1919 = vsel %vm1765, %v1918, %v1915
        %1920 = vrot.lane.b32.xlu0 %v1916, 64
        %v1921 = vpop.permute.xlu0 %1920
        %v1922 = vsel %vm1765, %v1921, %v1916
        %1923 = vrot.lane.b32.xlu0 %v1919, 64
        %v1924 = vpop.permute.xlu0 %1923
        %1925 = vrot.lane.b32.xlu0 %v1922, 64
        %v1926 = vpop.permute.xlu0 %1925
        %v1927 = vsel %vm1765, %v1924, %v1915
        %v1928 = vsel %vm1765, %v1926, %v1916
        %v1929 = vmul.f32 %v1927, %v1775
        %v1930 = vmul.f32 %v1928, %v1775
        %v1931 = vmul.f32 %v1927, %v1781
        %v1932 = vmul.f32 %v1928, %v1781
        %v1933 = vmul.f32 %v1927, %v1787
        %v1934 = vmul.f32 %v1928, %v1787
        %v1935 = vmul.f32 %v1927, %v1793
        %v1936 = vmul.f32 %v1928, %v1793
        %v1937 = vmul.f32 %v1927, %v1799
        %v1938 = vmul.f32 %v1928, %v1799
        %v1939 = vmul.f32 %v1927, %v1805
        %v1940 = vmul.f32 %v1928, %v1805
        %v1941 = vmul.f32 %v1927, %v1811
        %v1942 = vmul.f32 %v1928, %v1811
        %v1943 = vmul.f32 %v1927, %v1817
        %v1944 = vmul.f32 %v1928, %v1817
        %1947 = vrot.lane.b32.xlu0 %v1931, 127
        %v1948 = vpop.permute.xlu0 %1947
        %1949 = vrot.lane.b32.xlu0 %v1932, 127
        %v1950 = vpop.permute.xlu0 %1949
        %1955 = vrot.lane.b32.xlu0 %v1933, 126
        %v1956 = vpop.permute.xlu0 %1955
        %1957 = vrot.lane.b32.xlu0 %v1934, 126
        %v1958 = vpop.permute.xlu0 %1957
        %1963 = vrot.lane.b32.xlu0 %v1935, 120
        %v1964 = vpop.permute.xlu0 %1963
        %1965 = vrot.lane.b32.xlu0 %v1936, 120
        %v1966 = vpop.permute.xlu0 %1965
        %1971 = vrot.lane.b32.xlu0 %v1915, 55
        %v1972 = vpop.permute.xlu0 %1971
        %1973 = vrot.lane.b32.xlu0 %v1916, 55
        %v1974 = vpop.permute.xlu0 %1973
        %1979 = vrot.lane.b32.xlu0 %v1937, 54
        %v1980 = vpop.permute.xlu0 %1979
        %1981 = vrot.lane.b32.xlu0 %v1938, 54
        %v1982 = vpop.permute.xlu0 %1981
        %1987 = vrot.lane.b32.xlu0 %v1939, 48
        %v1988 = vpop.permute.xlu0 %1987
        %1989 = vrot.lane.b32.xlu0 %v1940, 48
        %v1990 = vpop.permute.xlu0 %1989
        %1995 = vrot.lane.b32.xlu0 %v1941, 47
        %v1996 = vpop.permute.xlu0 %1995
        %1997 = vrot.lane.b32.xlu0 %v1942, 47
        %v1998 = vpop.permute.xlu0 %1997
        %2003 = vrot.lane.b32.xlu0 %v1943, 46
        %v2004 = vpop.permute.xlu0 %2003
        %2005 = vrot.lane.b32.xlu0 %v1944, 46
        %v2006 = vpop.permute.xlu0 %2005
        %v2009 = vpack.c.bf16 %v1930, %v1929
        %v2010 = vpack.c.bf16 %v1950, %v1948
        %v2011 = vpack.c.bf16 %v1958, %v1956
        %v2012 = vpack.c.bf16 %v1966, %v1964
        %v2013 = vpack.c.bf16 %v1974, %v1972
        %v2014 = vpack.c.bf16 %v1982, %v1980
        %v2015 = vpack.c.bf16 %v1990, %v1988
        %v2016 = vpack.c.bf16 %v1998, %v1996
        %v2017 = vpack.c.bf16 %v2006, %v2004
        %v2018 = vld [vmem:[%s13] sm:$0xff]
        %v2019 = vld [vmem:[%s13 + $0x8] sm:$0xff]
        %v2020 = vld [vmem:[%s14] sm:$0xff]
        %v2021 = vld [vmem:[%s14 + $0x8] sm:$0xff]
        %2023 = vset.pattern.permute.xlu0 0
        %2024 = vperm.xlu0 %2023, %v2020
        %v2025 = vpop.permute.xlu0 %2024
        %2028 = vset.pattern.permute.xlu0 0
        %2029 = vperm.xlu0 %2028, %v2021
        %v2030 = vpop.permute.xlu0 %2029
        %v2034 = vunpack.c.l.b16 %v2018
        %v2035 = vunpack.c.h.b16 %v2018
        %v2036 = vunpack.c.l.b16 %v2019
        %v2037 = vunpack.c.h.b16 %v2019
        %v2038 = vpack.c.b16 %v2036, %v2034
        %v2039 = vpack.c.b16 %v2037, %v2035
        %2050 = vrot.lane.b32.xlu0 %v2009, 73
        %v2051 = vpop.permute.xlu0 %2050
        %2052 = vrot.lane.b32.xlu0 %v2010, 73
        %v2053 = vpop.permute.xlu0 %2052
        %2054 = vrot.lane.b32.xlu0 %v2011, 73
        %v2055 = vpop.permute.xlu0 %2054
        %2056 = vrot.lane.b32.xlu0 %v2012, 73
        %v2057 = vpop.permute.xlu0 %2056
        %2058 = vrot.lane.b32.xlu0 %v2013, 73
        %v2059 = vpop.permute.xlu0 %2058
        %2060 = vrot.lane.b32.xlu0 %v2014, 73
        %v2061 = vpop.permute.xlu0 %2060
        %2062 = vrot.lane.b32.xlu0 %v2015, 73
        %v2063 = vpop.permute.xlu0 %2062
        %2064 = vrot.lane.b32.xlu0 %v2016, 73
        %v2065 = vpop.permute.xlu0 %2064
        %2066 = vrot.lane.b32.xlu0 %v2017, 73
        %v2067 = vpop.permute.xlu0 %2066
        %v2078 = vsel %vm1515, %v2039, 0
        %2080 = vmatpush.bf16.msra.mxu0 %v2065
        %2081 = vmatpush.bf16.msra.mxu0 %v2063
        %2082 = vmatpush.bf16.msra.mxu0 %v2061
        %2083 = vmatpush.bf16.msra.mxu0 %v2059
        %2084 = vmatpush.bf16.msra.mxu0 %v2057
        %2085 = vmatpush.bf16.msra.mxu0 %v2055
        %2086 = vmatpush.bf16.msra.mxu0 %v2053
        %2087 = vmatpush.bf16.msra.mxu0 %v2051
        %2088 = vmatmul.bf16.gmra.mxu0 %v2038
        %v2089 = vpop.f32.mrf.mxu0
        %v2090 = vadd.f32 %v2025, %v2089
        %v2091 = vpop.f32.mrf.mxu0
        %v2092 = vadd.f32 %v2030, %v2091
        %2093 = vdwg.mxu0
        %2094 = vmatpush.bf16.msra.mxu0 0
        %2095 = vmatpush.bf16.msra.mxu0 0
        %2096 = vmatpush.bf16.msra.mxu0 0
        %2097 = vmatpush.bf16.msra.mxu0 0
        %2098 = vmatpush.bf16.msra.mxu0 0
        %2099 = vmatpush.bf16.msra.mxu0 0
        %2100 = vmatpush.bf16.msra.mxu0 0
        %2101 = vmatpush.bf16.msra.mxu0 %v2067
        %2102 = vmatmul.bf16.gmra.mxu0 %v2078
        %v2103 = vpop.f32.mrf.mxu0
        %v2104 = vadd.f32 %v2090, %v2103
        %v2105 = vpop.f32.mrf.mxu0
        %v2106 = vadd.f32 %v2092, %v2105
        %2107 = vdwg.mxu0
        %v2108 = vmax.f32 %v2104, 0.0
        %v2109 = vmax.f32 %v2106, 0.0
        %v2110 = vld [vmem:[%s5] sm:$0xff]
        %v2111 = vld [vmem:[%s5 + $0x8] sm:$0xff]
        %v2112 = vld [vmem:[%s5 + $0x10] sm:$0xff]
        %v2113 = vld [vmem:[%s5 + $0x18] sm:$0xff]
        %v2114 = vld [vmem:[%s5 + $0x20] sm:$0xff]
        %v2115 = vld [vmem:[%s5 + $0x28] sm:$0xff]
        %v2116 = vld [vmem:[%s5 + $0x30] sm:$0xff]
        %v2117 = vld [vmem:[%s5 + $0x38] sm:$0xff]
        %v2118 = vld [vmem:[%s5 + $0x40] sm:$0xff]
        %v2119 = vld [vmem:[%s5 + $0x48] sm:$0xff]
        %v2120 = vld [vmem:[%s5 + $0x50] sm:$0xff]
        %v2121 = vld [vmem:[%s5 + $0x58] sm:$0xff]
        %v2122 = vld [vmem:[%s5 + $0x60] sm:$0xff]
        %v2123 = vld [vmem:[%s5 + $0x68] sm:$0xff]
        %v2124 = vld [vmem:[%s5 + $0x70] sm:$0xff]
        %v2125 = vld [vmem:[%s5 + $0x78] sm:$0xff]
        %vm2126 = vcmask 523264
        %v2128 = vsel %vm2126, %v2108, 0
        %v2131 = vsel %vm2126, %v2109, 0
        %2133 = vmatpush.msra.mxu0 0.0
        %2134 = vmatpush.msra.mxu0 0.0
        %2135 = vmatpush.msra.mxu0 0.0
        %2136 = vmatpush.msra.mxu0 0.0
        %2137 = vmatpush.msra.mxu0 0.0
        %2138 = vmatpush.msra.mxu0 0.0
        %2139 = vmatpush.msra.mxu0 0.0
        %2140 = vmatpush.msra.mxu0 0.0
        %2141 = vmatpush.msra.mxu0 %v2124
        %2142 = vmatpush.msra.mxu0 %v2122
        %2143 = vmatpush.msra.mxu0 %v2120
        %2144 = vmatpush.msra.mxu0 %v2118
        %2145 = vmatpush.msra.mxu0 %v2116
        %2146 = vmatpush.msra.mxu0 %v2114
        %2147 = vmatpush.msra.mxu0 %v2112
        %2148 = vmatpush.msra.mxu0 %v2110
        %2149 = vmatmul.f32.gmra.mxu0 %v2128
        %v2150 = vpop.f32.mrf.mxu0
        %v2151 = vadd.f32 0.0, %v2150
        %2152 = vmatmul.f32.gmra.mxu0 %v2131
        %v2153 = vpop.f32.mrf.mxu0
        %v2154 = vadd.f32 0.0, %v2153
        %2155 = vdwg.mxu0
        %2156 = vmatpush.msra.mxu0 0.0
        %2157 = vmatpush.msra.mxu0 0.0
        %2158 = vmatpush.msra.mxu0 0.0
        %2159 = vmatpush.msra.mxu0 0.0
        %2160 = vmatpush.msra.mxu0 0.0
        %2161 = vmatpush.msra.mxu0 0.0
        %2162 = vmatpush.msra.mxu0 0.0
        %2163 = vmatpush.msra.mxu0 0.0
        %2164 = vmatpush.msra.mxu0 %v2125
        %2165 = vmatpush.msra.mxu0 %v2123
        %2166 = vmatpush.msra.mxu0 %v2121
        %2167 = vmatpush.msra.mxu0 %v2119
        %2168 = vmatpush.msra.mxu0 %v2117
        %2169 = vmatpush.msra.mxu0 %v2115
        %2170 = vmatpush.msra.mxu0 %v2113
        %2171 = vmatpush.msra.mxu0 %v2111
        %2172 = vmatmul.f32.gmra.mxu0 %v2128
        %v2173 = vpop.f32.mrf.mxu0
        %v2174 = vadd.f32 0.0, %v2173
        %2175 = vmatmul.f32.gmra.mxu0 %v2131
        %v2176 = vpop.f32.mrf.mxu0
        %v2177 = vadd.f32 0.0, %v2176
        %2178 = vdwg.mxu0
        %2179 = vrot.lane.b32.xlu0 %v2151, 17
        %v2180 = vpop.permute.xlu0 %2179
        %2181 = vrot.lane.b32.xlu0 %v2154, 17
        %v2182 = vpop.permute.xlu0 %2181
        %2183 = vrot.lane.b32.xlu0 %v2174, 17
        %v2184 = vpop.permute.xlu0 %2183
        %2185 = vrot.lane.b32.xlu0 %v2177, 17
        %v2186 = vpop.permute.xlu0 %2185
        %v2187 = vsel %vm1340, %v2180, %v2184
        %v2188 = vsel %vm1340, %v2182, %v2186
        %v2189 = vsel %vm1340, %v2184, %v2180
        %v2190 = vsel %vm1340, %v2186, %v2182
        %v2191 = vmul.f32 %v2189, %v1345
        %v2192 = vmul.f32 %v2187, %v1346
        %v2193 = vmul.f32 %v2190, %v1345
        %v2194 = vmul.f32 %v2188, %v1346
        %2195 = vrot.lane.b32.xlu0 %v1691, 17
        %v2196 = vpop.permute.xlu0 %2195
        %2197 = vrot.lane.b32.xlu0 %v1692, 17
        %v2198 = vpop.permute.xlu0 %2197
        %v2199 = vsel %vm1340, %v2196, %v2198
        %v2200 = vsel %vm1340, %v2198, %v2196
        %v2201 = vmul.f32 %v2200, %v1345
        %v2202 = vmul.f32 %v2199, %v1346
        %2203 = vrot.lane.b32.xlu0 %v2151, 16
        %v2204 = vpop.permute.xlu0 %2203
        %2205 = vrot.lane.b32.xlu0 %v2154, 16
        %v2206 = vpop.permute.xlu0 %2205
        %2207 = vrot.lane.b32.xlu0 %v2174, 16
        %v2208 = vpop.permute.xlu0 %2207
        %2209 = vrot.lane.b32.xlu0 %v2177, 16
        %v2210 = vpop.permute.xlu0 %2209
        %v2211 = vsel %vm1359, %v2204, %v2208
        %v2212 = vsel %vm1359, %v2206, %v2210
        %v2213 = vsel %vm1359, %v2208, %v2204
        %v2214 = vsel %vm1359, %v2210, %v2206
        %v2215 = vmul.f32 %v2213, %v1364
        %v2216 = vmul.f32 %v2211, %v1365
        %v2217 = vmul.f32 %v2214, %v1364
        %v2218 = vmul.f32 %v2212, %v1365
        %2219 = vrot.lane.b32.xlu0 %v1691, 16
        %v2220 = vpop.permute.xlu0 %2219
        %2221 = vrot.lane.b32.xlu0 %v1692, 16
        %v2222 = vpop.permute.xlu0 %2221
        %v2223 = vsel %vm1359, %v2220, %v2222
        %v2224 = vsel %vm1359, %v2222, %v2220
        %v2225 = vmul.f32 %v2224, %v1364
        %v2226 = vmul.f32 %v2223, %v1365
        %2227 = vrot.lane.b32.xlu0 %v2151, 15
        %v2228 = vpop.permute.xlu0 %2227
        %2229 = vrot.lane.b32.xlu0 %v2154, 15
        %v2230 = vpop.permute.xlu0 %2229
        %2231 = vrot.lane.b32.xlu0 %v2174, 15
        %v2232 = vpop.permute.xlu0 %2231
        %2233 = vrot.lane.b32.xlu0 %v2177, 15
        %v2234 = vpop.permute.xlu0 %2233
        %v2235 = vsel %vm1378, %v2228, %v2232
        %v2236 = vsel %vm1378, %v2230, %v2234
        %v2237 = vsel %vm1378, %v2232, %v2228
        %v2238 = vsel %vm1378, %v2234, %v2230
        %v2239 = vmul.f32 %v2237, %v1383
        %v2240 = vmul.f32 %v2235, %v1384
        %v2241 = vmul.f32 %v2238, %v1383
        %v2242 = vmul.f32 %v2236, %v1384
        %2243 = vrot.lane.b32.xlu0 %v1691, 15
        %v2244 = vpop.permute.xlu0 %2243
        %2245 = vrot.lane.b32.xlu0 %v1692, 15
        %v2246 = vpop.permute.xlu0 %2245
        %v2247 = vsel %vm1378, %v2244, %v2246
        %v2248 = vsel %vm1378, %v2246, %v2244
        %v2249 = vmul.f32 %v2248, %v1383
        %v2250 = vmul.f32 %v2247, %v1384
        %2251 = vrot.lane.b32.xlu0 %v2151, 1
        %v2252 = vpop.permute.xlu0 %2251
        %2253 = vrot.lane.b32.xlu0 %v2154, 1
        %v2254 = vpop.permute.xlu0 %2253
        %2255 = vrot.lane.b32.xlu0 %v2174, 1
        %v2256 = vpop.permute.xlu0 %2255
        %2257 = vrot.lane.b32.xlu0 %v2177, 1
        %v2258 = vpop.permute.xlu0 %2257
        %v2259 = vsel %vm1397, %v2252, %v2256
        %v2260 = vsel %vm1397, %v2254, %v2258
        %v2261 = vsel %vm1397, %v2256, %v2252
        %v2262 = vsel %vm1397, %v2258, %v2254
        %v2263 = vmul.f32 %v2261, %v1402
        %v2264 = vmul.f32 %v2259, %v1403
        %v2265 = vmul.f32 %v2262, %v1402
        %v2266 = vmul.f32 %v2260, %v1403
        %2267 = vrot.lane.b32.xlu0 %v1691, 1
        %v2268 = vpop.permute.xlu0 %2267
        %2269 = vrot.lane.b32.xlu0 %v1692, 1
        %v2270 = vpop.permute.xlu0 %2269
        %v2271 = vsel %vm1397, %v2268, %v2270
        %v2272 = vsel %vm1397, %v2270, %v2268
        %v2273 = vmul.f32 %v2272, %v1402
        %v2274 = vmul.f32 %v2271, %v1403
        %2275 = vrot.lane.b32.xlu0 %v2151, 127
        %v2276 = vpop.permute.xlu0 %2275
        %2277 = vrot.lane.b32.xlu0 %v2154, 127
        %v2278 = vpop.permute.xlu0 %2277
        %2279 = vrot.lane.b32.xlu0 %v2174, 127
        %v2280 = vpop.permute.xlu0 %2279
        %2281 = vrot.lane.b32.xlu0 %v2177, 127
        %v2282 = vpop.permute.xlu0 %2281
        %v2283 = vsel %vm1416, %v2276, %v2280
        %v2284 = vsel %vm1416, %v2278, %v2282
        %v2285 = vsel %vm1416, %v2280, %v2276
        %v2286 = vsel %vm1416, %v2282, %v2278
        %v2287 = vmul.f32 %v2283, %v1421
        %v2288 = vmul.f32 %v2285, %v1422
        %v2289 = vmul.f32 %v2284, %v1421
        %v2290 = vmul.f32 %v2286, %v1422
        %2291 = vrot.lane.b32.xlu0 %v1691, 127
        %v2292 = vpop.permute.xlu0 %2291
        %2293 = vrot.lane.b32.xlu0 %v1692, 127
        %v2294 = vpop.permute.xlu0 %2293
        %v2295 = vsel %vm1416, %v2292, %v2294
        %v2296 = vsel %vm1416, %v2294, %v2292
        %v2297 = vmul.f32 %v2295, %v1421
        %v2298 = vmul.f32 %v2296, %v1422
        %2299 = vrot.lane.b32.xlu0 %v2151, 113
        %v2300 = vpop.permute.xlu0 %2299
        %2301 = vrot.lane.b32.xlu0 %v2154, 113
        %v2302 = vpop.permute.xlu0 %2301
        %2303 = vrot.lane.b32.xlu0 %v2174, 113
        %v2304 = vpop.permute.xlu0 %2303
        %2305 = vrot.lane.b32.xlu0 %v2177, 113
        %v2306 = vpop.permute.xlu0 %2305
        %v2307 = vsel %vm1435, %v2300, %v2304
        %v2308 = vsel %vm1435, %v2302, %v2306
        %v2309 = vsel %vm1435, %v2304, %v2300
        %v2310 = vsel %vm1435, %v2306, %v2302
        %v2311 = vmul.f32 %v2307, %v1440
        %v2312 = vmul.f32 %v2309, %v1441
        %v2313 = vmul.f32 %v2308, %v1440
        %v2314 = vmul.f32 %v2310, %v1441
        %2315 = vrot.lane.b32.xlu0 %v1691, 113
        %v2316 = vpop.permute.xlu0 %2315
        %2317 = vrot.lane.b32.xlu0 %v1692, 113
        %v2318 = vpop.permute.xlu0 %2317
        %v2319 = vsel %vm1435, %v2316, %v2318
        %v2320 = vsel %vm1435, %v2318, %v2316
        %v2321 = vmul.f32 %v2319, %v1440
        %v2322 = vmul.f32 %v2320, %v1441
        %2323 = vrot.lane.b32.xlu0 %v2151, 112
        %v2324 = vpop.permute.xlu0 %2323
        %2325 = vrot.lane.b32.xlu0 %v2154, 112
        %v2326 = vpop.permute.xlu0 %2325
        %2327 = vrot.lane.b32.xlu0 %v2174, 112
        %v2328 = vpop.permute.xlu0 %2327
        %2329 = vrot.lane.b32.xlu0 %v2177, 112
        %v2330 = vpop.permute.xlu0 %2329
        %v2331 = vsel %vm1454, %v2324, %v2328
        %v2332 = vsel %vm1454, %v2326, %v2330
        %v2333 = vsel %vm1454, %v2328, %v2324
        %v2334 = vsel %vm1454, %v2330, %v2326
        %v2335 = vmul.f32 %v2331, %v1459
        %v2336 = vmul.f32 %v2333, %v1460
        %v2337 = vmul.f32 %v2332, %v1459
        %v2338 = vmul.f32 %v2334, %v1460
        %2339 = vrot.lane.b32.xlu0 %v1691, 112
        %v2340 = vpop.permute.xlu0 %2339
        %2341 = vrot.lane.b32.xlu0 %v1692, 112
        %v2342 = vpop.permute.xlu0 %2341
        %v2343 = vsel %vm1454, %v2340, %v2342
        %v2344 = vsel %vm1454, %v2342, %v2340
        %v2345 = vmul.f32 %v2343, %v1459
        %v2346 = vmul.f32 %v2344, %v1460
        %2347 = vrot.lane.b32.xlu0 %v2151, 111
        %v2348 = vpop.permute.xlu0 %2347
        %2349 = vrot.lane.b32.xlu0 %v2154, 111
        %v2350 = vpop.permute.xlu0 %2349
        %2351 = vrot.lane.b32.xlu0 %v2174, 111
        %v2352 = vpop.permute.xlu0 %2351
        %2353 = vrot.lane.b32.xlu0 %v2177, 111
        %v2354 = vpop.permute.xlu0 %2353
        %v2355 = vsel %vm1473, %v2348, %v2352
        %v2356 = vsel %vm1473, %v2350, %v2354
        %v2357 = vsel %vm1473, %v2352, %v2348
        %v2358 = vsel %vm1473, %v2354, %v2350
        %v2359 = vmul.f32 %v2355, %v1478
        %v2360 = vmul.f32 %v2357, %v1479
        %v2361 = vmul.f32 %v2356, %v1478
        %v2362 = vmul.f32 %v2358, %v1479
        %2363 = vrot.lane.b32.xlu0 %v1691, 111
        %v2364 = vpop.permute.xlu0 %2363
        %2365 = vrot.lane.b32.xlu0 %v1692, 111
        %v2366 = vpop.permute.xlu0 %2365
        %v2367 = vsel %vm1473, %v2364, %v2366
        %v2368 = vsel %vm1473, %v2366, %v2364
        %v2369 = vmul.f32 %v2367, %v1478
        %v2370 = vmul.f32 %v2368, %v1479
        %v2371 = vpack.c.bf16 %v2193, %v2191
        %v2372 = vpack.c.bf16 %v2194, %v2192
        %v2373 = vpack.c.bf16 %v2215, %v2201
        %v2374 = vpack.c.bf16 %v2216, %v2202
        %v2375 = vpack.c.bf16 %v2225, %v2217
        %v2376 = vpack.c.bf16 %v2226, %v2218
        %v2377 = vpack.c.bf16 %v2241, %v2239
        %v2378 = vpack.c.bf16 %v2242, %v2240
        %v2379 = vpack.c.bf16 %v2263, %v2249
        %v2380 = vpack.c.bf16 %v2264, %v2250
        %v2381 = vpack.c.bf16 %v2273, %v2265
        %v2382 = vpack.c.bf16 %v2274, %v2266
        %v2383 = vpack.c.bf16 %v2154, %v2151
        %v2384 = vpack.c.bf16 %v2177, %v2174
        %v2385 = vpack.c.bf16 %v2287, %v1691
        %v2386 = vpack.c.bf16 %v2288, %v1692
        %v2387 = vpack.c.bf16 %v2297, %v2289
        %v2388 = vpack.c.bf16 %v2298, %v2290
        %v2389 = vpack.c.bf16 %v2313, %v2311
        %v2390 = vpack.c.bf16 %v2314, %v2312
        %v2391 = vpack.c.bf16 %v2335, %v2321
        %v2392 = vpack.c.bf16 %v2336, %v2322
        %v2393 = vpack.c.bf16 %v2345, %v2337
        %v2394 = vpack.c.bf16 %v2346, %v2338
        %v2395 = vpack.c.bf16 %v2361, %v2359
        %v2396 = vpack.c.bf16 %v2362, %v2360
        %v2397 = vpack.c.bf16 %v2369, %v2369
        %v2398 = vpack.c.bf16 %v2370, %v2370
        %v2399 = vld [vmem:[%s15] sm:$0xff]
        %v2400 = vld [vmem:[%s16] sm:$0xff]
        %2402 = vset.pattern.permute.xlu0 0
        %2403 = vperm.xlu0 %2402, %v2400
        %v2404 = vpop.permute.xlu0 %2403
        %v2407 = vunpack.c.l.b16 %v2399
        %v2408 = vunpack.c.h.b16 %v2399
        %v2409 = vpack.c.b16 %v2407, %v2407
        %v2410 = vpack.c.b16 %v2408, %v2408
        %vm2412 = vcmask 719872
        %v2414 = vsel %vm2412, %v2410, 0
        %v2417 = vsel %vm1658, %v2397, 0
        %v2420 = vsel %vm1658, %v2398, 0
        %2422 = vmatpush.bf16.msra.mxu0 %v2385
        %2423 = vmatpush.bf16.msra.mxu0 %v2383
        %2424 = vmatpush.bf16.msra.mxu0 %v2381
        %2425 = vmatpush.bf16.msra.mxu0 %v2379
        %2426 = vmatpush.bf16.msra.mxu0 %v2377
        %2427 = vmatpush.bf16.msra.mxu0 %v2375
        %2428 = vmatpush.bf16.msra.mxu0 %v2373
        %2429 = vmatpush.bf16.msra.mxu0 %v2371
        %2430 = vmatmul.bf16.gmra.mxu0 %v2409
        %v2431 = vpop.f32.mrf.mxu0
        %v2432 = vadd.f32 %v2404, %v2431
        %v2433 = vpop.f32.mrf.mxu0
        %2434 = vdwg.mxu0
        %2435 = vmatpush.bf16.msra.mxu0 0
        %2436 = vmatpush.bf16.msra.mxu0 0
        %2437 = vmatpush.bf16.msra.mxu0 %v2417
        %2438 = vmatpush.bf16.msra.mxu0 %v2395
        %2439 = vmatpush.bf16.msra.mxu0 %v2393
        %2440 = vmatpush.bf16.msra.mxu0 %v2391
        %2441 = vmatpush.bf16.msra.mxu0 %v2389
        %2442 = vmatpush.bf16.msra.mxu0 %v2387
        %2443 = vmatmul.bf16.gmra.mxu0 %v2414
        %v2444 = vpop.f32.mrf.mxu0
        %v2445 = vadd.f32 %v2432, %v2444
        %v2446 = vpop.f32.mrf.mxu0
        %2447 = vdwg.mxu0
        %2448 = vmatpush.bf16.msra.mxu0 %v2386
        %2449 = vmatpush.bf16.msra.mxu0 %v2384
        %2450 = vmatpush.bf16.msra.mxu0 %v2382
        %2451 = vmatpush.bf16.msra.mxu0 %v2380
        %2452 = vmatpush.bf16.msra.mxu0 %v2378
        %2453 = vmatpush.bf16.msra.mxu0 %v2376
        %2454 = vmatpush.bf16.msra.mxu0 %v2374
        %2455 = vmatpush.bf16.msra.mxu0 %v2372
        %2456 = vmatmul.bf16.gmra.mxu0 %v2409
        %v2457 = vpop.f32.mrf.mxu0
        %v2458 = vadd.f32 %v2404, %v2457
        %v2459 = vpop.f32.mrf.mxu0
        %2460 = vdwg.mxu0
        %2461 = vmatpush.bf16.msra.mxu0 0
        %2462 = vmatpush.bf16.msra.mxu0 0
        %2463 = vmatpush.bf16.msra.mxu0 %v2420
        %2464 = vmatpush.bf16.msra.mxu0 %v2396
        %2465 = vmatpush.bf16.msra.mxu0 %v2394
        %2466 = vmatpush.bf16.msra.mxu0 %v2392
        %2467 = vmatpush.bf16.msra.mxu0 %v2390
        %2468 = vmatpush.bf16.msra.mxu0 %v2388
        %2469 = vmatmul.bf16.gmra.mxu0 %v2414
        %v2470 = vpop.f32.mrf.mxu0
        %v2471 = vadd.f32 %v2458, %v2470
        %v2472 = vpop.f32.mrf.mxu0
        %2473 = vdwg.mxu0
        %v2474 = vmax.f32 %v2445, 0.0
        %v2475 = vmax.f32 %v2471, 0.0
        %2476 = vrot.lane.b32.xlu0 %v2474, 17
        %v2477 = vpop.permute.xlu0 %2476
        %2478 = vrot.lane.b32.xlu0 %v2475, 17
        %v2479 = vpop.permute.xlu0 %2478
        %v2480 = vsel %vm1340, %v2477, %v2479
        %v2481 = vsel %vm1340, %v2479, %v2477
        %v2482 = vmul.f32 %v2481, %v1345
        %v2483 = vmul.f32 %v2480, %v1346
        %2484 = vrot.lane.b32.xlu0 %v2474, 16
        %v2485 = vpop.permute.xlu0 %2484
        %2486 = vrot.lane.b32.xlu0 %v2475, 16
        %v2487 = vpop.permute.xlu0 %2486
        %v2488 = vsel %vm1359, %v2485, %v2487
        %v2489 = vsel %vm1359, %v2487, %v2485
        %v2490 = vmul.f32 %v2489, %v1364
        %v2491 = vmul.f32 %v2488, %v1365
        %2492 = vrot.lane.b32.xlu0 %v2474, 15
        %v2493 = vpop.permute.xlu0 %2492
        %2494 = vrot.lane.b32.xlu0 %v2475, 15
        %v2495 = vpop.permute.xlu0 %2494
        %v2496 = vsel %vm1378, %v2493, %v2495
        %v2497 = vsel %vm1378, %v2495, %v2493
        %v2498 = vmul.f32 %v2497, %v1383
        %v2499 = vmul.f32 %v2496, %v1384
        %2500 = vrot.lane.b32.xlu0 %v2474, 1
        %v2501 = vpop.permute.xlu0 %2500
        %2502 = vrot.lane.b32.xlu0 %v2475, 1
        %v2503 = vpop.permute.xlu0 %2502
        %v2504 = vsel %vm1397, %v2501, %v2503
        %v2505 = vsel %vm1397, %v2503, %v2501
        %v2506 = vmul.f32 %v2505, %v1402
        %v2507 = vmul.f32 %v2504, %v1403
        %2508 = vrot.lane.b32.xlu0 %v2474, 127
        %v2509 = vpop.permute.xlu0 %2508
        %2510 = vrot.lane.b32.xlu0 %v2475, 127
        %v2511 = vpop.permute.xlu0 %2510
        %v2512 = vsel %vm1416, %v2509, %v2511
        %v2513 = vsel %vm1416, %v2511, %v2509
        %v2514 = vmul.f32 %v2512, %v1421
        %v2515 = vmul.f32 %v2513, %v1422
        %2516 = vrot.lane.b32.xlu0 %v2474, 113
        %v2517 = vpop.permute.xlu0 %2516
        %2518 = vrot.lane.b32.xlu0 %v2475, 113
        %v2519 = vpop.permute.xlu0 %2518
        %v2520 = vsel %vm1435, %v2517, %v2519
        %v2521 = vsel %vm1435, %v2519, %v2517
        %v2522 = vmul.f32 %v2520, %v1440
        %v2523 = vmul.f32 %v2521, %v1441
        %2524 = vrot.lane.b32.xlu0 %v2474, 112
        %v2525 = vpop.permute.xlu0 %2524
        %2526 = vrot.lane.b32.xlu0 %v2475, 112
        %v2527 = vpop.permute.xlu0 %2526
        %v2528 = vsel %vm1454, %v2525, %v2527
        %v2529 = vsel %vm1454, %v2527, %v2525
        %v2530 = vmul.f32 %v2528, %v1459
        %v2531 = vmul.f32 %v2529, %v1460
        %2532 = vrot.lane.b32.xlu0 %v2474, 111
        %v2533 = vpop.permute.xlu0 %2532
        %2534 = vrot.lane.b32.xlu0 %v2475, 111
        %v2535 = vpop.permute.xlu0 %2534
        %v2536 = vsel %vm1473, %v2533, %v2535
        %v2537 = vsel %vm1473, %v2535, %v2533
        %v2538 = vmul.f32 %v2536, %v1478
        %v2539 = vmul.f32 %v2537, %v1479
        %v2540 = vpack.c.bf16 %v2490, %v2482
        %v2541 = vpack.c.bf16 %v2491, %v2483
        %v2542 = vpack.c.bf16 %v2506, %v2498
        %v2543 = vpack.c.bf16 %v2507, %v2499
        %v2544 = vpack.c.bf16 %v2514, %v2474
        %v2545 = vpack.c.bf16 %v2515, %v2475
        %v2546 = vpack.c.bf16 %v2530, %v2522
        %v2547 = vpack.c.bf16 %v2531, %v2523
        %v2548 = vpack.c.bf16 %v2538, %v2538
        %v2549 = vpack.c.bf16 %v2539, %v2539
        %v2550 = vld [vmem:[%s17] sm:$0xf]
        %v2551 = vld [vmem:[%s18] sm:$0xff]
        %2553 = vset.pattern.permute.xlu0 0
        %2554 = vperm.xlu0 %2553, %v2551
        %v2555 = vpop.permute.xlu0 %2554
        %v2558 = vsel %vm1654, %v2550, 0
        %v2561 = vsel %vm1658, %v2548, 0
        %v2564 = vsel %vm1658, %v2549, 0
        %2566 = vmatpush.bf16.msra.mxu0 0
        %2567 = vmatpush.bf16.msra.mxu0 0
        %2568 = vmatpush.bf16.msra.mxu0 0
        %2569 = vmatpush.bf16.msra.mxu0 %v2561
        %2570 = vmatpush.bf16.msra.mxu0 %v2546
        %2571 = vmatpush.bf16.msra.mxu0 %v2544
        %2572 = vmatpush.bf16.msra.mxu0 %v2542
        %2573 = vmatpush.bf16.msra.mxu0 %v2540
        %2574 = vmatmul.bf16.gmra.mxu0 %v2558
        %v2575 = vpop.f32.mrf.mxu0
        %v2576 = vadd.f32 %v2555, %v2575
        %v2577 = vpop.f32.mrf.mxu0
        %2578 = vdwg.mxu0
        %2579 = vmatpush.bf16.msra.mxu0 0
        %2580 = vmatpush.bf16.msra.mxu0 0
        %2581 = vmatpush.bf16.msra.mxu0 0
        %2582 = vmatpush.bf16.msra.mxu0 %v2564
        %2583 = vmatpush.bf16.msra.mxu0 %v2547
        %2584 = vmatpush.bf16.msra.mxu0 %v2545
        %2585 = vmatpush.bf16.msra.mxu0 %v2543
        %2586 = vmatpush.bf16.msra.mxu0 %v2541
        %2587 = vmatmul.bf16.gmra.mxu0 %v2558
        %v2588 = vpop.f32.mrf.mxu0
        %v2589 = vadd.f32 %v2555, %v2588
        %v2590 = vpop.f32.mrf.mxu0
        %2591 = vdwg.mxu0
        %v2592 = vmax.f32 %v2576, 0.0
        %v2593 = vmax.f32 %v2589, 0.0
        %v2594 = vld [vmem:[%s19] sm:$0xff]
        %2596 = vset.pattern.permute.xlu0 0
        %2597 = vperm.xlu0 %2596, %v2594
        %v2598 = vpop.permute.xlu0 %2597
        %v2600 = vmul.f32 %v2592, %v2598
        %v2601 = vmul.f32 %v2593, %v2598
        %v2602 = vrot.slane %v2600, 4
        %v2603 = vadd.f32 %v2600, %v2602
        %v2604 = vrot.slane %v2603, 2
        %v2605 = vadd.f32 %v2603, %v2604
        %v2606 = vrot.slane %v2605, 1
        %v2607 = vadd.f32 %v2605, %v2606
        %v2608 = vrot.slane %v2601, 4
        %v2609 = vadd.f32 %v2601, %v2608
        %v2610 = vrot.slane %v2609, 2
        %v2611 = vadd.f32 %v2609, %v2610
        %v2612 = vrot.slane %v2611, 1
        %v2613 = vadd.f32 %v2611, %v2612
        %v2614 = vld [vmem:[#allocation2] sm:$0x1]
        %2616 = vset.pattern.permute.xlu0 0
        %2617 = vperm.xlu0 %2616, %v2614
        %v2618 = vpop.permute.xlu0 %2617
        %v2620 = vperm.slane %v2618, 0
        %v2621 = vadd.f32 %v2607, %v2620
        %v2622 = vadd.f32 %v2613, %v2620
        %v2623 = vld [vmem:[%s670] sm:$0x3]
        %v2624 = vmul.f32 %v2623, %v678
        %v2625 = vsub.f32 1.0, %v2623
        %v2628 = vrot.slane %v2622, 7
        %v2629 = vsel %vm1322, %v2621, %v2628
        %v2631 = vmul.f32 %v2625, %v2629
        %v2632 = vadd.f32 %v2624, %v2631
        %v2633 = vlaneseq
        %vm2634 = vcmp.ge.s32.totalorder %v2633, 0
        %vm2635 = vcmp.lt.s32.totalorder %v2633, 256
        %vm2636 = vmand %vm2634, %vm2635
        %2637 = vst.msk [vmem:[%s662] sm:$0x3] %vm2636, %v2632
        %s2638 = sand.u32 %s496, 1
        %s2639 = scalar_lea.sflag [#allocation4], %s2638
        %s2640 = sand.u32 %s496, 1
        %s2641 = smul.addr %s2640, 2
        %s2642 = scalar_lea.vmem [#allocation3], %s2641
        // Predicated region
        $region105: #{tpu_custom_call.1} parent=103 // pred_check
          %p2643 = pneg %p506
        $region106: #{tpu_custom_call.1} parent=103 // pred_check_branch
          %2645 = sbr.rel (%p2643) target = $region108
        $region107: #{tpu_custom_call.1} parent=103 // pred_region
          %2647 = vsyncadd %s2639, 0
          %s2648 = smul.addr %s37, 2
          %s2649 = scalar_lea.hbm %s21, %s2648
          %s2651 = sshll.u32 %s2642, 4
          %s2652 = int_to_ptr.vmem [resolvable:$true] %s2651
          %s2653 = sshll.u32 %s2649, 4
          %s2654 = int_to_ptr.hbm [resolvable:$true] %s2653
          %2656 = dma.vmem_to_hbm [thread:$0]  %s2652, 32, %s2654, %s2639
        $region108: #{tpu_custom_call.1} parent=103 // pred_fallthru
          _
      $region104: #{tpu_custom_call.1} parent=5 // pred_fallthru
        _
      %p2657 = scmp.le.s32.totalorder 2, %s32
      // Predicated region
      $region109: #{tpu_custom_call.1} parent=5 // pred_check
        %p2658 = pneg %p2657
      $region110: #{tpu_custom_call.1} parent=5 // pred_check_branch
        %2660 = sbr.rel (%p2658) target = $region112
      $region111: #{tpu_custom_call.1} parent=5 // pred_region
        %s2661 = ssub.s32 %s32, 2
        // Predicated region
        $region113: #{tpu_custom_call.1} parent=111 // pred_check
          %p2662 = pneg %p512
        $region114: #{tpu_custom_call.1} parent=111 // pred_check_branch
          %2664 = sbr.rel (%p2662) target = $region116
        $region115: #{tpu_custom_call.1} parent=111 // pred_region
          %s2665 = sand.u32 %s497, 1
          %s2666 = scalar_lea.sflag [#allocation4], %s2665
          %s2667 = sand.u32 %s497, 1
          %s2668 = smul.addr %s2667, 2
          %s2669 = scalar_lea.vmem [#allocation3], %s2668
          %2671 = dma.done %s2666, 32
        $region116: #{tpu_custom_call.1} parent=111 // pred_fallthru
          _
      $region112: #{tpu_custom_call.1} parent=5 // pred_fallthru
        _
    $region6: #{tpu_custom_call.1} parent=1 // loop_footer
      %s36 = sadd.s32 1, %s32
    $region7: #{tpu_custom_call.1} parent=1 // loop_footer_branch
      %31 = sbr.rel target = $region3
    $region8: #{tpu_custom_call.1} parent=1 // loop_exit
      _
    %2672 = vsyncpa [#allocation4], 1
    %s2673 = scalar_lea.sflag [#allocation4], 1
    %2674 = vsyncpa %s2673, 1

</llo_original>
